<compile_context>
chip_gen: v7x
topology: tpu7x:2x2x1
jax: 0.10.0
libtpu: 0.0.40
codegen_flags: <defaults>
</compile_context>

<pallas_src>
import jax
import jax.numpy as jnp
from jax.experimental import pallas as pl
from jax.experimental.pallas import tpu as pltpu

# ---- model hyper-parameters (the PyTorch file's module-level globals) ----
EMB_SIZE = 32
HIDDEN_SIZE = 64
VOCAB_SIZE = 32
SEQ_MAX_LEN = 16
HEAD_NUM = 4                       # hard-coded in MultiHeadAttention
HEAD_DIM = EMB_SIZE // HEAD_NUM
LN_EPS = 1e-5
# PyTorch: weight = q @ k^T / int(k.shape[-1] ** 0.5)  -- note the int() truncation!
ATTN_INV_SCALE = 1.0 / float(int(HEAD_DIM ** 0.5))
N_LAYERS = 3
MASK_FILL = 1e-9                   # PyTorch masked_fill_(mask, 1e-09)
NEG_BIG = -1e30                    # excludes cross-batch rows from the fused softmax


# ----------------------------- fused kernel --------------------------------

def gpt_fused_kernel(tok_col_ref, mcode_ref, tok_emb_ref, pos_ref,
                     wqkv1_ref, bqkv1_ref, g1_ref, be1_ref,
                     wqkv2_ref, bqkv2_ref, g2_ref, be2_ref,
                     wf1_ref, bf1_ref, wf2_ref, bf2_ref, gf_ref, bef_ref,
                     wc_ref, bc_ref,
                     o_ref):
    BS = tok_col_ref.shape[0]              # B * S (flattened rows)
    V, E = tok_emb_ref.shape

    # ---- embedding: one-hot gather on the MXU + positional add -------------
    tok_col = tok_col_ref[...]                                        # (BS, 1) int32
    onehot = (jax.lax.broadcasted_iota(jnp.int32, (BS, V), 1)
              == tok_col).astype(jnp.float32)                         # (BS, V)
    x = jnp.dot(onehot, tok_emb_ref[...],
                preferred_element_type=jnp.float32)                   # (BS, E)
    x = x + pos_ref[...]                                              # pos pre-tiled to (BS, E)

    # ---- masked-fill selector codes (built once in the wrapper) -------------
    # 0 = keep score, 1 = fill with 1e-9 (pad | causal), 2 = cross-batch (exclude)
    mcode = mcode_ref[...]                                            # (BS, BS) int32
    fill_m = mcode == 1
    cross_m = mcode == 2

    def layer_norm(y, gamma, beta):
        mu = jnp.mean(y, axis=-1, keepdims=True)
        var = jnp.mean((y - mu) * (y - mu), axis=-1, keepdims=True)
        return (y - mu) * jax.lax.rsqrt(var + LN_EPS) * gamma + beta

    def mha(xin, wqkv, bqkv, gamma, beta):
        # single fused QKV projection over all B*S rows
        qkv = jnp.dot(xin, wqkv, preferred_element_type=jnp.float32) + bqkv   # (BS, 3E)
        outs = []
        for h in range(HEAD_NUM):                                    # static, 4 iters
            lo = h * HEAD_DIM
            q_h = qkv[:, lo:lo + HEAD_DIM]                           # (BS, D)
            k_h = qkv[:, E + lo:E + lo + HEAD_DIM]
            v_h = qkv[:, 2 * E + lo:2 * E + lo + HEAD_DIM]
            s = jnp.einsum('sd,td->st', q_h, k_h,
                           preferred_element_type=jnp.float32) * ATTN_INV_SCALE  # (BS, BS)
            # PyTorch fills masked positions with the VALUE 1e-9 (not -inf)
            s = jnp.where(fill_m, MASK_FILL, s)
            # cross-batch entries must not participate in the softmax at all
            s = jnp.where(cross_m, NEG_BIG, s)
            s = s - jnp.max(s, axis=-1, keepdims=True)
            e = jnp.exp(s)
            p = e / jnp.sum(e, axis=-1, keepdims=True)
            outs.append(jnp.dot(p, v_h, preferred_element_type=jnp.float32))  # (BS, D)
        attn = jnp.concatenate(outs, axis=-1)                         # (BS, E)
        return layer_norm(attn + xin, gamma, beta)

    def ffn(xin, w1, b1, w2, b2, gamma, beta):
        h = jnp.maximum(jnp.dot(xin, w1, preferred_element_type=jnp.float32) + b1, 0.0)
        y = jnp.dot(h, w2, preferred_element_type=jnp.float32) + b2
        return layer_norm(y + xin, gamma, beta)

    # ---- the single live DecoderLayer --------------------------------------
    x = mha(x, wqkv1_ref[...], bqkv1_ref[...], g1_ref[...], be1_ref[...])
    x = mha(x, wqkv2_ref[...], bqkv2_ref[...], g2_ref[...], be2_ref[...])
    x = ffn(x, wf1_ref[...], bf1_ref[...], wf2_ref[...], bf2_ref[...],
            gf_ref[...], bef_ref[...])

    # ---- cls + argmax over vocab -------------------------------------------
    logits = jnp.dot(x, wc_ref[...], preferred_element_type=jnp.float32) + bc_ref[...]  # (BS, V)
    mx = jnp.max(logits, axis=-1, keepdims=True)
    iota_v = jax.lax.broadcasted_iota(jnp.int32, logits.shape, 1)
    # first index achieving the max (matches torch.argmax tie-break)
    idx = jnp.min(jnp.where(logits >= mx, iota_v, V), axis=-1, keepdims=True)  # (BS, 1)
    o_ref[...] = idx.astype(jnp.int32)


# ----------------------------- wrapper --------------------------------------

def _vmem_specs(n):
    return [pl.BlockSpec(memory_space=pltpu.MemorySpace.VMEM) for _ in range(n)]


def gpt_forward(tokens, params):
    """Inference path of GPT_Model.forward(x, label=None) -> argmax token ids."""
    B, S = tokens.shape
    BS = B * S

    # --- tiny host/XLA-side glue (one fusion): flatten tokens, build mask codes,
    #     tile positional embeddings for the flattened layout ---
    tok_col = tokens.reshape(BS, 1).astype(jnp.int32)

    ri = jnp.arange(BS)
    same_batch = (ri[:, None] // S) == (ri[None, :] // S)
    causal = (ri[None, :] % S) > (ri[:, None] % S)          # key index j > query index i
    pad = (tokens.reshape(BS, 1) == 0)                      # padding on the QUERY row
    fill = pad | causal
    mcode = jnp.where(same_batch, jnp.where(fill, 1, 0), 2).astype(jnp.int32)  # (BS, BS)

    pos = jnp.tile(params['pos_emb'][:S], (B, 1))           # (BS, E)

    # Reference feeds `emb` to every DecoderLayer and only the last layer's
    # output reaches cls -> layers 0..N-2 are dead compute; output is identical.
    lp = params['layers'][-1]

    out = pl.pallas_call(
        gpt_fused_kernel,
        out_shape=jax.ShapeDtypeStruct((BS, 1), jnp.int32),
        in_specs=_vmem_specs(20),
        out_specs=pl.BlockSpec(memory_space=pltpu.MemorySpace.VMEM),
    )(tok_col, mcode, params['tok_emb'], pos,
      lp['attn1']['wqkv'], lp['attn1']['bqkv'], lp['attn1']['ln_g'], lp['attn1']['ln_b'],
      lp['attn2']['wqkv'], lp['attn2']['bqkv'], lp['attn2']['ln_g'], lp['attn2']['ln_b'],
      lp['ff']['w1'], lp['ff']['b1'], lp['ff']['w2'], lp['ff']['b2'],
      lp['ff']['ln_g'], lp['ff']['ln_b'],
      params['cls']['w'], params['cls']['b'])

    return out.reshape(B, S)


# --------------------------- parameter init ---------------------------------

def init_params(key):
    def dense(k, fi, fo):
        return jax.random.normal(k, (fi, fo), jnp.float32) * 0.02

    keys = iter(jax.random.split(key, 64))

    def mha_params():
        # Q|K|V fused at init time -> one (E, 3E) projection weight.
        wqkv = jnp.concatenate(
            [dense(next(keys), EMB_SIZE, EMB_SIZE) for _ in range(3)], axis=1)
        return {
            'wqkv': wqkv,
            'bqkv': jnp.zeros((1, 3 * EMB_SIZE), jnp.float32),
            'ln_g': jnp.ones((1, EMB_SIZE), jnp.float32),
            'ln_b': jnp.zeros((1, EMB_SIZE), jnp.float32),
        }

    def ff_params():
        return {
            'w1': dense(next(keys), EMB_SIZE, HIDDEN_SIZE),
            'b1': jnp.zeros((1, HIDDEN_SIZE), jnp.float32),
            'w2': dense(next(keys), HIDDEN_SIZE, EMB_SIZE),
            'b2': jnp.zeros((1, EMB_SIZE), jnp.float32),
            'ln_g': jnp.ones((1, EMB_SIZE), jnp.float32),
            'ln_b': jnp.zeros((1, EMB_SIZE), jnp.float32),
        }

    params = {
        'tok_emb': jax.random.normal(next(keys), (VOCAB_SIZE, EMB_SIZE), jnp.float32) * 0.02,
        'pos_emb': jax.random.normal(next(keys), (SEQ_MAX_LEN, EMB_SIZE), jnp.float32) * 0.02,
        'layers': [{'attn1': mha_params(), 'attn2': mha_params(), 'ff': ff_params()}
                   for _ in range(N_LAYERS)],
        'cls': {'w': dense(next(keys), EMB_SIZE, VOCAB_SIZE),
                'b': jnp.zeros((1, VOCAB_SIZE), jnp.float32)},
    }
    return params


# TODO(synk): CrossEntropyLoss training branch (label != None) and the host-side
# autoregressive `answer()` loop are not implemented; this reproduces the
# inference branch (argmax over vocab).


if __name__ == "__main__":
    key = jax.random.PRNGKey(0)
    k_par, k_tok = jax.random.split(key)
    params = init_params(k_par)
    tokens = jax.random.randint(k_tok, (2, 8), 0, VOCAB_SIZE, dtype=jnp.int32)

    pred = jax.jit(gpt_forward)(tokens, params)
    jax.block_until_ready(pred)
    assert pred.shape == (2, 8) and pred.dtype == jnp.int32
    print("KERNEL_OK")
</pallas_src>

<mosaic_0001>
module attributes {stable_mosaic.version = 11 : i64} {
  func.func @gpt_fused_kernel(%arg0: memref<16x1xi32, #tpu.memory_space<vmem>>, %arg1: memref<16x16xi32, #tpu.memory_space<vmem>>, %arg2: memref<32x32xf32, #tpu.memory_space<vmem>>, %arg3: memref<16x32xf32, #tpu.memory_space<vmem>>, %arg4: memref<32x96xf32, #tpu.memory_space<vmem>>, %arg5: memref<1x96xf32, #tpu.memory_space<vmem>>, %arg6: memref<1x32xf32, #tpu.memory_space<vmem>>, %arg7: memref<1x32xf32, #tpu.memory_space<vmem>>, %arg8: memref<32x96xf32, #tpu.memory_space<vmem>>, %arg9: memref<1x96xf32, #tpu.memory_space<vmem>>, %arg10: memref<1x32xf32, #tpu.memory_space<vmem>>, %arg11: memref<1x32xf32, #tpu.memory_space<vmem>>, %arg12: memref<32x64xf32, #tpu.memory_space<vmem>>, %arg13: memref<1x64xf32, #tpu.memory_space<vmem>>, %arg14: memref<64x32xf32, #tpu.memory_space<vmem>>, %arg15: memref<1x32xf32, #tpu.memory_space<vmem>>, %arg16: memref<1x32xf32, #tpu.memory_space<vmem>>, %arg17: memref<1x32xf32, #tpu.memory_space<vmem>>, %arg18: memref<32x32xf32, #tpu.memory_space<vmem>>, %arg19: memref<1x32xf32, #tpu.memory_space<vmem>>, %arg20: memref<16x1xi32, #tpu.memory_space<vmem>>) attributes {dimension_semantics = [], scalar_prefetch = 0 : i64, scratch_operands = 0 : i64, tpu.core_type = #tpu.core_type<tc>} {
    %c0 = arith.constant 0 : index
    %c0_0 = arith.constant 0 : index
    %0 = vector.load %arg0[%c0, %c0_0] : memref<16x1xi32, #tpu.memory_space<vmem>>, vector<16x1xi32>
    %1 = tpu.iota {dimensions = array<i32: 1>} : vector<16x32xi32>
    %2 = vector.broadcast %0 : vector<16x1xi32> to vector<16x32xi32>
    %3 = arith.cmpi eq, %1, %2 : vector<16x32xi32>
    %4 = arith.extui %3 : vector<16x32xi1> to vector<16x32xi32>
    %5 = arith.sitofp %4 : vector<16x32xi32> to vector<16x32xf32>
    %c0_1 = arith.constant 0 : index
    %c0_2 = arith.constant 0 : index
    %6 = vector.load %arg2[%c0_1, %c0_2] : memref<32x32xf32, #tpu.memory_space<vmem>>, vector<32x32xf32>
    %cst = arith.constant dense<0.000000e+00> : vector<16x32xf32>
    %7 = tpu.matmul %5, %6, %cst {dimension_numbers = #tpu.dot_dimension_numbers<[1], [0], [0], [1], [0, 0, 1, 1], [], []>} : vector<16x32xf32>, vector<32x32xf32>, vector<16x32xf32> -> vector<16x32xf32>
    %c0_3 = arith.constant 0 : index
    %c0_4 = arith.constant 0 : index
    %8 = vector.load %arg3[%c0_3, %c0_4] : memref<16x32xf32, #tpu.memory_space<vmem>>, vector<16x32xf32>
    %9 = arith.addf %7, %8 : vector<16x32xf32>
    %c0_5 = arith.constant 0 : index
    %c0_6 = arith.constant 0 : index
    %10 = vector.load %arg1[%c0_5, %c0_6] : memref<16x16xi32, #tpu.memory_space<vmem>>, vector<16x16xi32>
    %c1_i32 = arith.constant 1 : i32
    %11 = vector.broadcast %c1_i32 : i32 to vector<16x16xi32>
    %12 = arith.cmpi eq, %10, %11 : vector<16x16xi32>
    %c2_i32 = arith.constant 2 : i32
    %13 = vector.broadcast %c2_i32 : i32 to vector<16x16xi32>
    %14 = arith.cmpi eq, %10, %13 : vector<16x16xi32>
    %c0_7 = arith.constant 0 : index
    %c0_8 = arith.constant 0 : index
    %15 = vector.load %arg4[%c0_7, %c0_8] : memref<32x96xf32, #tpu.memory_space<vmem>>, vector<32x96xf32>
    %c0_9 = arith.constant 0 : index
    %c0_10 = arith.constant 0 : index
    %16 = vector.load %arg5[%c0_9, %c0_10] : memref<1x96xf32, #tpu.memory_space<vmem>>, vector<1x96xf32>
    %c0_11 = arith.constant 0 : index
    %c0_12 = arith.constant 0 : index
    %17 = vector.load %arg6[%c0_11, %c0_12] : memref<1x32xf32, #tpu.memory_space<vmem>>, vector<1x32xf32>
    %c0_13 = arith.constant 0 : index
    %c0_14 = arith.constant 0 : index
    %18 = vector.load %arg7[%c0_13, %c0_14] : memref<1x32xf32, #tpu.memory_space<vmem>>, vector<1x32xf32>
    %cst_15 = arith.constant dense<0.000000e+00> : vector<16x96xf32>
    %19 = tpu.matmul %9, %15, %cst_15 {dimension_numbers = #tpu.dot_dimension_numbers<[1], [0], [0], [1], [0, 0, 1, 1], [], []>} : vector<16x32xf32>, vector<32x96xf32>, vector<16x96xf32> -> vector<16x96xf32>
    %20 = vector.broadcast %16 : vector<1x96xf32> to vector<16x96xf32>
    %21 = arith.addf %19, %20 : vector<16x96xf32>
    %22 = vector.extract_strided_slice %21 {offsets = [0, 0], sizes = [16, 8], strides = [1, 1]} : vector<16x96xf32> to vector<16x8xf32>
    %23 = vector.extract_strided_slice %21 {offsets = [0, 32], sizes = [16, 8], strides = [1, 1]} : vector<16x96xf32> to vector<16x8xf32>
    %24 = vector.extract_strided_slice %21 {offsets = [0, 64], sizes = [16, 8], strides = [1, 1]} : vector<16x96xf32> to vector<16x8xf32>
    "tpu.trace_start"() <{level = 10 : i32, message = "sd,td->st"}> : () -> ()
    %cst_16 = arith.constant dense<0.000000e+00> : vector<16x16xf32>
    %25 = tpu.matmul %22, %23, %cst_16 {dimension_numbers = #tpu.dot_dimension_numbers<[1], [1], [0], [0], [0, 0, 1, 0], [], []>} : vector<16x8xf32>, vector<16x8xf32>, vector<16x16xf32> -> vector<16x16xf32>
    "tpu.trace_stop"() : () -> ()
    %cst_17 = arith.constant 5.000000e-01 : f32
    %26 = vector.broadcast %cst_17 : f32 to vector<16x16xf32>
    %27 = arith.mulf %25, %26 : vector<16x16xf32>
    %cst_18 = arith.constant 9.99999971E-10 : f32
    %28 = vector.broadcast %cst_18 : f32 to vector<16x16xf32>
    %29 = arith.select %12, %28, %27 : vector<16x16xi1>, vector<16x16xf32>
    %cst_19 = arith.constant -1.000000e+30 : f32
    %30 = vector.broadcast %cst_19 : f32 to vector<16x16xf32>
    %31 = arith.select %14, %30, %29 : vector<16x16xi1>, vector<16x16xf32>
    %cst_20 = arith.constant dense<0xFF800000> : vector<16xf32>
    %32 = vector.multi_reduction <maximumf>, %31, %cst_20 [1] : vector<16x16xf32> to vector<16xf32>
    %33 = vector.shape_cast %32 : vector<16xf32> to vector<16x1xf32>
    %34 = vector.broadcast %33 : vector<16x1xf32> to vector<16x16xf32>
    %35 = arith.subf %31, %34 : vector<16x16xf32>
    %36 = math.exp %35 : vector<16x16xf32>
    %cst_21 = arith.constant dense<0.000000e+00> : vector<16xf32>
    %37 = vector.multi_reduction <add>, %36, %cst_21 [1] : vector<16x16xf32> to vector<16xf32>
    %38 = vector.shape_cast %37 : vector<16xf32> to vector<16x1xf32>
    %39 = vector.broadcast %38 : vector<16x1xf32> to vector<16x16xf32>
    %40 = arith.divf %36, %39 : vector<16x16xf32>
    %cst_22 = arith.constant dense<0.000000e+00> : vector<16x8xf32>
    %41 = tpu.matmul %40, %24, %cst_22 {dimension_numbers = #tpu.dot_dimension_numbers<[1], [0], [0], [1], [0, 0, 1, 1], [], []>} : vector<16x16xf32>, vector<16x8xf32>, vector<16x8xf32> -> vector<16x8xf32>
    %42 = vector.extract_strided_slice %21 {offsets = [0, 8], sizes = [16, 8], strides = [1, 1]} : vector<16x96xf32> to vector<16x8xf32>
    %43 = vector.extract_strided_slice %21 {offsets = [0, 40], sizes = [16, 8], strides = [1, 1]} : vector<16x96xf32> to vector<16x8xf32>
    %44 = vector.extract_strided_slice %21 {offsets = [0, 72], sizes = [16, 8], strides = [1, 1]} : vector<16x96xf32> to vector<16x8xf32>
    "tpu.trace_start"() <{level = 10 : i32, message = "sd,td->st"}> : () -> ()
    %cst_23 = arith.constant dense<0.000000e+00> : vector<16x16xf32>
    %45 = tpu.matmul %42, %43, %cst_23 {dimension_numbers = #tpu.dot_dimension_numbers<[1], [1], [0], [0], [0, 0, 1, 0], [], []>} : vector<16x8xf32>, vector<16x8xf32>, vector<16x16xf32> -> vector<16x16xf32>
    "tpu.trace_stop"() : () -> ()
    %cst_24 = arith.constant 5.000000e-01 : f32
    %46 = vector.broadcast %cst_24 : f32 to vector<16x16xf32>
    %47 = arith.mulf %45, %46 : vector<16x16xf32>
    %cst_25 = arith.constant 9.99999971E-10 : f32
    %48 = vector.broadcast %cst_25 : f32 to vector<16x16xf32>
    %49 = arith.select %12, %48, %47 : vector<16x16xi1>, vector<16x16xf32>
    %cst_26 = arith.constant -1.000000e+30 : f32
    %50 = vector.broadcast %cst_26 : f32 to vector<16x16xf32>
    %51 = arith.select %14, %50, %49 : vector<16x16xi1>, vector<16x16xf32>
    %cst_27 = arith.constant dense<0xFF800000> : vector<16xf32>
    %52 = vector.multi_reduction <maximumf>, %51, %cst_27 [1] : vector<16x16xf32> to vector<16xf32>
    %53 = vector.shape_cast %52 : vector<16xf32> to vector<16x1xf32>
    %54 = vector.broadcast %53 : vector<16x1xf32> to vector<16x16xf32>
    %55 = arith.subf %51, %54 : vector<16x16xf32>
    %56 = math.exp %55 : vector<16x16xf32>
    %cst_28 = arith.constant dense<0.000000e+00> : vector<16xf32>
    %57 = vector.multi_reduction <add>, %56, %cst_28 [1] : vector<16x16xf32> to vector<16xf32>
    %58 = vector.shape_cast %57 : vector<16xf32> to vector<16x1xf32>
    %59 = vector.broadcast %58 : vector<16x1xf32> to vector<16x16xf32>
    %60 = arith.divf %56, %59 : vector<16x16xf32>
    %cst_29 = arith.constant dense<0.000000e+00> : vector<16x8xf32>
    %61 = tpu.matmul %60, %44, %cst_29 {dimension_numbers = #tpu.dot_dimension_numbers<[1], [0], [0], [1], [0, 0, 1, 1], [], []>} : vector<16x16xf32>, vector<16x8xf32>, vector<16x8xf32> -> vector<16x8xf32>
    %62 = vector.extract_strided_slice %21 {offsets = [0, 16], sizes = [16, 8], strides = [1, 1]} : vector<16x96xf32> to vector<16x8xf32>
    %63 = vector.extract_strided_slice %21 {offsets = [0, 48], sizes = [16, 8], strides = [1, 1]} : vector<16x96xf32> to vector<16x8xf32>
    %64 = vector.extract_strided_slice %21 {offsets = [0, 80], sizes = [16, 8], strides = [1, 1]} : vector<16x96xf32> to vector<16x8xf32>
    "tpu.trace_start"() <{level = 10 : i32, message = "sd,td->st"}> : () -> ()
    %cst_30 = arith.constant dense<0.000000e+00> : vector<16x16xf32>
    %65 = tpu.matmul %62, %63, %cst_30 {dimension_numbers = #tpu.dot_dimension_numbers<[1], [1], [0], [0], [0, 0, 1, 0], [], []>} : vector<16x8xf32>, vector<16x8xf32>, vector<16x16xf32> -> vector<16x16xf32>
    "tpu.trace_stop"() : () -> ()
    %cst_31 = arith.constant 5.000000e-01 : f32
    %66 = vector.broadcast %cst_31 : f32 to vector<16x16xf32>
    %67 = arith.mulf %65, %66 : vector<16x16xf32>
    %cst_32 = arith.constant 9.99999971E-10 : f32
    %68 = vector.broadcast %cst_32 : f32 to vector<16x16xf32>
    %69 = arith.select %12, %68, %67 : vector<16x16xi1>, vector<16x16xf32>
    %cst_33 = arith.constant -1.000000e+30 : f32
    %70 = vector.broadcast %cst_33 : f32 to vector<16x16xf32>
    %71 = arith.select %14, %70, %69 : vector<16x16xi1>, vector<16x16xf32>
    %cst_34 = arith.constant dense<0xFF800000> : vector<16xf32>
    %72 = vector.multi_reduction <maximumf>, %71, %cst_34 [1] : vector<16x16xf32> to vector<16xf32>
    %73 = vector.shape_cast %72 : vector<16xf32> to vector<16x1xf32>
    %74 = vector.broadcast %73 : vector<16x1xf32> to vector<16x16xf32>
    %75 = arith.subf %71, %74 : vector<16x16xf32>
    %76 = math.exp %75 : vector<16x16xf32>
    %cst_35 = arith.constant dense<0.000000e+00> : vector<16xf32>
    %77 = vector.multi_reduction <add>, %76, %cst_35 [1] : vector<16x16xf32> to vector<16xf32>
    %78 = vector.shape_cast %77 : vector<16xf32> to vector<16x1xf32>
    %79 = vector.broadcast %78 : vector<16x1xf32> to vector<16x16xf32>
    %80 = arith.divf %76, %79 : vector<16x16xf32>
    %cst_36 = arith.constant dense<0.000000e+00> : vector<16x8xf32>
    %81 = tpu.matmul %80, %64, %cst_36 {dimension_numbers = #tpu.dot_dimension_numbers<[1], [0], [0], [1], [0, 0, 1, 1], [], []>} : vector<16x16xf32>, vector<16x8xf32>, vector<16x8xf32> -> vector<16x8xf32>
    %82 = vector.extract_strided_slice %21 {offsets = [0, 24], sizes = [16, 8], strides = [1, 1]} : vector<16x96xf32> to vector<16x8xf32>
    %83 = vector.extract_strided_slice %21 {offsets = [0, 56], sizes = [16, 8], strides = [1, 1]} : vector<16x96xf32> to vector<16x8xf32>
    %84 = vector.extract_strided_slice %21 {offsets = [0, 88], sizes = [16, 8], strides = [1, 1]} : vector<16x96xf32> to vector<16x8xf32>
    "tpu.trace_start"() <{level = 10 : i32, message = "sd,td->st"}> : () -> ()
    %cst_37 = arith.constant dense<0.000000e+00> : vector<16x16xf32>
    %85 = tpu.matmul %82, %83, %cst_37 {dimension_numbers = #tpu.dot_dimension_numbers<[1], [1], [0], [0], [0, 0, 1, 0], [], []>} : vector<16x8xf32>, vector<16x8xf32>, vector<16x16xf32> -> vector<16x16xf32>
    "tpu.trace_stop"() : () -> ()
    %cst_38 = arith.constant 5.000000e-01 : f32
    %86 = vector.broadcast %cst_38 : f32 to vector<16x16xf32>
    %87 = arith.mulf %85, %86 : vector<16x16xf32>
    %cst_39 = arith.constant 9.99999971E-10 : f32
    %88 = vector.broadcast %cst_39 : f32 to vector<16x16xf32>
    %89 = arith.select %12, %88, %87 : vector<16x16xi1>, vector<16x16xf32>
    %cst_40 = arith.constant -1.000000e+30 : f32
    %90 = vector.broadcast %cst_40 : f32 to vector<16x16xf32>
    %91 = arith.select %14, %90, %89 : vector<16x16xi1>, vector<16x16xf32>
    %cst_41 = arith.constant dense<0xFF800000> : vector<16xf32>
    %92 = vector.multi_reduction <maximumf>, %91, %cst_41 [1] : vector<16x16xf32> to vector<16xf32>
    %93 = vector.shape_cast %92 : vector<16xf32> to vector<16x1xf32>
    %94 = vector.broadcast %93 : vector<16x1xf32> to vector<16x16xf32>
    %95 = arith.subf %91, %94 : vector<16x16xf32>
    %96 = math.exp %95 : vector<16x16xf32>
    %cst_42 = arith.constant dense<0.000000e+00> : vector<16xf32>
    %97 = vector.multi_reduction <add>, %96, %cst_42 [1] : vector<16x16xf32> to vector<16xf32>
    %98 = vector.shape_cast %97 : vector<16xf32> to vector<16x1xf32>
    %99 = vector.broadcast %98 : vector<16x1xf32> to vector<16x16xf32>
    %100 = arith.divf %96, %99 : vector<16x16xf32>
    %cst_43 = arith.constant dense<0.000000e+00> : vector<16x8xf32>
    %101 = tpu.matmul %100, %84, %cst_43 {dimension_numbers = #tpu.dot_dimension_numbers<[1], [0], [0], [1], [0, 0, 1, 1], [], []>} : vector<16x16xf32>, vector<16x8xf32>, vector<16x8xf32> -> vector<16x8xf32>
    %102 = tpu.concatenate %41, %61, %81, %101 in 1 : vector<16x8xf32>, vector<16x8xf32>, vector<16x8xf32>, vector<16x8xf32> -> vector<16x32xf32>
    %103 = arith.addf %102, %9 : vector<16x32xf32>
    %cst_44 = arith.constant dense<0.000000e+00> : vector<16xf32>
    %104 = vector.multi_reduction <add>, %103, %cst_44 [1] : vector<16x32xf32> to vector<16xf32>
    %105 = vector.shape_cast %104 : vector<16xf32> to vector<16x1xf32>
    %cst_45 = arith.constant 3.200000e+01 : f32
    %106 = vector.broadcast %cst_45 : f32 to vector<16x1xf32>
    %107 = arith.divf %105, %106 : vector<16x1xf32>
    %108 = vector.broadcast %107 : vector<16x1xf32> to vector<16x32xf32>
    %109 = arith.subf %103, %108 : vector<16x32xf32>
    %110 = vector.broadcast %107 : vector<16x1xf32> to vector<16x32xf32>
    %111 = arith.subf %103, %110 : vector<16x32xf32>
    %112 = arith.mulf %109, %111 : vector<16x32xf32>
    %cst_46 = arith.constant dense<0.000000e+00> : vector<16xf32>
    %113 = vector.multi_reduction <add>, %112, %cst_46 [1] : vector<16x32xf32> to vector<16xf32>
    %114 = vector.shape_cast %113 : vector<16xf32> to vector<16x1xf32>
    %cst_47 = arith.constant 3.200000e+01 : f32
    %115 = vector.broadcast %cst_47 : f32 to vector<16x1xf32>
    %116 = arith.divf %114, %115 : vector<16x1xf32>
    %117 = vector.broadcast %107 : vector<16x1xf32> to vector<16x32xf32>
    %118 = arith.subf %103, %117 : vector<16x32xf32>
    %cst_48 = arith.constant 9.99999974E-6 : f32
    %119 = vector.broadcast %cst_48 : f32 to vector<16x1xf32>
    %120 = arith.addf %116, %119 : vector<16x1xf32>
    %121 = math.rsqrt %120 : vector<16x1xf32>
    %122 = vector.broadcast %121 : vector<16x1xf32> to vector<16x32xf32>
    %123 = arith.mulf %118, %122 : vector<16x32xf32>
    %124 = vector.broadcast %17 : vector<1x32xf32> to vector<16x32xf32>
    %125 = arith.mulf %123, %124 : vector<16x32xf32>
    %126 = vector.broadcast %18 : vector<1x32xf32> to vector<16x32xf32>
    %127 = arith.addf %125, %126 : vector<16x32xf32>
    %c0_49 = arith.constant 0 : index
    %c0_50 = arith.constant 0 : index
    %128 = vector.load %arg8[%c0_49, %c0_50] : memref<32x96xf32, #tpu.memory_space<vmem>>, vector<32x96xf32>
    %c0_51 = arith.constant 0 : index
    %c0_52 = arith.constant 0 : index
    %129 = vector.load %arg9[%c0_51, %c0_52] : memref<1x96xf32, #tpu.memory_space<vmem>>, vector<1x96xf32>
    %c0_53 = arith.constant 0 : index
    %c0_54 = arith.constant 0 : index
    %130 = vector.load %arg10[%c0_53, %c0_54] : memref<1x32xf32, #tpu.memory_space<vmem>>, vector<1x32xf32>
    %c0_55 = arith.constant 0 : index
    %c0_56 = arith.constant 0 : index
    %131 = vector.load %arg11[%c0_55, %c0_56] : memref<1x32xf32, #tpu.memory_space<vmem>>, vector<1x32xf32>
    %cst_57 = arith.constant dense<0.000000e+00> : vector<16x96xf32>
    %132 = tpu.matmul %127, %128, %cst_57 {dimension_numbers = #tpu.dot_dimension_numbers<[1], [0], [0], [1], [0, 0, 1, 1], [], []>} : vector<16x32xf32>, vector<32x96xf32>, vector<16x96xf32> -> vector<16x96xf32>
    %133 = vector.broadcast %129 : vector<1x96xf32> to vector<16x96xf32>
    %134 = arith.addf %132, %133 : vector<16x96xf32>
    %135 = vector.extract_strided_slice %134 {offsets = [0, 0], sizes = [16, 8], strides = [1, 1]} : vector<16x96xf32> to vector<16x8xf32>
    %136 = vector.extract_strided_slice %134 {offsets = [0, 32], sizes = [16, 8], strides = [1, 1]} : vector<16x96xf32> to vector<16x8xf32>
    %137 = vector.extract_strided_slice %134 {offsets = [0, 64], sizes = [16, 8], strides = [1, 1]} : vector<16x96xf32> to vector<16x8xf32>
    "tpu.trace_start"() <{level = 10 : i32, message = "sd,td->st"}> : () -> ()
    %cst_58 = arith.constant dense<0.000000e+00> : vector<16x16xf32>
    %138 = tpu.matmul %135, %136, %cst_58 {dimension_numbers = #tpu.dot_dimension_numbers<[1], [1], [0], [0], [0, 0, 1, 0], [], []>} : vector<16x8xf32>, vector<16x8xf32>, vector<16x16xf32> -> vector<16x16xf32>
    "tpu.trace_stop"() : () -> ()
    %cst_59 = arith.constant 5.000000e-01 : f32
    %139 = vector.broadcast %cst_59 : f32 to vector<16x16xf32>
    %140 = arith.mulf %138, %139 : vector<16x16xf32>
    %cst_60 = arith.constant 9.99999971E-10 : f32
    %141 = vector.broadcast %cst_60 : f32 to vector<16x16xf32>
    %142 = arith.select %12, %141, %140 : vector<16x16xi1>, vector<16x16xf32>
    %cst_61 = arith.constant -1.000000e+30 : f32
    %143 = vector.broadcast %cst_61 : f32 to vector<16x16xf32>
    %144 = arith.select %14, %143, %142 : vector<16x16xi1>, vector<16x16xf32>
    %cst_62 = arith.constant dense<0xFF800000> : vector<16xf32>
    %145 = vector.multi_reduction <maximumf>, %144, %cst_62 [1] : vector<16x16xf32> to vector<16xf32>
    %146 = vector.shape_cast %145 : vector<16xf32> to vector<16x1xf32>
    %147 = vector.broadcast %146 : vector<16x1xf32> to vector<16x16xf32>
    %148 = arith.subf %144, %147 : vector<16x16xf32>
    %149 = math.exp %148 : vector<16x16xf32>
    %cst_63 = arith.constant dense<0.000000e+00> : vector<16xf32>
    %150 = vector.multi_reduction <add>, %149, %cst_63 [1] : vector<16x16xf32> to vector<16xf32>
    %151 = vector.shape_cast %150 : vector<16xf32> to vector<16x1xf32>
    %152 = vector.broadcast %151 : vector<16x1xf32> to vector<16x16xf32>
    %153 = arith.divf %149, %152 : vector<16x16xf32>
    %cst_64 = arith.constant dense<0.000000e+00> : vector<16x8xf32>
    %154 = tpu.matmul %153, %137, %cst_64 {dimension_numbers = #tpu.dot_dimension_numbers<[1], [0], [0], [1], [0, 0, 1, 1], [], []>} : vector<16x16xf32>, vector<16x8xf32>, vector<16x8xf32> -> vector<16x8xf32>
    %155 = vector.extract_strided_slice %134 {offsets = [0, 8], sizes = [16, 8], strides = [1, 1]} : vector<16x96xf32> to vector<16x8xf32>
    %156 = vector.extract_strided_slice %134 {offsets = [0, 40], sizes = [16, 8], strides = [1, 1]} : vector<16x96xf32> to vector<16x8xf32>
    %157 = vector.extract_strided_slice %134 {offsets = [0, 72], sizes = [16, 8], strides = [1, 1]} : vector<16x96xf32> to vector<16x8xf32>
    "tpu.trace_start"() <{level = 10 : i32, message = "sd,td->st"}> : () -> ()
    %cst_65 = arith.constant dense<0.000000e+00> : vector<16x16xf32>
    %158 = tpu.matmul %155, %156, %cst_65 {dimension_numbers = #tpu.dot_dimension_numbers<[1], [1], [0], [0], [0, 0, 1, 0], [], []>} : vector<16x8xf32>, vector<16x8xf32>, vector<16x16xf32> -> vector<16x16xf32>
    "tpu.trace_stop"() : () -> ()
    %cst_66 = arith.constant 5.000000e-01 : f32
    %159 = vector.broadcast %cst_66 : f32 to vector<16x16xf32>
    %160 = arith.mulf %158, %159 : vector<16x16xf32>
    %cst_67 = arith.constant 9.99999971E-10 : f32
    %161 = vector.broadcast %cst_67 : f32 to vector<16x16xf32>
    %162 = arith.select %12, %161, %160 : vector<16x16xi1>, vector<16x16xf32>
    %cst_68 = arith.constant -1.000000e+30 : f32
    %163 = vector.broadcast %cst_68 : f32 to vector<16x16xf32>
    %164 = arith.select %14, %163, %162 : vector<16x16xi1>, vector<16x16xf32>
    %cst_69 = arith.constant dense<0xFF800000> : vector<16xf32>
    %165 = vector.multi_reduction <maximumf>, %164, %cst_69 [1] : vector<16x16xf32> to vector<16xf32>
    %166 = vector.shape_cast %165 : vector<16xf32> to vector<16x1xf32>
    %167 = vector.broadcast %166 : vector<16x1xf32> to vector<16x16xf32>
    %168 = arith.subf %164, %167 : vector<16x16xf32>
    %169 = math.exp %168 : vector<16x16xf32>
    %cst_70 = arith.constant dense<0.000000e+00> : vector<16xf32>
    %170 = vector.multi_reduction <add>, %169, %cst_70 [1] : vector<16x16xf32> to vector<16xf32>
    %171 = vector.shape_cast %170 : vector<16xf32> to vector<16x1xf32>
    %172 = vector.broadcast %171 : vector<16x1xf32> to vector<16x16xf32>
    %173 = arith.divf %169, %172 : vector<16x16xf32>
    %cst_71 = arith.constant dense<0.000000e+00> : vector<16x8xf32>
    %174 = tpu.matmul %173, %157, %cst_71 {dimension_numbers = #tpu.dot_dimension_numbers<[1], [0], [0], [1], [0, 0, 1, 1], [], []>} : vector<16x16xf32>, vector<16x8xf32>, vector<16x8xf32> -> vector<16x8xf32>
    %175 = vector.extract_strided_slice %134 {offsets = [0, 16], sizes = [16, 8], strides = [1, 1]} : vector<16x96xf32> to vector<16x8xf32>
    %176 = vector.extract_strided_slice %134 {offsets = [0, 48], sizes = [16, 8], strides = [1, 1]} : vector<16x96xf32> to vector<16x8xf32>
    %177 = vector.extract_strided_slice %134 {offsets = [0, 80], sizes = [16, 8], strides = [1, 1]} : vector<16x96xf32> to vector<16x8xf32>
    "tpu.trace_start"() <{level = 10 : i32, message = "sd,td->st"}> : () -> ()
    %cst_72 = arith.constant dense<0.000000e+00> : vector<16x16xf32>
    %178 = tpu.matmul %175, %176, %cst_72 {dimension_numbers = #tpu.dot_dimension_numbers<[1], [1], [0], [0], [0, 0, 1, 0], [], []>} : vector<16x8xf32>, vector<16x8xf32>, vector<16x16xf32> -> vector<16x16xf32>
    "tpu.trace_stop"() : () -> ()
    %cst_73 = arith.constant 5.000000e-01 : f32
    %179 = vector.broadcast %cst_73 : f32 to vector<16x16xf32>
    %180 = arith.mulf %178, %179 : vector<16x16xf32>
    %cst_74 = arith.constant 9.99999971E-10 : f32
    %181 = vector.broadcast %cst_74 : f32 to vector<16x16xf32>
    %182 = arith.select %12, %181, %180 : vector<16x16xi1>, vector<16x16xf32>
    %cst_75 = arith.constant -1.000000e+30 : f32
    %183 = vector.broadcast %cst_75 : f32 to vector<16x16xf32>
    %184 = arith.select %14, %183, %182 : vector<16x16xi1>, vector<16x16xf32>
    %cst_76 = arith.constant dense<0xFF800000> : vector<16xf32>
    %185 = vector.multi_reduction <maximumf>, %184, %cst_76 [1] : vector<16x16xf32> to vector<16xf32>
    %186 = vector.shape_cast %185 : vector<16xf32> to vector<16x1xf32>
    %187 = vector.broadcast %186 : vector<16x1xf32> to vector<16x16xf32>
    %188 = arith.subf %184, %187 : vector<16x16xf32>
    %189 = math.exp %188 : vector<16x16xf32>
    %cst_77 = arith.constant dense<0.000000e+00> : vector<16xf32>
    %190 = vector.multi_reduction <add>, %189, %cst_77 [1] : vector<16x16xf32> to vector<16xf32>
    %191 = vector.shape_cast %190 : vector<16xf32> to vector<16x1xf32>
    %192 = vector.broadcast %191 : vector<16x1xf32> to vector<16x16xf32>
    %193 = arith.divf %189, %192 : vector<16x16xf32>
    %cst_78 = arith.constant dense<0.000000e+00> : vector<16x8xf32>
    %194 = tpu.matmul %193, %177, %cst_78 {dimension_numbers = #tpu.dot_dimension_numbers<[1], [0], [0], [1], [0, 0, 1, 1], [], []>} : vector<16x16xf32>, vector<16x8xf32>, vector<16x8xf32> -> vector<16x8xf32>
    %195 = vector.extract_strided_slice %134 {offsets = [0, 24], sizes = [16, 8], strides = [1, 1]} : vector<16x96xf32> to vector<16x8xf32>
    %196 = vector.extract_strided_slice %134 {offsets = [0, 56], sizes = [16, 8], strides = [1, 1]} : vector<16x96xf32> to vector<16x8xf32>
    %197 = vector.extract_strided_slice %134 {offsets = [0, 88], sizes = [16, 8], strides = [1, 1]} : vector<16x96xf32> to vector<16x8xf32>
    "tpu.trace_start"() <{level = 10 : i32, message = "sd,td->st"}> : () -> ()
    %cst_79 = arith.constant dense<0.000000e+00> : vector<16x16xf32>
    %198 = tpu.matmul %195, %196, %cst_79 {dimension_numbers = #tpu.dot_dimension_numbers<[1], [1], [0], [0], [0, 0, 1, 0], [], []>} : vector<16x8xf32>, vector<16x8xf32>, vector<16x16xf32> -> vector<16x16xf32>
    "tpu.trace_stop"() : () -> ()
    %cst_80 = arith.constant 5.000000e-01 : f32
    %199 = vector.broadcast %cst_80 : f32 to vector<16x16xf32>
    %200 = arith.mulf %198, %199 : vector<16x16xf32>
    %cst_81 = arith.constant 9.99999971E-10 : f32
    %201 = vector.broadcast %cst_81 : f32 to vector<16x16xf32>
    %202 = arith.select %12, %201, %200 : vector<16x16xi1>, vector<16x16xf32>
    %cst_82 = arith.constant -1.000000e+30 : f32
    %203 = vector.broadcast %cst_82 : f32 to vector<16x16xf32>
    %204 = arith.select %14, %203, %202 : vector<16x16xi1>, vector<16x16xf32>
    %cst_83 = arith.constant dense<0xFF800000> : vector<16xf32>
    %205 = vector.multi_reduction <maximumf>, %204, %cst_83 [1] : vector<16x16xf32> to vector<16xf32>
    %206 = vector.shape_cast %205 : vector<16xf32> to vector<16x1xf32>
    %207 = vector.broadcast %206 : vector<16x1xf32> to vector<16x16xf32>
    %208 = arith.subf %204, %207 : vector<16x16xf32>
    %209 = math.exp %208 : vector<16x16xf32>
    %cst_84 = arith.constant dense<0.000000e+00> : vector<16xf32>
    %210 = vector.multi_reduction <add>, %209, %cst_84 [1] : vector<16x16xf32> to vector<16xf32>
    %211 = vector.shape_cast %210 : vector<16xf32> to vector<16x1xf32>
    %212 = vector.broadcast %211 : vector<16x1xf32> to vector<16x16xf32>
    %213 = arith.divf %209, %212 : vector<16x16xf32>
    %cst_85 = arith.constant dense<0.000000e+00> : vector<16x8xf32>
    %214 = tpu.matmul %213, %197, %cst_85 {dimension_numbers = #tpu.dot_dimension_numbers<[1], [0], [0], [1], [0, 0, 1, 1], [], []>} : vector<16x16xf32>, vector<16x8xf32>, vector<16x8xf32> -> vector<16x8xf32>
    %215 = tpu.concatenate %154, %174, %194, %214 in 1 : vector<16x8xf32>, vector<16x8xf32>, vector<16x8xf32>, vector<16x8xf32> -> vector<16x32xf32>
    %216 = arith.addf %215, %127 : vector<16x32xf32>
    %cst_86 = arith.constant dense<0.000000e+00> : vector<16xf32>
    %217 = vector.multi_reduction <add>, %216, %cst_86 [1] : vector<16x32xf32> to vector<16xf32>
    %218 = vector.shape_cast %217 : vector<16xf32> to vector<16x1xf32>
    %cst_87 = arith.constant 3.200000e+01 : f32
    %219 = vector.broadcast %cst_87 : f32 to vector<16x1xf32>
    %220 = arith.divf %218, %219 : vector<16x1xf32>
    %221 = vector.broadcast %220 : vector<16x1xf32> to vector<16x32xf32>
    %222 = arith.subf %216, %221 : vector<16x32xf32>
    %223 = vector.broadcast %220 : vector<16x1xf32> to vector<16x32xf32>
    %224 = arith.subf %216, %223 : vector<16x32xf32>
    %225 = arith.mulf %222, %224 : vector<16x32xf32>
    %cst_88 = arith.constant dense<0.000000e+00> : vector<16xf32>
    %226 = vector.multi_reduction <add>, %225, %cst_88 [1] : vector<16x32xf32> to vector<16xf32>
    %227 = vector.shape_cast %226 : vector<16xf32> to vector<16x1xf32>
    %cst_89 = arith.constant 3.200000e+01 : f32
    %228 = vector.broadcast %cst_89 : f32 to vector<16x1xf32>
    %229 = arith.divf %227, %228 : vector<16x1xf32>
    %230 = vector.broadcast %220 : vector<16x1xf32> to vector<16x32xf32>
    %231 = arith.subf %216, %230 : vector<16x32xf32>
    %cst_90 = arith.constant 9.99999974E-6 : f32
    %232 = vector.broadcast %cst_90 : f32 to vector<16x1xf32>
    %233 = arith.addf %229, %232 : vector<16x1xf32>
    %234 = math.rsqrt %233 : vector<16x1xf32>
    %235 = vector.broadcast %234 : vector<16x1xf32> to vector<16x32xf32>
    %236 = arith.mulf %231, %235 : vector<16x32xf32>
    %237 = vector.broadcast %130 : vector<1x32xf32> to vector<16x32xf32>
    %238 = arith.mulf %236, %237 : vector<16x32xf32>
    %239 = vector.broadcast %131 : vector<1x32xf32> to vector<16x32xf32>
    %240 = arith.addf %238, %239 : vector<16x32xf32>
    %c0_91 = arith.constant 0 : index
    %c0_92 = arith.constant 0 : index
    %241 = vector.load %arg12[%c0_91, %c0_92] : memref<32x64xf32, #tpu.memory_space<vmem>>, vector<32x64xf32>
    %c0_93 = arith.constant 0 : index
    %c0_94 = arith.constant 0 : index
    %242 = vector.load %arg13[%c0_93, %c0_94] : memref<1x64xf32, #tpu.memory_space<vmem>>, vector<1x64xf32>
    %c0_95 = arith.constant 0 : index
    %c0_96 = arith.constant 0 : index
    %243 = vector.load %arg14[%c0_95, %c0_96] : memref<64x32xf32, #tpu.memory_space<vmem>>, vector<64x32xf32>
    %c0_97 = arith.constant 0 : index
    %c0_98 = arith.constant 0 : index
    %244 = vector.load %arg15[%c0_97, %c0_98] : memref<1x32xf32, #tpu.memory_space<vmem>>, vector<1x32xf32>
    %c0_99 = arith.constant 0 : index
    %c0_100 = arith.constant 0 : index
    %245 = vector.load %arg16[%c0_99, %c0_100] : memref<1x32xf32, #tpu.memory_space<vmem>>, vector<1x32xf32>
    %c0_101 = arith.constant 0 : index
    %c0_102 = arith.constant 0 : index
    %246 = vector.load %arg17[%c0_101, %c0_102] : memref<1x32xf32, #tpu.memory_space<vmem>>, vector<1x32xf32>
    %cst_103 = arith.constant dense<0.000000e+00> : vector<16x64xf32>
    %247 = tpu.matmul %240, %241, %cst_103 {dimension_numbers = #tpu.dot_dimension_numbers<[1], [0], [0], [1], [0, 0, 1, 1], [], []>} : vector<16x32xf32>, vector<32x64xf32>, vector<16x64xf32> -> vector<16x64xf32>
    %248 = vector.broadcast %242 : vector<1x64xf32> to vector<16x64xf32>
    %249 = arith.addf %247, %248 : vector<16x64xf32>
    %cst_104 = arith.constant 0.000000e+00 : f32
    %250 = vector.broadcast %cst_104 : f32 to vector<16x64xf32>
    %251 = arith.maximumf %249, %250 : vector<16x64xf32>
    %cst_105 = arith.constant dense<0.000000e+00> : vector<16x32xf32>
    %252 = tpu.matmul %251, %243, %cst_105 {dimension_numbers = #tpu.dot_dimension_numbers<[1], [0], [0], [1], [0, 0, 1, 1], [], []>} : vector<16x64xf32>, vector<64x32xf32>, vector<16x32xf32> -> vector<16x32xf32>
    %253 = vector.broadcast %244 : vector<1x32xf32> to vector<16x32xf32>
    %254 = arith.addf %252, %253 : vector<16x32xf32>
    %255 = arith.addf %254, %240 : vector<16x32xf32>
    %cst_106 = arith.constant dense<0.000000e+00> : vector<16xf32>
    %256 = vector.multi_reduction <add>, %255, %cst_106 [1] : vector<16x32xf32> to vector<16xf32>
    %257 = vector.shape_cast %256 : vector<16xf32> to vector<16x1xf32>
    %cst_107 = arith.constant 3.200000e+01 : f32
    %258 = vector.broadcast %cst_107 : f32 to vector<16x1xf32>
    %259 = arith.divf %257, %258 : vector<16x1xf32>
    %260 = vector.broadcast %259 : vector<16x1xf32> to vector<16x32xf32>
    %261 = arith.subf %255, %260 : vector<16x32xf32>
    %262 = vector.broadcast %259 : vector<16x1xf32> to vector<16x32xf32>
    %263 = arith.subf %255, %262 : vector<16x32xf32>
    %264 = arith.mulf %261, %263 : vector<16x32xf32>
    %cst_108 = arith.constant dense<0.000000e+00> : vector<16xf32>
    %265 = vector.multi_reduction <add>, %264, %cst_108 [1] : vector<16x32xf32> to vector<16xf32>
    %266 = vector.shape_cast %265 : vector<16xf32> to vector<16x1xf32>
    %cst_109 = arith.constant 3.200000e+01 : f32
    %267 = vector.broadcast %cst_109 : f32 to vector<16x1xf32>
    %268 = arith.divf %266, %267 : vector<16x1xf32>
    %269 = vector.broadcast %259 : vector<16x1xf32> to vector<16x32xf32>
    %270 = arith.subf %255, %269 : vector<16x32xf32>
    %cst_110 = arith.constant 9.99999974E-6 : f32
    %271 = vector.broadcast %cst_110 : f32 to vector<16x1xf32>
    %272 = arith.addf %268, %271 : vector<16x1xf32>
    %273 = math.rsqrt %272 : vector<16x1xf32>
    %274 = vector.broadcast %273 : vector<16x1xf32> to vector<16x32xf32>
    %275 = arith.mulf %270, %274 : vector<16x32xf32>
    %276 = vector.broadcast %245 : vector<1x32xf32> to vector<16x32xf32>
    %277 = arith.mulf %275, %276 : vector<16x32xf32>
    %278 = vector.broadcast %246 : vector<1x32xf32> to vector<16x32xf32>
    %279 = arith.addf %277, %278 : vector<16x32xf32>
    %c0_111 = arith.constant 0 : index
    %c0_112 = arith.constant 0 : index
    %280 = vector.load %arg18[%c0_111, %c0_112] : memref<32x32xf32, #tpu.memory_space<vmem>>, vector<32x32xf32>
    %cst_113 = arith.constant dense<0.000000e+00> : vector<16x32xf32>
    %281 = tpu.matmul %279, %280, %cst_113 {dimension_numbers = #tpu.dot_dimension_numbers<[1], [0], [0], [1], [0, 0, 1, 1], [], []>} : vector<16x32xf32>, vector<32x32xf32>, vector<16x32xf32> -> vector<16x32xf32>
    %c0_114 = arith.constant 0 : index
    %c0_115 = arith.constant 0 : index
    %282 = vector.load %arg19[%c0_114, %c0_115] : memref<1x32xf32, #tpu.memory_space<vmem>>, vector<1x32xf32>
    %283 = vector.broadcast %282 : vector<1x32xf32> to vector<16x32xf32>
    %284 = arith.addf %281, %283 : vector<16x32xf32>
    %cst_116 = arith.constant dense<0xFF800000> : vector<16xf32>
    %285 = vector.multi_reduction <maximumf>, %284, %cst_116 [1] : vector<16x32xf32> to vector<16xf32>
    %286 = vector.shape_cast %285 : vector<16xf32> to vector<16x1xf32>
    %287 = tpu.iota {dimensions = array<i32: 1>} : vector<16x32xi32>
    %288 = vector.broadcast %286 : vector<16x1xf32> to vector<16x32xf32>
    %289 = arith.cmpf oge, %284, %288 : vector<16x32xf32>
    %c32_i32 = arith.constant 32 : i32
    %290 = vector.broadcast %c32_i32 : i32 to vector<16x32xi32>
    %291 = arith.select %289, %287, %290 : vector<16x32xi1>, vector<16x32xi32>
    %cst_117 = arith.constant dense<2147483647> : vector<16xi32>
    %292 = vector.multi_reduction <minsi>, %291, %cst_117 [1] : vector<16x32xi32> to vector<16xi32>
    %293 = vector.shape_cast %292 : vector<16xi32> to vector<16x1xi32>
    %c0_118 = arith.constant 0 : index
    %c0_119 = arith.constant 0 : index
    %294 = vector.load %arg20[%c0_118, %c0_119] : memref<16x1xi32, #tpu.memory_space<vmem>>, vector<16x1xi32>
    tpu.vector_store %arg20[%c0_118, %c0_119], %293 {strides = array<i32>} : memref<16x1xi32, #tpu.memory_space<vmem>>, vector<16x1xi32>,
    return
  }
}

</mosaic_0001>

<llo_original>
// kernel: gpt_forward.1
$region0: #{gpt_forward.1}
  #allocation0 [shape = 'u32[]', space=smem, size = 0x4, offset = 0x4, fixed_abs, tag = 'smem constant byte address 0x4 - core index']
  #allocation1 [shape = 'u32[144,128]{1,0:T(1,128)}', space=vmem, size = 0x12000, scoped, tag = 'internal scratch']
  %s0 = inlined_call_operand.vmem [shape: s32[16,1], index: 0, kind: input, shape index: {}]
  %s1 = inlined_call_operand.vmem [shape: s32[16,16], index: 1, kind: input, shape index: {}]
  %s2 = inlined_call_operand.vmem [shape: f32[32,32], index: 2, kind: input, shape index: {}]
  %s3 = inlined_call_operand.vmem [shape: f32[16,32], index: 3, kind: input, shape index: {}]
  %s4 = inlined_call_operand.vmem [shape: f32[32,96], index: 4, kind: input, shape index: {}]
  %s5 = inlined_call_operand.vmem [shape: f32[1,96], index: 5, kind: input, shape index: {}]
  %s6 = inlined_call_operand.vmem [shape: f32[1,32], index: 6, kind: input, shape index: {}]
  %s7 = inlined_call_operand.vmem [shape: f32[1,32], index: 7, kind: input, shape index: {}]
  %s8 = inlined_call_operand.vmem [shape: f32[32,96], index: 8, kind: input, shape index: {}]
  %s9 = inlined_call_operand.vmem [shape: f32[1,96], index: 9, kind: input, shape index: {}]
  %s10 = inlined_call_operand.vmem [shape: f32[1,32], index: 10, kind: input, shape index: {}]
  %s11 = inlined_call_operand.vmem [shape: f32[1,32], index: 11, kind: input, shape index: {}]
  %s12 = inlined_call_operand.vmem [shape: f32[32,64], index: 12, kind: input, shape index: {}]
  %s13 = inlined_call_operand.vmem [shape: f32[1,64], index: 13, kind: input, shape index: {}]
  %s14 = inlined_call_operand.vmem [shape: f32[64,32], index: 14, kind: input, shape index: {}]
  %s15 = inlined_call_operand.vmem [shape: f32[1,32], index: 15, kind: input, shape index: {}]
  %s16 = inlined_call_operand.vmem [shape: f32[1,32], index: 16, kind: input, shape index: {}]
  %s17 = inlined_call_operand.vmem [shape: f32[1,32], index: 17, kind: input, shape index: {}]
  %s18 = inlined_call_operand.vmem [shape: f32[32,32], index: 18, kind: input, shape index: {}]
  %s19 = inlined_call_operand.hbm [shape: f32[1,32], index: 19, kind: input, shape index: {}]
  %s20 = inlined_call_operand.vmem [shape: s32[16,1], index: 20, kind: output, shape index: {}]
  %s21 = sld [smem:[#allocation0]]
  $region94: #{gpt_forward.1} parent=0
    _
  %s23 = ssub.s32 1, %s21
  %s24 = scalar_select 0, %s23, %s21
  $region1: #{gpt_forward.1} parent=0
    #allocation2 [shape = 'u8[512]{0}', space=vmem, size = 0x400, scoped, tag = 'input window, operand 19, single buffered']
    #allocation3 [shape = 's32[1]{0}', space=sflag, size = 0x4, scoped, tag = 'scoped memory for gpt_forward.1']
    %25 = vsyncpa [#allocation3], 0
    // Predicated region
    $region2: #{gpt_forward.1} parent=1 // pred_check
      _
    $region3: #{gpt_forward.1} parent=1 // pred_check_branch
      %27 = sbr.rel (0) target = $region5
    $region4: #{gpt_forward.1} parent=1 // pred_region
      _
    $region5: #{gpt_forward.1} parent=1 // pred_fallthru
      _
    // Predicated region
    $region6: #{gpt_forward.1} parent=1 // pred_check
      _
    $region7: #{gpt_forward.1} parent=1 // pred_check_branch
      %29 = sbr.rel (0) target = $region9
    $region8: #{gpt_forward.1} parent=1 // pred_region
      _
    $region9: #{gpt_forward.1} parent=1 // pred_fallthru
      _
    // Predicated region
    $region10: #{gpt_forward.1} parent=1 // pred_check
      _
    $region11: #{gpt_forward.1} parent=1 // pred_check_branch
      %31 = sbr.rel (0) target = $region13
    $region12: #{gpt_forward.1} parent=1 // pred_region
      _
    $region13: #{gpt_forward.1} parent=1 // pred_fallthru
      _
    // Predicated region
    $region14: #{gpt_forward.1} parent=1 // pred_check
      _
    $region15: #{gpt_forward.1} parent=1 // pred_check_branch
      %33 = sbr.rel (0) target = $region17
    $region16: #{gpt_forward.1} parent=1 // pred_region
      _
    $region17: #{gpt_forward.1} parent=1 // pred_fallthru
      _
    // Predicated region
    $region18: #{gpt_forward.1} parent=1 // pred_check
      _
    $region19: #{gpt_forward.1} parent=1 // pred_check_branch
      %35 = sbr.rel (0) target = $region21
    $region20: #{gpt_forward.1} parent=1 // pred_region
      _
    $region21: #{gpt_forward.1} parent=1 // pred_fallthru
      _
    // Predicated region
    $region22: #{gpt_forward.1} parent=1 // pred_check
      _
    $region23: #{gpt_forward.1} parent=1 // pred_check_branch
      %37 = sbr.rel (0) target = $region25
    $region24: #{gpt_forward.1} parent=1 // pred_region
      _
    $region25: #{gpt_forward.1} parent=1 // pred_fallthru
      _
    // Predicated region
    $region26: #{gpt_forward.1} parent=1 // pred_check
      _
    $region27: #{gpt_forward.1} parent=1 // pred_check_branch
      %39 = sbr.rel (0) target = $region29
    $region28: #{gpt_forward.1} parent=1 // pred_region
      _
    $region29: #{gpt_forward.1} parent=1 // pred_fallthru
      _
    // Predicated region
    $region30: #{gpt_forward.1} parent=1 // pred_check
      _
    $region31: #{gpt_forward.1} parent=1 // pred_check_branch
      %41 = sbr.rel (0) target = $region33
    $region32: #{gpt_forward.1} parent=1 // pred_region
      _
    $region33: #{gpt_forward.1} parent=1 // pred_fallthru
      _
    // Predicated region
    $region34: #{gpt_forward.1} parent=1 // pred_check
      _
    $region35: #{gpt_forward.1} parent=1 // pred_check_branch
      %43 = sbr.rel (0) target = $region37
    $region36: #{gpt_forward.1} parent=1 // pred_region
      _
    $region37: #{gpt_forward.1} parent=1 // pred_fallthru
      _
    // Predicated region
    $region38: #{gpt_forward.1} parent=1 // pred_check
      _
    $region39: #{gpt_forward.1} parent=1 // pred_check_branch
      %45 = sbr.rel (0) target = $region41
    $region40: #{gpt_forward.1} parent=1 // pred_region
      _
    $region41: #{gpt_forward.1} parent=1 // pred_fallthru
      _
    // Predicated region
    $region42: #{gpt_forward.1} parent=1 // pred_check
      _
    $region43: #{gpt_forward.1} parent=1 // pred_check_branch
      %47 = sbr.rel (0) target = $region45
    $region44: #{gpt_forward.1} parent=1 // pred_region
      _
    $region45: #{gpt_forward.1} parent=1 // pred_fallthru
      _
    // Predicated region
    $region46: #{gpt_forward.1} parent=1 // pred_check
      _
    $region47: #{gpt_forward.1} parent=1 // pred_check_branch
      %49 = sbr.rel (0) target = $region49
    $region48: #{gpt_forward.1} parent=1 // pred_region
      _
    $region49: #{gpt_forward.1} parent=1 // pred_fallthru
      _
    // Predicated region
    $region50: #{gpt_forward.1} parent=1 // pred_check
      _
    $region51: #{gpt_forward.1} parent=1 // pred_check_branch
      %51 = sbr.rel (0) target = $region53
    $region52: #{gpt_forward.1} parent=1 // pred_region
      _
    $region53: #{gpt_forward.1} parent=1 // pred_fallthru
      _
    // Predicated region
    $region54: #{gpt_forward.1} parent=1 // pred_check
      _
    $region55: #{gpt_forward.1} parent=1 // pred_check_branch
      %53 = sbr.rel (0) target = $region57
    $region56: #{gpt_forward.1} parent=1 // pred_region
      _
    $region57: #{gpt_forward.1} parent=1 // pred_fallthru
      _
    // Predicated region
    $region58: #{gpt_forward.1} parent=1 // pred_check
      _
    $region59: #{gpt_forward.1} parent=1 // pred_check_branch
      %55 = sbr.rel (0) target = $region61
    $region60: #{gpt_forward.1} parent=1 // pred_region
      _
    $region61: #{gpt_forward.1} parent=1 // pred_fallthru
      _
    // Predicated region
    $region62: #{gpt_forward.1} parent=1 // pred_check
      _
    $region63: #{gpt_forward.1} parent=1 // pred_check_branch
      %57 = sbr.rel (0) target = $region65
    $region64: #{gpt_forward.1} parent=1 // pred_region
      _
    $region65: #{gpt_forward.1} parent=1 // pred_fallthru
      _
    // Predicated region
    $region66: #{gpt_forward.1} parent=1 // pred_check
      _
    $region67: #{gpt_forward.1} parent=1 // pred_check_branch
      %59 = sbr.rel (0) target = $region69
    $region68: #{gpt_forward.1} parent=1 // pred_region
      _
    $region69: #{gpt_forward.1} parent=1 // pred_fallthru
      _
    // Predicated region
    $region70: #{gpt_forward.1} parent=1 // pred_check
      _
    $region71: #{gpt_forward.1} parent=1 // pred_check_branch
      %61 = sbr.rel (0) target = $region73
    $region72: #{gpt_forward.1} parent=1 // pred_region
      _
    $region73: #{gpt_forward.1} parent=1 // pred_fallthru
      _
    // Predicated region
    $region74: #{gpt_forward.1} parent=1 // pred_check
      _
    $region75: #{gpt_forward.1} parent=1 // pred_check_branch
      %63 = sbr.rel (0) target = $region77
    $region76: #{gpt_forward.1} parent=1 // pred_region
      _
    $region77: #{gpt_forward.1} parent=1 // pred_fallthru
      _
    // Predicated region
    $region78: #{gpt_forward.1} parent=1 // pred_check
      _
    $region79: #{gpt_forward.1} parent=1 // pred_check_branch
      %65 = sbr.rel (0) target = $region81
    $region80: #{gpt_forward.1} parent=1 // pred_region
      %s67 = ssub.s32 16, 16
      %68 = vsyncadd [#allocation3], %s67
      %s70 = sshll.u32 [#allocation2], 4
      %s71 = int_to_ptr.vmem [resolvable:$true] %s70
      %73 = dma.hbm_to_vmem [thread:$0]  %s19, 16, %s71, [#allocation3]
    $region81: #{gpt_forward.1} parent=1 // pred_fallthru
      _
    // Predicated region
    $region82: #{gpt_forward.1} parent=1 // pred_check
      _
    $region83: #{gpt_forward.1} parent=1 // pred_check_branch
      %75 = sbr.rel (0) target = $region85
    $region84: #{gpt_forward.1} parent=1 // pred_region
      %76 = dma.done [#allocation3], 16
    $region85: #{gpt_forward.1} parent=1 // pred_fallthru
      _
    %v77 = vld [vmem:[%s0] sm:$0xff]
    %v78 = vld [vmem:[%s0 + $0x8] sm:$0xff]
    %v79 = vlaneseq
    %v80 = vand.u32 %v79, 127
    %81 = vset.pattern.permute.xlu0 0
    %82 = vperm.xlu0 %81, %v77
    %v83 = vpop.permute.xlu0 %82
    %84 = vset.pattern.permute.xlu0 0
    %85 = vperm.xlu0 %84, %v78
    %v86 = vpop.permute.xlu0 %85
    %vm87 = vcmp.eq.s32.totalorder %v80, %v83
    %vm88 = vcmp.eq.s32.totalorder %v80, %v86
    %v89 = vsel %vm87, 1, 0
    %v90 = vsel %vm88, 1, 0
    %v91 = vcvt.s32.f32 %v89
    %v92 = vcvt.s32.f32 %v90
    %v93 = vld [vmem:[%s2] sm:$0xff]
    %v94 = vld [vmem:[%s2 + $0x8] sm:$0xff]
    %v95 = vld [vmem:[%s2 + $0x10] sm:$0xff]
    %v96 = vld [vmem:[%s2 + $0x18] sm:$0xff]
    %v97 = vld [vmem:[%s3] sm:$0xff]
    %v98 = vld [vmem:[%s3 + $0x8] sm:$0xff]
    %vm99 = vcmask 261120
    %v101 = vsel %vm99, %v91, 0
    %v104 = vsel %vm99, %v92, 0
    %106 = vmatprep.subr.mxu0 0.0
    %107 = vmatpush1.msra.mxu0 %v93
    %108 = vmatprep.subr.mxu0 0.0
    %109 = vmatpush1.msra.mxu0 %v94
    %110 = vmatprep.subr.mxu0 0.0
    %111 = vmatpush1.msra.mxu0 %v95
    %112 = vmatprep.subr.mxu0 0.0
    %113 = vmatpush1.msra.mxu0 %v96
    %114 = vmatprep.subr.mxu0 0.0
    %115 = vmatpush1.msra.mxu0 0.0
    %116 = vmatprep.subr.mxu0 0.0
    %117 = vmatpush1.msra.mxu0 0.0
    %118 = vmatprep.subr.mxu0 0.0
    %119 = vmatpush1.msra.mxu0 0.0
    %120 = vmatprep.subr.mxu0 0.0
    %121 = vmatpush1.msra.mxu0 0.0
    %122 = vmatprep.subr.mxu0 0.0
    %123 = vmatpush1.msra.mxu0 0.0
    %124 = vmatprep.subr.mxu0 0.0
    %125 = vmatpush1.msra.mxu0 0.0
    %126 = vmatprep.subr.mxu0 0.0
    %127 = vmatpush1.msra.mxu0 0.0
    %128 = vmatprep.subr.mxu0 0.0
    %129 = vmatpush1.msra.mxu0 0.0
    %130 = vmatprep.subr.mxu0 0.0
    %131 = vmatpush1.msra.mxu0 0.0
    %132 = vmatprep.subr.mxu0 0.0
    %133 = vmatpush1.msra.mxu0 0.0
    %134 = vmatprep.subr.mxu0 0.0
    %135 = vmatpush1.msra.mxu0 0.0
    %136 = vmatprep.subr.mxu0 0.0
    %137 = vmatpush1.msra.mxu0 0.0
    %138 = vmatprep.subr.mxu0 0.0
    %139 = vmatpush1.msra.mxu0 0.0
    %140 = vmatprep.subr.mxu0 0.0
    %141 = vmatpush1.msra.mxu0 0.0
    %142 = vmatprep.subr.mxu0 0.0
    %143 = vmatpush1.msra.mxu0 0.0
    %144 = vmatprep.subr.mxu0 0.0
    %145 = vmatpush1.msra.mxu0 0.0
    %146 = vmatprep.subr.mxu0 0.0
    %147 = vmatpush1.msra.mxu0 0.0
    %148 = vmatprep.subr.mxu0 0.0
    %149 = vmatpush1.msra.mxu0 0.0
    %150 = vmatprep.subr.mxu0 0.0
    %151 = vmatpush1.msra.mxu0 0.0
    %152 = vmatprep.subr.mxu0 0.0
    %153 = vmatpush1.msra.mxu0 0.0
    %154 = vmatprep.subr.mxu0 0.0
    %155 = vmatpush1.msra.mxu0 0.0
    %156 = vmatprep.subr.mxu0 0.0
    %157 = vmatpush1.msra.mxu0 0.0
    %158 = vmatprep.subr.mxu0 0.0
    %159 = vmatpush1.msra.mxu0 0.0
    %160 = vmatprep.subr.mxu0 0.0
    %161 = vmatpush1.msra.mxu0 0.0
    %162 = vmatprep.subr.mxu0 0.0
    %163 = vmatpush1.msra.mxu0 0.0
    %164 = vmatprep.subr.mxu0 0.0
    %165 = vmatpush1.msra.mxu0 0.0
    %166 = vmatprep.subr.mxu0 0.0
    %167 = vmatpush1.msra.mxu0 0.0
    %168 = vmatprep.subr.mxu0 0.0
    %169 = vmatpush1.msra.mxu0 0.0
    %170 = vmatprep.mubr.f32.mxu0 0.0
    %171 = vmatmul.mubr.f32.gmra.mrb[0].mxu0 %v101
    %v172 = vpop.f32.mrb[0].mxu0
    %v173 = vadd.f32 %v97, %v172
    %v174 = vpop.f32.mrb[0].mxu0
    %175 = vmatprep.mubr.f32.mxu0 0.0
    %176 = vmatmul.mubr.f32.gmra.mrb[0].mxu0 %v104
    %v177 = vpop.f32.mrb[0].mxu0
    %v178 = vadd.f32 %v98, %v177
    %v179 = vpop.f32.mrb[0].mxu0
    %180 = vdwg.mxu0
    %v181 = vld [vmem:[%s1] sm:$0xff]
    %v182 = vld [vmem:[%s1 + $0x8] sm:$0xff]
    %vm183 = vcmp.eq.s32.totalorder %v181, 1
    %vm184 = vcmp.eq.s32.totalorder %v182, 1
    %vm185 = vcmp.eq.s32.totalorder %v181, 2
    %vm186 = vcmp.eq.s32.totalorder %v182, 2
    %v187 = vld [vmem:[%s4] sm:$0xff]
    %v188 = vld [vmem:[%s4 + $0x8] sm:$0xff]
    %v189 = vld [vmem:[%s4 + $0x10] sm:$0xff]
    %v190 = vld [vmem:[%s4 + $0x18] sm:$0xff]
    %v191 = vld [vmem:[%s5] sm:$0x1]
    %v192 = vld [vmem:[%s6] sm:$0x1]
    %v193 = vld [vmem:[%s7] sm:$0x1]
    %v195 = vlaneseq
    %v196 = vshrl.u32 %v195, 7
    %v197 = vsub.s32 0, %v196
    %v198 = vrot.slane %v191, %v197
    %v201 = vsel %vm99, %v173, 0
    %v204 = vsel %vm99, %v178, 0
    %206 = vmatprep.subr.mxu0 0.0
    %207 = vmatpush1.msra.mxu0 %v187
    %208 = vmatprep.subr.mxu0 0.0
    %209 = vmatpush1.msra.mxu0 %v188
    %210 = vmatprep.subr.mxu0 0.0
    %211 = vmatpush1.msra.mxu0 %v189
    %212 = vmatprep.subr.mxu0 0.0
    %213 = vmatpush1.msra.mxu0 %v190
    %214 = vmatprep.subr.mxu0 0.0
    %215 = vmatpush1.msra.mxu0 0.0
    %216 = vmatprep.subr.mxu0 0.0
    %217 = vmatpush1.msra.mxu0 0.0
    %218 = vmatprep.subr.mxu0 0.0
    %219 = vmatpush1.msra.mxu0 0.0
    %220 = vmatprep.subr.mxu0 0.0
    %221 = vmatpush1.msra.mxu0 0.0
    %222 = vmatprep.subr.mxu0 0.0
    %223 = vmatpush1.msra.mxu0 0.0
    %224 = vmatprep.subr.mxu0 0.0
    %225 = vmatpush1.msra.mxu0 0.0
    %226 = vmatprep.subr.mxu0 0.0
    %227 = vmatpush1.msra.mxu0 0.0
    %228 = vmatprep.subr.mxu0 0.0
    %229 = vmatpush1.msra.mxu0 0.0
    %230 = vmatprep.subr.mxu0 0.0
    %231 = vmatpush1.msra.mxu0 0.0
    %232 = vmatprep.subr.mxu0 0.0
    %233 = vmatpush1.msra.mxu0 0.0
    %234 = vmatprep.subr.mxu0 0.0
    %235 = vmatpush1.msra.mxu0 0.0
    %236 = vmatprep.subr.mxu0 0.0
    %237 = vmatpush1.msra.mxu0 0.0
    %238 = vmatprep.subr.mxu0 0.0
    %239 = vmatpush1.msra.mxu0 0.0
    %240 = vmatprep.subr.mxu0 0.0
    %241 = vmatpush1.msra.mxu0 0.0
    %242 = vmatprep.subr.mxu0 0.0
    %243 = vmatpush1.msra.mxu0 0.0
    %244 = vmatprep.subr.mxu0 0.0
    %245 = vmatpush1.msra.mxu0 0.0
    %246 = vmatprep.subr.mxu0 0.0
    %247 = vmatpush1.msra.mxu0 0.0
    %248 = vmatprep.subr.mxu0 0.0
    %249 = vmatpush1.msra.mxu0 0.0
    %250 = vmatprep.subr.mxu0 0.0
    %251 = vmatpush1.msra.mxu0 0.0
    %252 = vmatprep.subr.mxu0 0.0
    %253 = vmatpush1.msra.mxu0 0.0
    %254 = vmatprep.subr.mxu0 0.0
    %255 = vmatpush1.msra.mxu0 0.0
    %256 = vmatprep.subr.mxu0 0.0
    %257 = vmatpush1.msra.mxu0 0.0
    %258 = vmatprep.subr.mxu0 0.0
    %259 = vmatpush1.msra.mxu0 0.0
    %260 = vmatprep.subr.mxu0 0.0
    %261 = vmatpush1.msra.mxu0 0.0
    %262 = vmatprep.subr.mxu0 0.0
    %263 = vmatpush1.msra.mxu0 0.0
    %264 = vmatprep.subr.mxu0 0.0
    %265 = vmatpush1.msra.mxu0 0.0
    %266 = vmatprep.subr.mxu0 0.0
    %267 = vmatpush1.msra.mxu0 0.0
    %268 = vmatprep.subr.mxu0 0.0
    %269 = vmatpush1.msra.mxu0 0.0
    %270 = vmatprep.mubr.f32.mxu0 0.0
    %271 = vmatmul.mubr.f32.gmra.mrb[0].mxu0 %v201
    %v272 = vpop.f32.mrb[0].mxu0
    %v273 = vadd.f32 %v198, %v272
    %v274 = vpop.f32.mrb[0].mxu0
    %275 = vmatprep.mubr.f32.mxu0 0.0
    %276 = vmatmul.mubr.f32.gmra.mrb[0].mxu0 %v204
    %v277 = vpop.f32.mrb[0].mxu0
    %v278 = vadd.f32 %v198, %v277
    %v279 = vpop.f32.mrb[0].mxu0
    %280 = vdwg.mxu0
    %283 = vrot.lane.b32.xlu0 %v273, 96
    %v284 = vpop.permute.xlu0 %283
    %285 = vrot.lane.b32.xlu0 %v278, 96
    %v286 = vpop.permute.xlu0 %285
    %vm287 = vcmask 64512
    %v288 = vsel %vm287, %v273, 0
    %v290 = vsel %vm287, %v278, 0
    %v292 = vsel %vm287, %v284, 0
    %v294 = vsel %vm287, %v286, 0
    %296 = vmatprep.subr.mxu0 0.0
    %297 = vmatpush1.xpose.msra.mxu0 %v292
    %298 = vmatprep.subr.mxu0 0.0
    %299 = vmatpush1.xpose.msra.mxu0 %v294
    %300 = vmatprep.subr.mxu0 0.0
    %301 = vmatpush1.xpose.msra.mxu0 0.0
    %302 = vmatprep.subr.mxu0 0.0
    %303 = vmatpush1.xpose.msra.mxu0 0.0
    %304 = vmatprep.subr.mxu0 0.0
    %305 = vmatpush1.xpose.msra.mxu0 0.0
    %306 = vmatprep.subr.mxu0 0.0
    %307 = vmatpush1.xpose.msra.mxu0 0.0
    %308 = vmatprep.subr.mxu0 0.0
    %309 = vmatpush1.xpose.msra.mxu0 0.0
    %310 = vmatprep.subr.mxu0 0.0
    %311 = vmatpush1.xpose.msra.mxu0 0.0
    %312 = vmatprep.subr.mxu0 0.0
    %313 = vmatpush1.xpose.msra.mxu0 0.0
    %314 = vmatprep.subr.mxu0 0.0
    %315 = vmatpush1.xpose.msra.mxu0 0.0
    %316 = vmatprep.subr.mxu0 0.0
    %317 = vmatpush1.xpose.msra.mxu0 0.0
    %318 = vmatprep.subr.mxu0 0.0
    %319 = vmatpush1.xpose.msra.mxu0 0.0
    %320 = vmatprep.subr.mxu0 0.0
    %321 = vmatpush1.xpose.msra.mxu0 0.0
    %322 = vmatprep.subr.mxu0 0.0
    %323 = vmatpush1.xpose.msra.mxu0 0.0
    %324 = vmatprep.subr.mxu0 0.0
    %325 = vmatpush1.xpose.msra.mxu0 0.0
    %326 = vmatprep.subr.mxu0 0.0
    %327 = vmatpush1.xpose.msra.mxu0 0.0
    %328 = vmatprep.subr.mxu0 0.0
    %329 = vmatpush1.xpose.msra.mxu0 0.0
    %330 = vmatprep.subr.mxu0 0.0
    %331 = vmatpush1.xpose.msra.mxu0 0.0
    %332 = vmatprep.subr.mxu0 0.0
    %333 = vmatpush1.xpose.msra.mxu0 0.0
    %334 = vmatprep.subr.mxu0 0.0
    %335 = vmatpush1.xpose.msra.mxu0 0.0
    %336 = vmatprep.subr.mxu0 0.0
    %337 = vmatpush1.xpose.msra.mxu0 0.0
    %338 = vmatprep.subr.mxu0 0.0
    %339 = vmatpush1.xpose.msra.mxu0 0.0
    %340 = vmatprep.subr.mxu0 0.0
    %341 = vmatpush1.xpose.msra.mxu0 0.0
    %342 = vmatprep.subr.mxu0 0.0
    %343 = vmatpush1.xpose.msra.mxu0 0.0
    %344 = vmatprep.subr.mxu0 0.0
    %345 = vmatpush1.xpose.msra.mxu0 0.0
    %346 = vmatprep.subr.mxu0 0.0
    %347 = vmatpush1.xpose.msra.mxu0 0.0
    %348 = vmatprep.subr.mxu0 0.0
    %349 = vmatpush1.xpose.msra.mxu0 0.0
    %350 = vmatprep.subr.mxu0 0.0
    %351 = vmatpush1.xpose.msra.mxu0 0.0
    %352 = vmatprep.subr.mxu0 0.0
    %353 = vmatpush1.xpose.msra.mxu0 0.0
    %354 = vmatprep.subr.mxu0 0.0
    %355 = vmatpush1.xpose.msra.mxu0 0.0
    %356 = vmatprep.subr.mxu0 0.0
    %357 = vmatpush1.xpose.msra.mxu0 0.0
    %358 = vmatprep.subr.mxu0 0.0
    %359 = vmatpush1.xpose.msra.mxu0 0.0
    %360 = vmatprep.mubr.f32.mxu0 0.0
    %361 = vmatmul.mubr.f32.gmra.mrb[0].mxu0 %v288
    %v362 = vpop.f32.mrb[0].mxu0
    %v363 = vadd.f32 0.0, %v362
    %v364 = vpop.f32.mrb[0].mxu0
    %365 = vmatprep.mubr.f32.mxu0 0.0
    %366 = vmatmul.mubr.f32.gmra.mrb[0].mxu0 %v290
    %v367 = vpop.f32.mrb[0].mxu0
    %v368 = vadd.f32 0.0, %v367
    %v369 = vpop.f32.mrb[0].mxu0
    %370 = vdwg.mxu0
    %v371 = vmul.f32 %v363, 0.5
    %v372 = vmul.f32 %v368, 0.5
    %v373 = vsel %vm183, 1e-09, %v371
    %v374 = vsel %vm184, 1e-09, %v372
    %v375 = vsel %vm185, -1e+30, %v373
    %v376 = vsel %vm186, -1e+30, %v374
    %vm377 = vcmask 130048
    %v378 = vsel %vm377, %v375, -inf
    %379 = vmax.xlane.f32.xlu0 %v378
    %v380 = vpop.xlane.xlu0 %379
    %v381 = vsel %vm377, %v376, -inf
    %382 = vmax.xlane.f32.xlu0 %v381
    %v383 = vpop.xlane.xlu0 %382
    %v384 = vsub.f32 %v375, %v380
    %v385 = vsub.f32 %v376, %v383
    %v386 = vmul.f32 %v384, 1.442695
    %v387 = vpow.pop %v386
    %v388 = vmul.f32 %v385, 1.442695
    %v389 = vpow.pop %v388
    %v390 = vsel %vm377, %v387, 0.0
    %391 = vadd.xlane.f32.xlu0 %v390
    %v392 = vpop.xlane.xlu0 %391
    %v393 = vsel %vm377, %v389, 0.0
    %394 = vadd.xlane.f32.xlu0 %v393
    %v395 = vpop.xlane.xlu0 %394
    %v396 = vrcp.pop %v392
    %v397 = vmul.f32 %v387, %v396
    %v398 = vrcp.pop %v395
    %v399 = vmul.f32 %v389, %v398
    %400 = vrot.lane.b32.xlu0 %v273, 64
    %v401 = vpop.permute.xlu0 %400
    %402 = vrot.lane.b32.xlu0 %v278, 64
    %v403 = vpop.permute.xlu0 %402
    %v407 = vsel %vm377, %v397, 0
    %v410 = vsel %vm377, %v399, 0
    %412 = vmatprep.subr.mxu0 0.0
    %413 = vmatpush1.msra.mxu0 %v401
    %414 = vmatprep.subr.mxu0 0.0
    %415 = vmatpush1.msra.mxu0 %v403
    %416 = vmatprep.subr.mxu0 0.0
    %417 = vmatpush1.msra.mxu0 0.0
    %418 = vmatprep.subr.mxu0 0.0
    %419 = vmatpush1.msra.mxu0 0.0
    %420 = vmatprep.subr.mxu0 0.0
    %421 = vmatpush1.msra.mxu0 0.0
    %422 = vmatprep.subr.mxu0 0.0
    %423 = vmatpush1.msra.mxu0 0.0
    %424 = vmatprep.subr.mxu0 0.0
    %425 = vmatpush1.msra.mxu0 0.0
    %426 = vmatprep.subr.mxu0 0.0
    %427 = vmatpush1.msra.mxu0 0.0
    %428 = vmatprep.subr.mxu0 0.0
    %429 = vmatpush1.msra.mxu0 0.0
    %430 = vmatprep.subr.mxu0 0.0
    %431 = vmatpush1.msra.mxu0 0.0
    %432 = vmatprep.subr.mxu0 0.0
    %433 = vmatpush1.msra.mxu0 0.0
    %434 = vmatprep.subr.mxu0 0.0
    %435 = vmatpush1.msra.mxu0 0.0
    %436 = vmatprep.subr.mxu0 0.0
    %437 = vmatpush1.msra.mxu0 0.0
    %438 = vmatprep.subr.mxu0 0.0
    %439 = vmatpush1.msra.mxu0 0.0
    %440 = vmatprep.subr.mxu0 0.0
    %441 = vmatpush1.msra.mxu0 0.0
    %442 = vmatprep.subr.mxu0 0.0
    %443 = vmatpush1.msra.mxu0 0.0
    %444 = vmatprep.subr.mxu0 0.0
    %445 = vmatpush1.msra.mxu0 0.0
    %446 = vmatprep.subr.mxu0 0.0
    %447 = vmatpush1.msra.mxu0 0.0
    %448 = vmatprep.subr.mxu0 0.0
    %449 = vmatpush1.msra.mxu0 0.0
    %450 = vmatprep.subr.mxu0 0.0
    %451 = vmatpush1.msra.mxu0 0.0
    %452 = vmatprep.subr.mxu0 0.0
    %453 = vmatpush1.msra.mxu0 0.0
    %454 = vmatprep.subr.mxu0 0.0
    %455 = vmatpush1.msra.mxu0 0.0
    %456 = vmatprep.subr.mxu0 0.0
    %457 = vmatpush1.msra.mxu0 0.0
    %458 = vmatprep.subr.mxu0 0.0
    %459 = vmatpush1.msra.mxu0 0.0
    %460 = vmatprep.subr.mxu0 0.0
    %461 = vmatpush1.msra.mxu0 0.0
    %462 = vmatprep.subr.mxu0 0.0
    %463 = vmatpush1.msra.mxu0 0.0
    %464 = vmatprep.subr.mxu0 0.0
    %465 = vmatpush1.msra.mxu0 0.0
    %466 = vmatprep.subr.mxu0 0.0
    %467 = vmatpush1.msra.mxu0 0.0
    %468 = vmatprep.subr.mxu0 0.0
    %469 = vmatpush1.msra.mxu0 0.0
    %470 = vmatprep.subr.mxu0 0.0
    %471 = vmatpush1.msra.mxu0 0.0
    %472 = vmatprep.subr.mxu0 0.0
    %473 = vmatpush1.msra.mxu0 0.0
    %474 = vmatprep.subr.mxu0 0.0
    %475 = vmatpush1.msra.mxu0 0.0
    %476 = vmatprep.mubr.f32.mxu0 0.0
    %477 = vmatmul.mubr.f32.gmra.mrb[0].mxu0 %v407
    %v478 = vpop.f32.mrb[0].mxu0
    %v479 = vadd.f32 0.0, %v478
    %v480 = vpop.f32.mrb[0].mxu0
    %481 = vmatprep.mubr.f32.mxu0 0.0
    %482 = vmatmul.mubr.f32.gmra.mrb[0].mxu0 %v410
    %v483 = vpop.f32.mrb[0].mxu0
    %v484 = vadd.f32 0.0, %v483
    %v485 = vpop.f32.mrb[0].mxu0
    %486 = vdwg.mxu0
    %487 = vrot.lane.b32.xlu0 %v273, 120
    %v488 = vpop.permute.xlu0 %487
    %489 = vrot.lane.b32.xlu0 %v278, 120
    %v490 = vpop.permute.xlu0 %489
    %491 = vrot.lane.b32.xlu0 %v273, 88
    %v492 = vpop.permute.xlu0 %491
    %493 = vrot.lane.b32.xlu0 %v278, 88
    %v494 = vpop.permute.xlu0 %493
    %v495 = vsel %vm287, %v488, 0
    %v497 = vsel %vm287, %v490, 0
    %v499 = vsel %vm287, %v492, 0
    %v501 = vsel %vm287, %v494, 0
    %503 = vmatprep.subr.mxu0 0.0
    %504 = vmatpush1.xpose.msra.mxu0 %v499
    %505 = vmatprep.subr.mxu0 0.0
    %506 = vmatpush1.xpose.msra.mxu0 %v501
    %507 = vmatprep.subr.mxu0 0.0
    %508 = vmatpush1.xpose.msra.mxu0 0.0
    %509 = vmatprep.subr.mxu0 0.0
    %510 = vmatpush1.xpose.msra.mxu0 0.0
    %511 = vmatprep.subr.mxu0 0.0
    %512 = vmatpush1.xpose.msra.mxu0 0.0
    %513 = vmatprep.subr.mxu0 0.0
    %514 = vmatpush1.xpose.msra.mxu0 0.0
    %515 = vmatprep.subr.mxu0 0.0
    %516 = vmatpush1.xpose.msra.mxu0 0.0
    %517 = vmatprep.subr.mxu0 0.0
    %518 = vmatpush1.xpose.msra.mxu0 0.0
    %519 = vmatprep.subr.mxu0 0.0
    %520 = vmatpush1.xpose.msra.mxu0 0.0
    %521 = vmatprep.subr.mxu0 0.0
    %522 = vmatpush1.xpose.msra.mxu0 0.0
    %523 = vmatprep.subr.mxu0 0.0
    %524 = vmatpush1.xpose.msra.mxu0 0.0
    %525 = vmatprep.subr.mxu0 0.0
    %526 = vmatpush1.xpose.msra.mxu0 0.0
    %527 = vmatprep.subr.mxu0 0.0
    %528 = vmatpush1.xpose.msra.mxu0 0.0
    %529 = vmatprep.subr.mxu0 0.0
    %530 = vmatpush1.xpose.msra.mxu0 0.0
    %531 = vmatprep.subr.mxu0 0.0
    %532 = vmatpush1.xpose.msra.mxu0 0.0
    %533 = vmatprep.subr.mxu0 0.0
    %534 = vmatpush1.xpose.msra.mxu0 0.0
    %535 = vmatprep.subr.mxu0 0.0
    %536 = vmatpush1.xpose.msra.mxu0 0.0
    %537 = vmatprep.subr.mxu0 0.0
    %538 = vmatpush1.xpose.msra.mxu0 0.0
    %539 = vmatprep.subr.mxu0 0.0
    %540 = vmatpush1.xpose.msra.mxu0 0.0
    %541 = vmatprep.subr.mxu0 0.0
    %542 = vmatpush1.xpose.msra.mxu0 0.0
    %543 = vmatprep.subr.mxu0 0.0
    %544 = vmatpush1.xpose.msra.mxu0 0.0
    %545 = vmatprep.subr.mxu0 0.0
    %546 = vmatpush1.xpose.msra.mxu0 0.0
    %547 = vmatprep.subr.mxu0 0.0
    %548 = vmatpush1.xpose.msra.mxu0 0.0
    %549 = vmatprep.subr.mxu0 0.0
    %550 = vmatpush1.xpose.msra.mxu0 0.0
    %551 = vmatprep.subr.mxu0 0.0
    %552 = vmatpush1.xpose.msra.mxu0 0.0
    %553 = vmatprep.subr.mxu0 0.0
    %554 = vmatpush1.xpose.msra.mxu0 0.0
    %555 = vmatprep.subr.mxu0 0.0
    %556 = vmatpush1.xpose.msra.mxu0 0.0
    %557 = vmatprep.subr.mxu0 0.0
    %558 = vmatpush1.xpose.msra.mxu0 0.0
    %559 = vmatprep.subr.mxu0 0.0
    %560 = vmatpush1.xpose.msra.mxu0 0.0
    %561 = vmatprep.subr.mxu0 0.0
    %562 = vmatpush1.xpose.msra.mxu0 0.0
    %563 = vmatprep.subr.mxu0 0.0
    %564 = vmatpush1.xpose.msra.mxu0 0.0
    %565 = vmatprep.subr.mxu0 0.0
    %566 = vmatpush1.xpose.msra.mxu0 0.0
    %567 = vmatprep.mubr.f32.mxu0 0.0
    %568 = vmatmul.mubr.f32.gmra.mrb[0].mxu0 %v495
    %v569 = vpop.f32.mrb[0].mxu0
    %v570 = vadd.f32 0.0, %v569
    %v571 = vpop.f32.mrb[0].mxu0
    %572 = vmatprep.mubr.f32.mxu0 0.0
    %573 = vmatmul.mubr.f32.gmra.mrb[0].mxu0 %v497
    %v574 = vpop.f32.mrb[0].mxu0
    %v575 = vadd.f32 0.0, %v574
    %v576 = vpop.f32.mrb[0].mxu0
    %577 = vdwg.mxu0
    %v578 = vmul.f32 %v570, 0.5
    %v579 = vmul.f32 %v575, 0.5
    %v580 = vsel %vm183, 1e-09, %v578
    %v581 = vsel %vm184, 1e-09, %v579
    %v582 = vsel %vm185, -1e+30, %v580
    %v583 = vsel %vm186, -1e+30, %v581
    %v584 = vsel %vm377, %v582, -inf
    %585 = vmax.xlane.f32.xlu0 %v584
    %v586 = vpop.xlane.xlu0 %585
    %v587 = vsel %vm377, %v583, -inf
    %588 = vmax.xlane.f32.xlu0 %v587
    %v589 = vpop.xlane.xlu0 %588
    %v590 = vsub.f32 %v582, %v586
    %v591 = vsub.f32 %v583, %v589
    %v592 = vmul.f32 %v590, 1.442695
    %v593 = vpow.pop %v592
    %v594 = vmul.f32 %v591, 1.442695
    %v595 = vpow.pop %v594
    %v596 = vsel %vm377, %v593, 0.0
    %597 = vadd.xlane.f32.xlu0 %v596
    %v598 = vpop.xlane.xlu0 %597
    %v599 = vsel %vm377, %v595, 0.0
    %600 = vadd.xlane.f32.xlu0 %v599
    %v601 = vpop.xlane.xlu0 %600
    %v602 = vrcp.pop %v598
    %v603 = vmul.f32 %v593, %v602
    %v604 = vrcp.pop %v601
    %v605 = vmul.f32 %v595, %v604
    %606 = vrot.lane.b32.xlu0 %v273, 56
    %v607 = vpop.permute.xlu0 %606
    %608 = vrot.lane.b32.xlu0 %v278, 56
    %v609 = vpop.permute.xlu0 %608
    %v613 = vsel %vm377, %v603, 0
    %v616 = vsel %vm377, %v605, 0
    %618 = vmatprep.subr.mxu0 0.0
    %619 = vmatpush1.msra.mxu0 %v607
    %620 = vmatprep.subr.mxu0 0.0
    %621 = vmatpush1.msra.mxu0 %v609
    %622 = vmatprep.subr.mxu0 0.0
    %623 = vmatpush1.msra.mxu0 0.0
    %624 = vmatprep.subr.mxu0 0.0
    %625 = vmatpush1.msra.mxu0 0.0
    %626 = vmatprep.subr.mxu0 0.0
    %627 = vmatpush1.msra.mxu0 0.0
    %628 = vmatprep.subr.mxu0 0.0
    %629 = vmatpush1.msra.mxu0 0.0
    %630 = vmatprep.subr.mxu0 0.0
    %631 = vmatpush1.msra.mxu0 0.0
    %632 = vmatprep.subr.mxu0 0.0
    %633 = vmatpush1.msra.mxu0 0.0
    %634 = vmatprep.subr.mxu0 0.0
    %635 = vmatpush1.msra.mxu0 0.0
    %636 = vmatprep.subr.mxu0 0.0
    %637 = vmatpush1.msra.mxu0 0.0
    %638 = vmatprep.subr.mxu0 0.0
    %639 = vmatpush1.msra.mxu0 0.0
    %640 = vmatprep.subr.mxu0 0.0
    %641 = vmatpush1.msra.mxu0 0.0
    %642 = vmatprep.subr.mxu0 0.0
    %643 = vmatpush1.msra.mxu0 0.0
    %644 = vmatprep.subr.mxu0 0.0
    %645 = vmatpush1.msra.mxu0 0.0
    %646 = vmatprep.subr.mxu0 0.0
    %647 = vmatpush1.msra.mxu0 0.0
    %648 = vmatprep.subr.mxu0 0.0
    %649 = vmatpush1.msra.mxu0 0.0
    %650 = vmatprep.subr.mxu0 0.0
    %651 = vmatpush1.msra.mxu0 0.0
    %652 = vmatprep.subr.mxu0 0.0
    %653 = vmatpush1.msra.mxu0 0.0
    %654 = vmatprep.subr.mxu0 0.0
    %655 = vmatpush1.msra.mxu0 0.0
    %656 = vmatprep.subr.mxu0 0.0
    %657 = vmatpush1.msra.mxu0 0.0
    %658 = vmatprep.subr.mxu0 0.0
    %659 = vmatpush1.msra.mxu0 0.0
    %660 = vmatprep.subr.mxu0 0.0
    %661 = vmatpush1.msra.mxu0 0.0
    %662 = vmatprep.subr.mxu0 0.0
    %663 = vmatpush1.msra.mxu0 0.0
    %664 = vmatprep.subr.mxu0 0.0
    %665 = vmatpush1.msra.mxu0 0.0
    %666 = vmatprep.subr.mxu0 0.0
    %667 = vmatpush1.msra.mxu0 0.0
    %668 = vmatprep.subr.mxu0 0.0
    %669 = vmatpush1.msra.mxu0 0.0
    %670 = vmatprep.subr.mxu0 0.0
    %671 = vmatpush1.msra.mxu0 0.0
    %672 = vmatprep.subr.mxu0 0.0
    %673 = vmatpush1.msra.mxu0 0.0
    %674 = vmatprep.subr.mxu0 0.0
    %675 = vmatpush1.msra.mxu0 0.0
    %676 = vmatprep.subr.mxu0 0.0
    %677 = vmatpush1.msra.mxu0 0.0
    %678 = vmatprep.subr.mxu0 0.0
    %679 = vmatpush1.msra.mxu0 0.0
    %680 = vmatprep.subr.mxu0 0.0
    %681 = vmatpush1.msra.mxu0 0.0
    %682 = vmatprep.mubr.f32.mxu0 0.0
    %683 = vmatmul.mubr.f32.gmra.mrb[0].mxu0 %v613
    %v684 = vpop.f32.mrb[0].mxu0
    %v685 = vadd.f32 0.0, %v684
    %v686 = vpop.f32.mrb[0].mxu0
    %687 = vmatprep.mubr.f32.mxu0 0.0
    %688 = vmatmul.mubr.f32.gmra.mrb[0].mxu0 %v616
    %v689 = vpop.f32.mrb[0].mxu0
    %v690 = vadd.f32 0.0, %v689
    %v691 = vpop.f32.mrb[0].mxu0
    %692 = vdwg.mxu0
    %693 = vrot.lane.b32.xlu0 %v273, 112
    %v694 = vpop.permute.xlu0 %693
    %695 = vrot.lane.b32.xlu0 %v278, 112
    %v696 = vpop.permute.xlu0 %695
    %697 = vrot.lane.b32.xlu0 %v273, 80
    %v698 = vpop.permute.xlu0 %697
    %699 = vrot.lane.b32.xlu0 %v278, 80
    %v700 = vpop.permute.xlu0 %699
    %v701 = vsel %vm287, %v694, 0
    %v703 = vsel %vm287, %v696, 0
    %v705 = vsel %vm287, %v698, 0
    %v707 = vsel %vm287, %v700, 0
    %709 = vmatprep.subr.mxu0 0.0
    %710 = vmatpush1.xpose.msra.mxu0 %v705
    %711 = vmatprep.subr.mxu0 0.0
    %712 = vmatpush1.xpose.msra.mxu0 %v707
    %713 = vmatprep.subr.mxu0 0.0
    %714 = vmatpush1.xpose.msra.mxu0 0.0
    %715 = vmatprep.subr.mxu0 0.0
    %716 = vmatpush1.xpose.msra.mxu0 0.0
    %717 = vmatprep.subr.mxu0 0.0
    %718 = vmatpush1.xpose.msra.mxu0 0.0
    %719 = vmatprep.subr.mxu0 0.0
    %720 = vmatpush1.xpose.msra.mxu0 0.0
    %721 = vmatprep.subr.mxu0 0.0
    %722 = vmatpush1.xpose.msra.mxu0 0.0
    %723 = vmatprep.subr.mxu0 0.0
    %724 = vmatpush1.xpose.msra.mxu0 0.0
    %725 = vmatprep.subr.mxu0 0.0
    %726 = vmatpush1.xpose.msra.mxu0 0.0
    %727 = vmatprep.subr.mxu0 0.0
    %728 = vmatpush1.xpose.msra.mxu0 0.0
    %729 = vmatprep.subr.mxu0 0.0
    %730 = vmatpush1.xpose.msra.mxu0 0.0
    %731 = vmatprep.subr.mxu0 0.0
    %732 = vmatpush1.xpose.msra.mxu0 0.0
    %733 = vmatprep.subr.mxu0 0.0
    %734 = vmatpush1.xpose.msra.mxu0 0.0
    %735 = vmatprep.subr.mxu0 0.0
    %736 = vmatpush1.xpose.msra.mxu0 0.0
    %737 = vmatprep.subr.mxu0 0.0
    %738 = vmatpush1.xpose.msra.mxu0 0.0
    %739 = vmatprep.subr.mxu0 0.0
    %740 = vmatpush1.xpose.msra.mxu0 0.0
    %741 = vmatprep.subr.mxu0 0.0
    %742 = vmatpush1.xpose.msra.mxu0 0.0
    %743 = vmatprep.subr.mxu0 0.0
    %744 = vmatpush1.xpose.msra.mxu0 0.0
    %745 = vmatprep.subr.mxu0 0.0
    %746 = vmatpush1.xpose.msra.mxu0 0.0
    %747 = vmatprep.subr.mxu0 0.0
    %748 = vmatpush1.xpose.msra.mxu0 0.0
    %749 = vmatprep.subr.mxu0 0.0
    %750 = vmatpush1.xpose.msra.mxu0 0.0
    %751 = vmatprep.subr.mxu0 0.0
    %752 = vmatpush1.xpose.msra.mxu0 0.0
    %753 = vmatprep.subr.mxu0 0.0
    %754 = vmatpush1.xpose.msra.mxu0 0.0
    %755 = vmatprep.subr.mxu0 0.0
    %756 = vmatpush1.xpose.msra.mxu0 0.0
    %757 = vmatprep.subr.mxu0 0.0
    %758 = vmatpush1.xpose.msra.mxu0 0.0
    %759 = vmatprep.subr.mxu0 0.0
    %760 = vmatpush1.xpose.msra.mxu0 0.0
    %761 = vmatprep.subr.mxu0 0.0
    %762 = vmatpush1.xpose.msra.mxu0 0.0
    %763 = vmatprep.subr.mxu0 0.0
    %764 = vmatpush1.xpose.msra.mxu0 0.0
    %765 = vmatprep.subr.mxu0 0.0
    %766 = vmatpush1.xpose.msra.mxu0 0.0
    %767 = vmatprep.subr.mxu0 0.0
    %768 = vmatpush1.xpose.msra.mxu0 0.0
    %769 = vmatprep.subr.mxu0 0.0
    %770 = vmatpush1.xpose.msra.mxu0 0.0
    %771 = vmatprep.subr.mxu0 0.0
    %772 = vmatpush1.xpose.msra.mxu0 0.0
    %773 = vmatprep.mubr.f32.mxu0 0.0
    %774 = vmatmul.mubr.f32.gmra.mrb[0].mxu0 %v701
    %v775 = vpop.f32.mrb[0].mxu0
    %v776 = vadd.f32 0.0, %v775
    %v777 = vpop.f32.mrb[0].mxu0
    %778 = vmatprep.mubr.f32.mxu0 0.0
    %779 = vmatmul.mubr.f32.gmra.mrb[0].mxu0 %v703
    %v780 = vpop.f32.mrb[0].mxu0
    %v781 = vadd.f32 0.0, %v780
    %v782 = vpop.f32.mrb[0].mxu0
    %783 = vdwg.mxu0
    %v784 = vmul.f32 %v776, 0.5
    %v785 = vmul.f32 %v781, 0.5
    %v786 = vsel %vm183, 1e-09, %v784
    %v787 = vsel %vm184, 1e-09, %v785
    %v788 = vsel %vm185, -1e+30, %v786
    %v789 = vsel %vm186, -1e+30, %v787
    %v790 = vsel %vm377, %v788, -inf
    %791 = vmax.xlane.f32.xlu0 %v790
    %v792 = vpop.xlane.xlu0 %791
    %v793 = vsel %vm377, %v789, -inf
    %794 = vmax.xlane.f32.xlu0 %v793
    %v795 = vpop.xlane.xlu0 %794
    %v796 = vsub.f32 %v788, %v792
    %v797 = vsub.f32 %v789, %v795
    %v798 = vmul.f32 %v796, 1.442695
    %v799 = vpow.pop %v798
    %v800 = vmul.f32 %v797, 1.442695
    %v801 = vpow.pop %v800
    %v802 = vsel %vm377, %v799, 0.0
    %803 = vadd.xlane.f32.xlu0 %v802
    %v804 = vpop.xlane.xlu0 %803
    %v805 = vsel %vm377, %v801, 0.0
    %806 = vadd.xlane.f32.xlu0 %v805
    %v807 = vpop.xlane.xlu0 %806
    %v808 = vrcp.pop %v804
    %v809 = vmul.f32 %v799, %v808
    %v810 = vrcp.pop %v807
    %v811 = vmul.f32 %v801, %v810
    %812 = vrot.lane.b32.xlu0 %v273, 48
    %v813 = vpop.permute.xlu0 %812
    %814 = vrot.lane.b32.xlu0 %v278, 48
    %v815 = vpop.permute.xlu0 %814
    %v819 = vsel %vm377, %v809, 0
    %v822 = vsel %vm377, %v811, 0
    %824 = vmatprep.subr.mxu0 0.0
    %825 = vmatpush1.msra.mxu0 %v813
    %826 = vmatprep.subr.mxu0 0.0
    %827 = vmatpush1.msra.mxu0 %v815
    %828 = vmatprep.subr.mxu0 0.0
    %829 = vmatpush1.msra.mxu0 0.0
    %830 = vmatprep.subr.mxu0 0.0
    %831 = vmatpush1.msra.mxu0 0.0
    %832 = vmatprep.subr.mxu0 0.0
    %833 = vmatpush1.msra.mxu0 0.0
    %834 = vmatprep.subr.mxu0 0.0
    %835 = vmatpush1.msra.mxu0 0.0
    %836 = vmatprep.subr.mxu0 0.0
    %837 = vmatpush1.msra.mxu0 0.0
    %838 = vmatprep.subr.mxu0 0.0
    %839 = vmatpush1.msra.mxu0 0.0
    %840 = vmatprep.subr.mxu0 0.0
    %841 = vmatpush1.msra.mxu0 0.0
    %842 = vmatprep.subr.mxu0 0.0
    %843 = vmatpush1.msra.mxu0 0.0
    %844 = vmatprep.subr.mxu0 0.0
    %845 = vmatpush1.msra.mxu0 0.0
    %846 = vmatprep.subr.mxu0 0.0
    %847 = vmatpush1.msra.mxu0 0.0
    %848 = vmatprep.subr.mxu0 0.0
    %849 = vmatpush1.msra.mxu0 0.0
    %850 = vmatprep.subr.mxu0 0.0
    %851 = vmatpush1.msra.mxu0 0.0
    %852 = vmatprep.subr.mxu0 0.0
    %853 = vmatpush1.msra.mxu0 0.0
    %854 = vmatprep.subr.mxu0 0.0
    %855 = vmatpush1.msra.mxu0 0.0
    %856 = vmatprep.subr.mxu0 0.0
    %857 = vmatpush1.msra.mxu0 0.0
    %858 = vmatprep.subr.mxu0 0.0
    %859 = vmatpush1.msra.mxu0 0.0
    %860 = vmatprep.subr.mxu0 0.0
    %861 = vmatpush1.msra.mxu0 0.0
    %862 = vmatprep.subr.mxu0 0.0
    %863 = vmatpush1.msra.mxu0 0.0
    %864 = vmatprep.subr.mxu0 0.0
    %865 = vmatpush1.msra.mxu0 0.0
    %866 = vmatprep.subr.mxu0 0.0
    %867 = vmatpush1.msra.mxu0 0.0
    %868 = vmatprep.subr.mxu0 0.0
    %869 = vmatpush1.msra.mxu0 0.0
    %870 = vmatprep.subr.mxu0 0.0
    %871 = vmatpush1.msra.mxu0 0.0
    %872 = vmatprep.subr.mxu0 0.0
    %873 = vmatpush1.msra.mxu0 0.0
    %874 = vmatprep.subr.mxu0 0.0
    %875 = vmatpush1.msra.mxu0 0.0
    %876 = vmatprep.subr.mxu0 0.0
    %877 = vmatpush1.msra.mxu0 0.0
    %878 = vmatprep.subr.mxu0 0.0
    %879 = vmatpush1.msra.mxu0 0.0
    %880 = vmatprep.subr.mxu0 0.0
    %881 = vmatpush1.msra.mxu0 0.0
    %882 = vmatprep.subr.mxu0 0.0
    %883 = vmatpush1.msra.mxu0 0.0
    %884 = vmatprep.subr.mxu0 0.0
    %885 = vmatpush1.msra.mxu0 0.0
    %886 = vmatprep.subr.mxu0 0.0
    %887 = vmatpush1.msra.mxu0 0.0
    %888 = vmatprep.mubr.f32.mxu0 0.0
    %889 = vmatmul.mubr.f32.gmra.mrb[0].mxu0 %v819
    %v890 = vpop.f32.mrb[0].mxu0
    %v891 = vadd.f32 0.0, %v890
    %v892 = vpop.f32.mrb[0].mxu0
    %893 = vmatprep.mubr.f32.mxu0 0.0
    %894 = vmatmul.mubr.f32.gmra.mrb[0].mxu0 %v822
    %v895 = vpop.f32.mrb[0].mxu0
    %v896 = vadd.f32 0.0, %v895
    %v897 = vpop.f32.mrb[0].mxu0
    %898 = vdwg.mxu0
    %899 = vrot.lane.b32.xlu0 %v273, 104
    %v900 = vpop.permute.xlu0 %899
    %901 = vrot.lane.b32.xlu0 %v278, 104
    %v902 = vpop.permute.xlu0 %901
    %903 = vrot.lane.b32.xlu0 %v273, 72
    %v904 = vpop.permute.xlu0 %903
    %905 = vrot.lane.b32.xlu0 %v278, 72
    %v906 = vpop.permute.xlu0 %905
    %v907 = vsel %vm287, %v900, 0
    %v909 = vsel %vm287, %v902, 0
    %v911 = vsel %vm287, %v904, 0
    %v913 = vsel %vm287, %v906, 0
    %915 = vmatprep.subr.mxu0 0.0
    %916 = vmatpush1.xpose.msra.mxu0 %v911
    %917 = vmatprep.subr.mxu0 0.0
    %918 = vmatpush1.xpose.msra.mxu0 %v913
    %919 = vmatprep.subr.mxu0 0.0
    %920 = vmatpush1.xpose.msra.mxu0 0.0
    %921 = vmatprep.subr.mxu0 0.0
    %922 = vmatpush1.xpose.msra.mxu0 0.0
    %923 = vmatprep.subr.mxu0 0.0
    %924 = vmatpush1.xpose.msra.mxu0 0.0
    %925 = vmatprep.subr.mxu0 0.0
    %926 = vmatpush1.xpose.msra.mxu0 0.0
    %927 = vmatprep.subr.mxu0 0.0
    %928 = vmatpush1.xpose.msra.mxu0 0.0
    %929 = vmatprep.subr.mxu0 0.0
    %930 = vmatpush1.xpose.msra.mxu0 0.0
    %931 = vmatprep.subr.mxu0 0.0
    %932 = vmatpush1.xpose.msra.mxu0 0.0
    %933 = vmatprep.subr.mxu0 0.0
    %934 = vmatpush1.xpose.msra.mxu0 0.0
    %935 = vmatprep.subr.mxu0 0.0
    %936 = vmatpush1.xpose.msra.mxu0 0.0
    %937 = vmatprep.subr.mxu0 0.0
    %938 = vmatpush1.xpose.msra.mxu0 0.0
    %939 = vmatprep.subr.mxu0 0.0
    %940 = vmatpush1.xpose.msra.mxu0 0.0
    %941 = vmatprep.subr.mxu0 0.0
    %942 = vmatpush1.xpose.msra.mxu0 0.0
    %943 = vmatprep.subr.mxu0 0.0
    %944 = vmatpush1.xpose.msra.mxu0 0.0
    %945 = vmatprep.subr.mxu0 0.0
    %946 = vmatpush1.xpose.msra.mxu0 0.0
    %947 = vmatprep.subr.mxu0 0.0
    %948 = vmatpush1.xpose.msra.mxu0 0.0
    %949 = vmatprep.subr.mxu0 0.0
    %950 = vmatpush1.xpose.msra.mxu0 0.0
    %951 = vmatprep.subr.mxu0 0.0
    %952 = vmatpush1.xpose.msra.mxu0 0.0
    %953 = vmatprep.subr.mxu0 0.0
    %954 = vmatpush1.xpose.msra.mxu0 0.0
    %955 = vmatprep.subr.mxu0 0.0
    %956 = vmatpush1.xpose.msra.mxu0 0.0
    %957 = vmatprep.subr.mxu0 0.0
    %958 = vmatpush1.xpose.msra.mxu0 0.0
    %959 = vmatprep.subr.mxu0 0.0
    %960 = vmatpush1.xpose.msra.mxu0 0.0
    %961 = vmatprep.subr.mxu0 0.0
    %962 = vmatpush1.xpose.msra.mxu0 0.0
    %963 = vmatprep.subr.mxu0 0.0
    %964 = vmatpush1.xpose.msra.mxu0 0.0
    %965 = vmatprep.subr.mxu0 0.0
    %966 = vmatpush1.xpose.msra.mxu0 0.0
    %967 = vmatprep.subr.mxu0 0.0
    %968 = vmatpush1.xpose.msra.mxu0 0.0
    %969 = vmatprep.subr.mxu0 0.0
    %970 = vmatpush1.xpose.msra.mxu0 0.0
    %971 = vmatprep.subr.mxu0 0.0
    %972 = vmatpush1.xpose.msra.mxu0 0.0
    %973 = vmatprep.subr.mxu0 0.0
    %974 = vmatpush1.xpose.msra.mxu0 0.0
    %975 = vmatprep.subr.mxu0 0.0
    %976 = vmatpush1.xpose.msra.mxu0 0.0
    %977 = vmatprep.subr.mxu0 0.0
    %978 = vmatpush1.xpose.msra.mxu0 0.0
    %979 = vmatprep.mubr.f32.mxu0 0.0
    %980 = vmatmul.mubr.f32.gmra.mrb[0].mxu0 %v907
    %v981 = vpop.f32.mrb[0].mxu0
    %v982 = vadd.f32 0.0, %v981
    %v983 = vpop.f32.mrb[0].mxu0
    %984 = vmatprep.mubr.f32.mxu0 0.0
    %985 = vmatmul.mubr.f32.gmra.mrb[0].mxu0 %v909
    %v986 = vpop.f32.mrb[0].mxu0
    %v987 = vadd.f32 0.0, %v986
    %v988 = vpop.f32.mrb[0].mxu0
    %989 = vdwg.mxu0
    %v990 = vmul.f32 %v982, 0.5
    %v991 = vmul.f32 %v987, 0.5
    %v992 = vsel %vm183, 1e-09, %v990
    %v993 = vsel %vm184, 1e-09, %v991
    %v994 = vsel %vm185, -1e+30, %v992
    %v995 = vsel %vm186, -1e+30, %v993
    %v996 = vsel %vm377, %v994, -inf
    %997 = vmax.xlane.f32.xlu0 %v996
    %v998 = vpop.xlane.xlu0 %997
    %v999 = vsel %vm377, %v995, -inf
    %1000 = vmax.xlane.f32.xlu0 %v999
    %v1001 = vpop.xlane.xlu0 %1000
    %v1002 = vsub.f32 %v994, %v998
    %v1003 = vsub.f32 %v995, %v1001
    %v1004 = vmul.f32 %v1002, 1.442695
    %v1005 = vpow.pop %v1004
    %v1006 = vmul.f32 %v1003, 1.442695
    %v1007 = vpow.pop %v1006
    %v1008 = vsel %vm377, %v1005, 0.0
    %1009 = vadd.xlane.f32.xlu0 %v1008
    %v1010 = vpop.xlane.xlu0 %1009
    %v1011 = vsel %vm377, %v1007, 0.0
    %1012 = vadd.xlane.f32.xlu0 %v1011
    %v1013 = vpop.xlane.xlu0 %1012
    %v1014 = vrcp.pop %v1010
    %v1015 = vmul.f32 %v1005, %v1014
    %v1016 = vrcp.pop %v1013
    %v1017 = vmul.f32 %v1007, %v1016
    %1018 = vrot.lane.b32.xlu0 %v273, 40
    %v1019 = vpop.permute.xlu0 %1018
    %1020 = vrot.lane.b32.xlu0 %v278, 40
    %v1021 = vpop.permute.xlu0 %1020
    %v1025 = vsel %vm377, %v1015, 0
    %v1028 = vsel %vm377, %v1017, 0
    %1030 = vmatprep.subr.mxu0 0.0
    %1031 = vmatpush1.msra.mxu0 %v1019
    %1032 = vmatprep.subr.mxu0 0.0
    %1033 = vmatpush1.msra.mxu0 %v1021
    %1034 = vmatprep.subr.mxu0 0.0
    %1035 = vmatpush1.msra.mxu0 0.0
    %1036 = vmatprep.subr.mxu0 0.0
    %1037 = vmatpush1.msra.mxu0 0.0
    %1038 = vmatprep.subr.mxu0 0.0
    %1039 = vmatpush1.msra.mxu0 0.0
    %1040 = vmatprep.subr.mxu0 0.0
    %1041 = vmatpush1.msra.mxu0 0.0
    %1042 = vmatprep.subr.mxu0 0.0
    %1043 = vmatpush1.msra.mxu0 0.0
    %1044 = vmatprep.subr.mxu0 0.0
    %1045 = vmatpush1.msra.mxu0 0.0
    %1046 = vmatprep.subr.mxu0 0.0
    %1047 = vmatpush1.msra.mxu0 0.0
    %1048 = vmatprep.subr.mxu0 0.0
    %1049 = vmatpush1.msra.mxu0 0.0
    %1050 = vmatprep.subr.mxu0 0.0
    %1051 = vmatpush1.msra.mxu0 0.0
    %1052 = vmatprep.subr.mxu0 0.0
    %1053 = vmatpush1.msra.mxu0 0.0
    %1054 = vmatprep.subr.mxu0 0.0
    %1055 = vmatpush1.msra.mxu0 0.0
    %1056 = vmatprep.subr.mxu0 0.0
    %1057 = vmatpush1.msra.mxu0 0.0
    %1058 = vmatprep.subr.mxu0 0.0
    %1059 = vmatpush1.msra.mxu0 0.0
    %1060 = vmatprep.subr.mxu0 0.0
    %1061 = vmatpush1.msra.mxu0 0.0
    %1062 = vmatprep.subr.mxu0 0.0
    %1063 = vmatpush1.msra.mxu0 0.0
    %1064 = vmatprep.subr.mxu0 0.0
    %1065 = vmatpush1.msra.mxu0 0.0
    %1066 = vmatprep.subr.mxu0 0.0
    %1067 = vmatpush1.msra.mxu0 0.0
    %1068 = vmatprep.subr.mxu0 0.0
    %1069 = vmatpush1.msra.mxu0 0.0
    %1070 = vmatprep.subr.mxu0 0.0
    %1071 = vmatpush1.msra.mxu0 0.0
    %1072 = vmatprep.subr.mxu0 0.0
    %1073 = vmatpush1.msra.mxu0 0.0
    %1074 = vmatprep.subr.mxu0 0.0
    %1075 = vmatpush1.msra.mxu0 0.0
    %1076 = vmatprep.subr.mxu0 0.0
    %1077 = vmatpush1.msra.mxu0 0.0
    %1078 = vmatprep.subr.mxu0 0.0
    %1079 = vmatpush1.msra.mxu0 0.0
    %1080 = vmatprep.subr.mxu0 0.0
    %1081 = vmatpush1.msra.mxu0 0.0
    %1082 = vmatprep.subr.mxu0 0.0
    %1083 = vmatpush1.msra.mxu0 0.0
    %1084 = vmatprep.subr.mxu0 0.0
    %1085 = vmatpush1.msra.mxu0 0.0
    %1086 = vmatprep.subr.mxu0 0.0
    %1087 = vmatpush1.msra.mxu0 0.0
    %1088 = vmatprep.subr.mxu0 0.0
    %1089 = vmatpush1.msra.mxu0 0.0
    %1090 = vmatprep.subr.mxu0 0.0
    %1091 = vmatpush1.msra.mxu0 0.0
    %1092 = vmatprep.subr.mxu0 0.0
    %1093 = vmatpush1.msra.mxu0 0.0
    %1094 = vmatprep.mubr.f32.mxu0 0.0
    %1095 = vmatmul.mubr.f32.gmra.mrb[0].mxu0 %v1025
    %v1096 = vpop.f32.mrb[0].mxu0
    %v1097 = vadd.f32 0.0, %v1096
    %v1098 = vpop.f32.mrb[0].mxu0
    %1099 = vmatprep.mubr.f32.mxu0 0.0
    %1100 = vmatmul.mubr.f32.gmra.mrb[0].mxu0 %v1028
    %v1101 = vpop.f32.mrb[0].mxu0
    %v1102 = vadd.f32 0.0, %v1101
    %v1103 = vpop.f32.mrb[0].mxu0
    %1104 = vdwg.mxu0
    %1107 = vrot.lane.b32.xlu0 %v685, 8
    %v1108 = vpop.permute.xlu0 %1107
    %1109 = vrot.lane.b32.xlu0 %v690, 8
    %v1110 = vpop.permute.xlu0 %1109
    %1115 = vrot.lane.b32.xlu0 %v891, 16
    %v1116 = vpop.permute.xlu0 %1115
    %1117 = vrot.lane.b32.xlu0 %v896, 16
    %v1118 = vpop.permute.xlu0 %1117
    %1123 = vrot.lane.b32.xlu0 %v1097, 24
    %v1124 = vpop.permute.xlu0 %1123
    %1125 = vrot.lane.b32.xlu0 %v1102, 24
    %v1126 = vpop.permute.xlu0 %1125
    %v1129 = vsel %vm287, %v479, %v1108
    %v1130 = vsel %vm287, %v484, %v1110
    %v1131 = vsel %vm377, %v1129, %v1116
    %v1132 = vsel %vm377, %v1130, %v1118
    %vm1133 = vcmask 195584
    %v1134 = vsel %vm1133, %v1131, %v1124
    %v1135 = vsel %vm1133, %v1132, %v1126
    %v1136 = vadd.f32 %v1134, %v173
    %v1137 = vadd.f32 %v1135, %v178
    %v1138 = vsel %vm99, %v1136, 0.0
    %1139 = vadd.xlane.f32.xlu0 %v1138
    %v1140 = vpop.xlane.xlu0 %1139
    %v1141 = vsel %vm99, %v1137, 0.0
    %1142 = vadd.xlane.f32.xlu0 %v1141
    %v1143 = vpop.xlane.xlu0 %1142
    %v1144 = vrcp.pop 32.0
    %v1145 = vmul.f32 %v1140, %v1144
    %v1146 = vmul.f32 %v1143, %v1144
    %v1147 = vsub.f32 %v1136, %v1145
    %v1148 = vsub.f32 %v1137, %v1146
    %v1149 = vmul.f32 %v1147, %v1147
    %v1150 = vmul.f32 %v1148, %v1148
    %v1151 = vsel %vm99, %v1149, 0.0
    %1152 = vadd.xlane.f32.xlu0 %v1151
    %v1153 = vpop.xlane.xlu0 %1152
    %v1154 = vsel %vm99, %v1150, 0.0
    %1155 = vadd.xlane.f32.xlu0 %v1154
    %v1156 = vpop.xlane.xlu0 %1155
    %v1157 = vmul.f32 %v1153, %v1144
    %v1158 = vmul.f32 %v1156, %v1144
    %v1159 = vadd.f32 %v1157, 1e-05
    %v1160 = vadd.f32 %v1158, 1e-05
    %v1161 = vrsqrt.pop %v1159
    %v1162 = vrsqrt.pop %v1160
    %v1163 = vmul.f32 %v1147, %v1161
    %v1164 = vmul.f32 %v1148, %v1162
    %v1166 = vlaneseq
    %v1167 = vshrl.u32 %v1166, 7
    %v1168 = vsub.s32 0, %v1167
    %v1169 = vrot.slane %v192, %v1168
    %v1171 = vmul.f32 %v1163, %v1169
    %v1172 = vmul.f32 %v1164, %v1169
    %v1174 = vlaneseq
    %v1175 = vshrl.u32 %v1174, 7
    %v1176 = vsub.s32 0, %v1175
    %v1177 = vrot.slane %v193, %v1176
    %v1179 = vadd.f32 %v1171, %v1177
    %v1180 = vadd.f32 %v1172, %v1177
    %v1181 = vld [vmem:[%s8] sm:$0xff]
    %v1182 = vld [vmem:[%s8 + $0x8] sm:$0xff]
    %v1183 = vld [vmem:[%s8 + $0x10] sm:$0xff]
    %v1184 = vld [vmem:[%s8 + $0x18] sm:$0xff]
    %v1185 = vld [vmem:[%s9] sm:$0x1]
    %v1186 = vld [vmem:[%s10] sm:$0x1]
    %v1187 = vld [vmem:[%s11] sm:$0x1]
    %v1189 = vlaneseq
    %v1190 = vshrl.u32 %v1189, 7
    %v1191 = vsub.s32 0, %v1190
    %v1192 = vrot.slane %v1185, %v1191
    %v1195 = vsel %vm99, %v1179, 0
    %v1198 = vsel %vm99, %v1180, 0
    %1200 = vmatprep.subr.mxu0 0.0
    %1201 = vmatpush1.msra.mxu0 %v1181
    %1202 = vmatprep.subr.mxu0 0.0
    %1203 = vmatpush1.msra.mxu0 %v1182
    %1204 = vmatprep.subr.mxu0 0.0
    %1205 = vmatpush1.msra.mxu0 %v1183
    %1206 = vmatprep.subr.mxu0 0.0
    %1207 = vmatpush1.msra.mxu0 %v1184
    %1208 = vmatprep.subr.mxu0 0.0
    %1209 = vmatpush1.msra.mxu0 0.0
    %1210 = vmatprep.subr.mxu0 0.0
    %1211 = vmatpush1.msra.mxu0 0.0
    %1212 = vmatprep.subr.mxu0 0.0
    %1213 = vmatpush1.msra.mxu0 0.0
    %1214 = vmatprep.subr.mxu0 0.0
    %1215 = vmatpush1.msra.mxu0 0.0
    %1216 = vmatprep.subr.mxu0 0.0
    %1217 = vmatpush1.msra.mxu0 0.0
    %1218 = vmatprep.subr.mxu0 0.0
    %1219 = vmatpush1.msra.mxu0 0.0
    %1220 = vmatprep.subr.mxu0 0.0
    %1221 = vmatpush1.msra.mxu0 0.0
    %1222 = vmatprep.subr.mxu0 0.0
    %1223 = vmatpush1.msra.mxu0 0.0
    %1224 = vmatprep.subr.mxu0 0.0
    %1225 = vmatpush1.msra.mxu0 0.0
    %1226 = vmatprep.subr.mxu0 0.0
    %1227 = vmatpush1.msra.mxu0 0.0
    %1228 = vmatprep.subr.mxu0 0.0
    %1229 = vmatpush1.msra.mxu0 0.0
    %1230 = vmatprep.subr.mxu0 0.0
    %1231 = vmatpush1.msra.mxu0 0.0
    %1232 = vmatprep.subr.mxu0 0.0
    %1233 = vmatpush1.msra.mxu0 0.0
    %1234 = vmatprep.subr.mxu0 0.0
    %1235 = vmatpush1.msra.mxu0 0.0
    %1236 = vmatprep.subr.mxu0 0.0
    %1237 = vmatpush1.msra.mxu0 0.0
    %1238 = vmatprep.subr.mxu0 0.0
    %1239 = vmatpush1.msra.mxu0 0.0
    %1240 = vmatprep.subr.mxu0 0.0
    %1241 = vmatpush1.msra.mxu0 0.0
    %1242 = vmatprep.subr.mxu0 0.0
    %1243 = vmatpush1.msra.mxu0 0.0
    %1244 = vmatprep.subr.mxu0 0.0
    %1245 = vmatpush1.msra.mxu0 0.0
    %1246 = vmatprep.subr.mxu0 0.0
    %1247 = vmatpush1.msra.mxu0 0.0
    %1248 = vmatprep.subr.mxu0 0.0
    %1249 = vmatpush1.msra.mxu0 0.0
    %1250 = vmatprep.subr.mxu0 0.0
    %1251 = vmatpush1.msra.mxu0 0.0
    %1252 = vmatprep.subr.mxu0 0.0
    %1253 = vmatpush1.msra.mxu0 0.0
    %1254 = vmatprep.subr.mxu0 0.0
    %1255 = vmatpush1.msra.mxu0 0.0
    %1256 = vmatprep.subr.mxu0 0.0
    %1257 = vmatpush1.msra.mxu0 0.0
    %1258 = vmatprep.subr.mxu0 0.0
    %1259 = vmatpush1.msra.mxu0 0.0
    %1260 = vmatprep.subr.mxu0 0.0
    %1261 = vmatpush1.msra.mxu0 0.0
    %1262 = vmatprep.subr.mxu0 0.0
    %1263 = vmatpush1.msra.mxu0 0.0
    %1264 = vmatprep.mubr.f32.mxu0 0.0
    %1265 = vmatmul.mubr.f32.gmra.mrb[0].mxu0 %v1195
    %v1266 = vpop.f32.mrb[0].mxu0
    %v1267 = vadd.f32 %v1192, %v1266
    %v1268 = vpop.f32.mrb[0].mxu0
    %1269 = vmatprep.mubr.f32.mxu0 0.0
    %1270 = vmatmul.mubr.f32.gmra.mrb[0].mxu0 %v1198
    %v1271 = vpop.f32.mrb[0].mxu0
    %v1272 = vadd.f32 %v1192, %v1271
    %v1273 = vpop.f32.mrb[0].mxu0
    %1274 = vdwg.mxu0
    %1277 = vrot.lane.b32.xlu0 %v1267, 96
    %v1278 = vpop.permute.xlu0 %1277
    %1279 = vrot.lane.b32.xlu0 %v1272, 96
    %v1280 = vpop.permute.xlu0 %1279
    %v1281 = vsel %vm287, %v1267, 0
    %v1283 = vsel %vm287, %v1272, 0
    %v1285 = vsel %vm287, %v1278, 0
    %v1287 = vsel %vm287, %v1280, 0
    %1289 = vmatprep.subr.mxu0 0.0
    %1290 = vmatpush1.xpose.msra.mxu0 %v1285
    %1291 = vmatprep.subr.mxu0 0.0
    %1292 = vmatpush1.xpose.msra.mxu0 %v1287
    %1293 = vmatprep.subr.mxu0 0.0
    %1294 = vmatpush1.xpose.msra.mxu0 0.0
    %1295 = vmatprep.subr.mxu0 0.0
    %1296 = vmatpush1.xpose.msra.mxu0 0.0
    %1297 = vmatprep.subr.mxu0 0.0
    %1298 = vmatpush1.xpose.msra.mxu0 0.0
    %1299 = vmatprep.subr.mxu0 0.0
    %1300 = vmatpush1.xpose.msra.mxu0 0.0
    %1301 = vmatprep.subr.mxu0 0.0
    %1302 = vmatpush1.xpose.msra.mxu0 0.0
    %1303 = vmatprep.subr.mxu0 0.0
    %1304 = vmatpush1.xpose.msra.mxu0 0.0
    %1305 = vmatprep.subr.mxu0 0.0
    %1306 = vmatpush1.xpose.msra.mxu0 0.0
    %1307 = vmatprep.subr.mxu0 0.0
    %1308 = vmatpush1.xpose.msra.mxu0 0.0
    %1309 = vmatprep.subr.mxu0 0.0
    %1310 = vmatpush1.xpose.msra.mxu0 0.0
    %1311 = vmatprep.subr.mxu0 0.0
    %1312 = vmatpush1.xpose.msra.mxu0 0.0
    %1313 = vmatprep.subr.mxu0 0.0
    %1314 = vmatpush1.xpose.msra.mxu0 0.0
    %1315 = vmatprep.subr.mxu0 0.0
    %1316 = vmatpush1.xpose.msra.mxu0 0.0
    %1317 = vmatprep.subr.mxu0 0.0
    %1318 = vmatpush1.xpose.msra.mxu0 0.0
    %1319 = vmatprep.subr.mxu0 0.0
    %1320 = vmatpush1.xpose.msra.mxu0 0.0
    %1321 = vmatprep.subr.mxu0 0.0
    %1322 = vmatpush1.xpose.msra.mxu0 0.0
    %1323 = vmatprep.subr.mxu0 0.0
    %1324 = vmatpush1.xpose.msra.mxu0 0.0
    %1325 = vmatprep.subr.mxu0 0.0
    %1326 = vmatpush1.xpose.msra.mxu0 0.0
    %1327 = vmatprep.subr.mxu0 0.0
    %1328 = vmatpush1.xpose.msra.mxu0 0.0
    %1329 = vmatprep.subr.mxu0 0.0
    %1330 = vmatpush1.xpose.msra.mxu0 0.0
    %1331 = vmatprep.subr.mxu0 0.0
    %1332 = vmatpush1.xpose.msra.mxu0 0.0
    %1333 = vmatprep.subr.mxu0 0.0
    %1334 = vmatpush1.xpose.msra.mxu0 0.0
    %1335 = vmatprep.subr.mxu0 0.0
    %1336 = vmatpush1.xpose.msra.mxu0 0.0
    %1337 = vmatprep.subr.mxu0 0.0
    %1338 = vmatpush1.xpose.msra.mxu0 0.0
    %1339 = vmatprep.subr.mxu0 0.0
    %1340 = vmatpush1.xpose.msra.mxu0 0.0
    %1341 = vmatprep.subr.mxu0 0.0
    %1342 = vmatpush1.xpose.msra.mxu0 0.0
    %1343 = vmatprep.subr.mxu0 0.0
    %1344 = vmatpush1.xpose.msra.mxu0 0.0
    %1345 = vmatprep.subr.mxu0 0.0
    %1346 = vmatpush1.xpose.msra.mxu0 0.0
    %1347 = vmatprep.subr.mxu0 0.0
    %1348 = vmatpush1.xpose.msra.mxu0 0.0
    %1349 = vmatprep.subr.mxu0 0.0
    %1350 = vmatpush1.xpose.msra.mxu0 0.0
    %1351 = vmatprep.subr.mxu0 0.0
    %1352 = vmatpush1.xpose.msra.mxu0 0.0
    %1353 = vmatprep.mubr.f32.mxu0 0.0
    %1354 = vmatmul.mubr.f32.gmra.mrb[0].mxu0 %v1281
    %v1355 = vpop.f32.mrb[0].mxu0
    %v1356 = vadd.f32 0.0, %v1355
    %v1357 = vpop.f32.mrb[0].mxu0
    %1358 = vmatprep.mubr.f32.mxu0 0.0
    %1359 = vmatmul.mubr.f32.gmra.mrb[0].mxu0 %v1283
    %v1360 = vpop.f32.mrb[0].mxu0
    %v1361 = vadd.f32 0.0, %v1360
    %v1362 = vpop.f32.mrb[0].mxu0
    %1363 = vdwg.mxu0
    %v1364 = vmul.f32 %v1356, 0.5
    %v1365 = vmul.f32 %v1361, 0.5
    %v1366 = vsel %vm183, 1e-09, %v1364
    %v1367 = vsel %vm184, 1e-09, %v1365
    %v1368 = vsel %vm185, -1e+30, %v1366
    %v1369 = vsel %vm186, -1e+30, %v1367
    %v1370 = vsel %vm377, %v1368, -inf
    %1371 = vmax.xlane.f32.xlu0 %v1370
    %v1372 = vpop.xlane.xlu0 %1371
    %v1373 = vsel %vm377, %v1369, -inf
    %1374 = vmax.xlane.f32.xlu0 %v1373
    %v1375 = vpop.xlane.xlu0 %1374
    %v1376 = vsub.f32 %v1368, %v1372
    %v1377 = vsub.f32 %v1369, %v1375
    %v1378 = vmul.f32 %v1376, 1.442695
    %v1379 = vpow.pop %v1378
    %v1380 = vmul.f32 %v1377, 1.442695
    %v1381 = vpow.pop %v1380
    %v1382 = vsel %vm377, %v1379, 0.0
    %1383 = vadd.xlane.f32.xlu0 %v1382
    %v1384 = vpop.xlane.xlu0 %1383
    %v1385 = vsel %vm377, %v1381, 0.0
    %1386 = vadd.xlane.f32.xlu0 %v1385
    %v1387 = vpop.xlane.xlu0 %1386
    %v1388 = vrcp.pop %v1384
    %v1389 = vmul.f32 %v1379, %v1388
    %v1390 = vrcp.pop %v1387
    %v1391 = vmul.f32 %v1381, %v1390
    %1392 = vrot.lane.b32.xlu0 %v1267, 64
    %v1393 = vpop.permute.xlu0 %1392
    %1394 = vrot.lane.b32.xlu0 %v1272, 64
    %v1395 = vpop.permute.xlu0 %1394
    %v1399 = vsel %vm377, %v1389, 0
    %v1402 = vsel %vm377, %v1391, 0
    %1404 = vmatprep.subr.mxu0 0.0
    %1405 = vmatpush1.msra.mxu0 %v1393
    %1406 = vmatprep.subr.mxu0 0.0
    %1407 = vmatpush1.msra.mxu0 %v1395
    %1408 = vmatprep.subr.mxu0 0.0
    %1409 = vmatpush1.msra.mxu0 0.0
    %1410 = vmatprep.subr.mxu0 0.0
    %1411 = vmatpush1.msra.mxu0 0.0
    %1412 = vmatprep.subr.mxu0 0.0
    %1413 = vmatpush1.msra.mxu0 0.0
    %1414 = vmatprep.subr.mxu0 0.0
    %1415 = vmatpush1.msra.mxu0 0.0
    %1416 = vmatprep.subr.mxu0 0.0
    %1417 = vmatpush1.msra.mxu0 0.0
    %1418 = vmatprep.subr.mxu0 0.0
    %1419 = vmatpush1.msra.mxu0 0.0
    %1420 = vmatprep.subr.mxu0 0.0
    %1421 = vmatpush1.msra.mxu0 0.0
    %1422 = vmatprep.subr.mxu0 0.0
    %1423 = vmatpush1.msra.mxu0 0.0
    %1424 = vmatprep.subr.mxu0 0.0
    %1425 = vmatpush1.msra.mxu0 0.0
    %1426 = vmatprep.subr.mxu0 0.0
    %1427 = vmatpush1.msra.mxu0 0.0
    %1428 = vmatprep.subr.mxu0 0.0
    %1429 = vmatpush1.msra.mxu0 0.0
    %1430 = vmatprep.subr.mxu0 0.0
    %1431 = vmatpush1.msra.mxu0 0.0
    %1432 = vmatprep.subr.mxu0 0.0
    %1433 = vmatpush1.msra.mxu0 0.0
    %1434 = vmatprep.subr.mxu0 0.0
    %1435 = vmatpush1.msra.mxu0 0.0
    %1436 = vmatprep.subr.mxu0 0.0
    %1437 = vmatpush1.msra.mxu0 0.0
    %1438 = vmatprep.subr.mxu0 0.0
    %1439 = vmatpush1.msra.mxu0 0.0
    %1440 = vmatprep.subr.mxu0 0.0
    %1441 = vmatpush1.msra.mxu0 0.0
    %1442 = vmatprep.subr.mxu0 0.0
    %1443 = vmatpush1.msra.mxu0 0.0
    %1444 = vmatprep.subr.mxu0 0.0
    %1445 = vmatpush1.msra.mxu0 0.0
    %1446 = vmatprep.subr.mxu0 0.0
    %1447 = vmatpush1.msra.mxu0 0.0
    %1448 = vmatprep.subr.mxu0 0.0
    %1449 = vmatpush1.msra.mxu0 0.0
    %1450 = vmatprep.subr.mxu0 0.0
    %1451 = vmatpush1.msra.mxu0 0.0
    %1452 = vmatprep.subr.mxu0 0.0
    %1453 = vmatpush1.msra.mxu0 0.0
    %1454 = vmatprep.subr.mxu0 0.0
    %1455 = vmatpush1.msra.mxu0 0.0
    %1456 = vmatprep.subr.mxu0 0.0
    %1457 = vmatpush1.msra.mxu0 0.0
    %1458 = vmatprep.subr.mxu0 0.0
    %1459 = vmatpush1.msra.mxu0 0.0
    %1460 = vmatprep.subr.mxu0 0.0
    %1461 = vmatpush1.msra.mxu0 0.0
    %1462 = vmatprep.subr.mxu0 0.0
    %1463 = vmatpush1.msra.mxu0 0.0
    %1464 = vmatprep.subr.mxu0 0.0
    %1465 = vmatpush1.msra.mxu0 0.0
    %1466 = vmatprep.subr.mxu0 0.0
    %1467 = vmatpush1.msra.mxu0 0.0
    %1468 = vmatprep.mubr.f32.mxu0 0.0
    %1469 = vmatmul.mubr.f32.gmra.mrb[0].mxu0 %v1399
    %v1470 = vpop.f32.mrb[0].mxu0
    %v1471 = vadd.f32 0.0, %v1470
    %v1472 = vpop.f32.mrb[0].mxu0
    %1473 = vmatprep.mubr.f32.mxu0 0.0
    %1474 = vmatmul.mubr.f32.gmra.mrb[0].mxu0 %v1402
    %v1475 = vpop.f32.mrb[0].mxu0
    %v1476 = vadd.f32 0.0, %v1475
    %v1477 = vpop.f32.mrb[0].mxu0
    %1478 = vdwg.mxu0
    %1479 = vrot.lane.b32.xlu0 %v1267, 120
    %v1480 = vpop.permute.xlu0 %1479
    %1481 = vrot.lane.b32.xlu0 %v1272, 120
    %v1482 = vpop.permute.xlu0 %1481
    %1483 = vrot.lane.b32.xlu0 %v1267, 88
    %v1484 = vpop.permute.xlu0 %1483
    %1485 = vrot.lane.b32.xlu0 %v1272, 88
    %v1486 = vpop.permute.xlu0 %1485
    %v1487 = vsel %vm287, %v1480, 0
    %v1489 = vsel %vm287, %v1482, 0
    %v1491 = vsel %vm287, %v1484, 0
    %v1493 = vsel %vm287, %v1486, 0
    %1495 = vmatprep.subr.mxu0 0.0
    %1496 = vmatpush1.xpose.msra.mxu0 %v1491
    %1497 = vmatprep.subr.mxu0 0.0
    %1498 = vmatpush1.xpose.msra.mxu0 %v1493
    %1499 = vmatprep.subr.mxu0 0.0
    %1500 = vmatpush1.xpose.msra.mxu0 0.0
    %1501 = vmatprep.subr.mxu0 0.0
    %1502 = vmatpush1.xpose.msra.mxu0 0.0
    %1503 = vmatprep.subr.mxu0 0.0
    %1504 = vmatpush1.xpose.msra.mxu0 0.0
    %1505 = vmatprep.subr.mxu0 0.0
    %1506 = vmatpush1.xpose.msra.mxu0 0.0
    %1507 = vmatprep.subr.mxu0 0.0
    %1508 = vmatpush1.xpose.msra.mxu0 0.0
    %1509 = vmatprep.subr.mxu0 0.0
    %1510 = vmatpush1.xpose.msra.mxu0 0.0
    %1511 = vmatprep.subr.mxu0 0.0
    %1512 = vmatpush1.xpose.msra.mxu0 0.0
    %1513 = vmatprep.subr.mxu0 0.0
    %1514 = vmatpush1.xpose.msra.mxu0 0.0
    %1515 = vmatprep.subr.mxu0 0.0
    %1516 = vmatpush1.xpose.msra.mxu0 0.0
    %1517 = vmatprep.subr.mxu0 0.0
    %1518 = vmatpush1.xpose.msra.mxu0 0.0
    %1519 = vmatprep.subr.mxu0 0.0
    %1520 = vmatpush1.xpose.msra.mxu0 0.0
    %1521 = vmatprep.subr.mxu0 0.0
    %1522 = vmatpush1.xpose.msra.mxu0 0.0
    %1523 = vmatprep.subr.mxu0 0.0
    %1524 = vmatpush1.xpose.msra.mxu0 0.0
    %1525 = vmatprep.subr.mxu0 0.0
    %1526 = vmatpush1.xpose.msra.mxu0 0.0
    %1527 = vmatprep.subr.mxu0 0.0
    %1528 = vmatpush1.xpose.msra.mxu0 0.0
    %1529 = vmatprep.subr.mxu0 0.0
    %1530 = vmatpush1.xpose.msra.mxu0 0.0
    %1531 = vmatprep.subr.mxu0 0.0
    %1532 = vmatpush1.xpose.msra.mxu0 0.0
    %1533 = vmatprep.subr.mxu0 0.0
    %1534 = vmatpush1.xpose.msra.mxu0 0.0
    %1535 = vmatprep.subr.mxu0 0.0
    %1536 = vmatpush1.xpose.msra.mxu0 0.0
    %1537 = vmatprep.subr.mxu0 0.0
    %1538 = vmatpush1.xpose.msra.mxu0 0.0
    %1539 = vmatprep.subr.mxu0 0.0
    %1540 = vmatpush1.xpose.msra.mxu0 0.0
    %1541 = vmatprep.subr.mxu0 0.0
    %1542 = vmatpush1.xpose.msra.mxu0 0.0
    %1543 = vmatprep.subr.mxu0 0.0
    %1544 = vmatpush1.xpose.msra.mxu0 0.0
    %1545 = vmatprep.subr.mxu0 0.0
    %1546 = vmatpush1.xpose.msra.mxu0 0.0
    %1547 = vmatprep.subr.mxu0 0.0
    %1548 = vmatpush1.xpose.msra.mxu0 0.0
    %1549 = vmatprep.subr.mxu0 0.0
    %1550 = vmatpush1.xpose.msra.mxu0 0.0
    %1551 = vmatprep.subr.mxu0 0.0
    %1552 = vmatpush1.xpose.msra.mxu0 0.0
    %1553 = vmatprep.subr.mxu0 0.0
    %1554 = vmatpush1.xpose.msra.mxu0 0.0
    %1555 = vmatprep.subr.mxu0 0.0
    %1556 = vmatpush1.xpose.msra.mxu0 0.0
    %1557 = vmatprep.subr.mxu0 0.0
    %1558 = vmatpush1.xpose.msra.mxu0 0.0
    %1559 = vmatprep.mubr.f32.mxu0 0.0
    %1560 = vmatmul.mubr.f32.gmra.mrb[0].mxu0 %v1487
    %v1561 = vpop.f32.mrb[0].mxu0
    %v1562 = vadd.f32 0.0, %v1561
    %v1563 = vpop.f32.mrb[0].mxu0
    %1564 = vmatprep.mubr.f32.mxu0 0.0
    %1565 = vmatmul.mubr.f32.gmra.mrb[0].mxu0 %v1489
    %v1566 = vpop.f32.mrb[0].mxu0
    %v1567 = vadd.f32 0.0, %v1566
    %v1568 = vpop.f32.mrb[0].mxu0
    %1569 = vdwg.mxu0
    %v1570 = vmul.f32 %v1562, 0.5
    %v1571 = vmul.f32 %v1567, 0.5
    %v1572 = vsel %vm183, 1e-09, %v1570
    %v1573 = vsel %vm184, 1e-09, %v1571
    %v1574 = vsel %vm185, -1e+30, %v1572
    %v1575 = vsel %vm186, -1e+30, %v1573
    %v1576 = vsel %vm377, %v1574, -inf
    %1577 = vmax.xlane.f32.xlu0 %v1576
    %v1578 = vpop.xlane.xlu0 %1577
    %v1579 = vsel %vm377, %v1575, -inf
    %1580 = vmax.xlane.f32.xlu0 %v1579
    %v1581 = vpop.xlane.xlu0 %1580
    %v1582 = vsub.f32 %v1574, %v1578
    %v1583 = vsub.f32 %v1575, %v1581
    %v1584 = vmul.f32 %v1582, 1.442695
    %v1585 = vpow.pop %v1584
    %v1586 = vmul.f32 %v1583, 1.442695
    %v1587 = vpow.pop %v1586
    %v1588 = vsel %vm377, %v1585, 0.0
    %1589 = vadd.xlane.f32.xlu0 %v1588
    %v1590 = vpop.xlane.xlu0 %1589
    %v1591 = vsel %vm377, %v1587, 0.0
    %1592 = vadd.xlane.f32.xlu0 %v1591
    %v1593 = vpop.xlane.xlu0 %1592
    %v1594 = vrcp.pop %v1590
    %v1595 = vmul.f32 %v1585, %v1594
    %v1596 = vrcp.pop %v1593
    %v1597 = vmul.f32 %v1587, %v1596
    %1598 = vrot.lane.b32.xlu0 %v1267, 56
    %v1599 = vpop.permute.xlu0 %1598
    %1600 = vrot.lane.b32.xlu0 %v1272, 56
    %v1601 = vpop.permute.xlu0 %1600
    %v1605 = vsel %vm377, %v1595, 0
    %v1608 = vsel %vm377, %v1597, 0
    %1610 = vmatprep.subr.mxu0 0.0
    %1611 = vmatpush1.msra.mxu0 %v1599
    %1612 = vmatprep.subr.mxu0 0.0
    %1613 = vmatpush1.msra.mxu0 %v1601
    %1614 = vmatprep.subr.mxu0 0.0
    %1615 = vmatpush1.msra.mxu0 0.0
    %1616 = vmatprep.subr.mxu0 0.0
    %1617 = vmatpush1.msra.mxu0 0.0
    %1618 = vmatprep.subr.mxu0 0.0
    %1619 = vmatpush1.msra.mxu0 0.0
    %1620 = vmatprep.subr.mxu0 0.0
    %1621 = vmatpush1.msra.mxu0 0.0
    %1622 = vmatprep.subr.mxu0 0.0
    %1623 = vmatpush1.msra.mxu0 0.0
    %1624 = vmatprep.subr.mxu0 0.0
    %1625 = vmatpush1.msra.mxu0 0.0
    %1626 = vmatprep.subr.mxu0 0.0
    %1627 = vmatpush1.msra.mxu0 0.0
    %1628 = vmatprep.subr.mxu0 0.0
    %1629 = vmatpush1.msra.mxu0 0.0
    %1630 = vmatprep.subr.mxu0 0.0
    %1631 = vmatpush1.msra.mxu0 0.0
    %1632 = vmatprep.subr.mxu0 0.0
    %1633 = vmatpush1.msra.mxu0 0.0
    %1634 = vmatprep.subr.mxu0 0.0
    %1635 = vmatpush1.msra.mxu0 0.0
    %1636 = vmatprep.subr.mxu0 0.0
    %1637 = vmatpush1.msra.mxu0 0.0
    %1638 = vmatprep.subr.mxu0 0.0
    %1639 = vmatpush1.msra.mxu0 0.0
    %1640 = vmatprep.subr.mxu0 0.0
    %1641 = vmatpush1.msra.mxu0 0.0
    %1642 = vmatprep.subr.mxu0 0.0
    %1643 = vmatpush1.msra.mxu0 0.0
    %1644 = vmatprep.subr.mxu0 0.0
    %1645 = vmatpush1.msra.mxu0 0.0
    %1646 = vmatprep.subr.mxu0 0.0
    %1647 = vmatpush1.msra.mxu0 0.0
    %1648 = vmatprep.subr.mxu0 0.0
    %1649 = vmatpush1.msra.mxu0 0.0
    %1650 = vmatprep.subr.mxu0 0.0
    %1651 = vmatpush1.msra.mxu0 0.0
    %1652 = vmatprep.subr.mxu0 0.0
    %1653 = vmatpush1.msra.mxu0 0.0
    %1654 = vmatprep.subr.mxu0 0.0
    %1655 = vmatpush1.msra.mxu0 0.0
    %1656 = vmatprep.subr.mxu0 0.0
    %1657 = vmatpush1.msra.mxu0 0.0
    %1658 = vmatprep.subr.mxu0 0.0
    %1659 = vmatpush1.msra.mxu0 0.0
    %1660 = vmatprep.subr.mxu0 0.0
    %1661 = vmatpush1.msra.mxu0 0.0
    %1662 = vmatprep.subr.mxu0 0.0
    %1663 = vmatpush1.msra.mxu0 0.0
    %1664 = vmatprep.subr.mxu0 0.0
    %1665 = vmatpush1.msra.mxu0 0.0
    %1666 = vmatprep.subr.mxu0 0.0
    %1667 = vmatpush1.msra.mxu0 0.0
    %1668 = vmatprep.subr.mxu0 0.0
    %1669 = vmatpush1.msra.mxu0 0.0
    %1670 = vmatprep.subr.mxu0 0.0
    %1671 = vmatpush1.msra.mxu0 0.0
    %1672 = vmatprep.subr.mxu0 0.0
    %1673 = vmatpush1.msra.mxu0 0.0
    %1674 = vmatprep.mubr.f32.mxu0 0.0
    %1675 = vmatmul.mubr.f32.gmra.mrb[0].mxu0 %v1605
    %v1676 = vpop.f32.mrb[0].mxu0
    %v1677 = vadd.f32 0.0, %v1676
    %v1678 = vpop.f32.mrb[0].mxu0
    %1679 = vmatprep.mubr.f32.mxu0 0.0
    %1680 = vmatmul.mubr.f32.gmra.mrb[0].mxu0 %v1608
    %v1681 = vpop.f32.mrb[0].mxu0
    %v1682 = vadd.f32 0.0, %v1681
    %v1683 = vpop.f32.mrb[0].mxu0
    %1684 = vdwg.mxu0
    %1685 = vrot.lane.b32.xlu0 %v1267, 112
    %v1686 = vpop.permute.xlu0 %1685
    %1687 = vrot.lane.b32.xlu0 %v1272, 112
    %v1688 = vpop.permute.xlu0 %1687
    %1689 = vrot.lane.b32.xlu0 %v1267, 80
    %v1690 = vpop.permute.xlu0 %1689
    %1691 = vrot.lane.b32.xlu0 %v1272, 80
    %v1692 = vpop.permute.xlu0 %1691
    %v1693 = vsel %vm287, %v1686, 0
    %v1695 = vsel %vm287, %v1688, 0
    %v1697 = vsel %vm287, %v1690, 0
    %v1699 = vsel %vm287, %v1692, 0
    %1701 = vmatprep.subr.mxu0 0.0
    %1702 = vmatpush1.xpose.msra.mxu0 %v1697
    %1703 = vmatprep.subr.mxu0 0.0
    %1704 = vmatpush1.xpose.msra.mxu0 %v1699
    %1705 = vmatprep.subr.mxu0 0.0
    %1706 = vmatpush1.xpose.msra.mxu0 0.0
    %1707 = vmatprep.subr.mxu0 0.0
    %1708 = vmatpush1.xpose.msra.mxu0 0.0
    %1709 = vmatprep.subr.mxu0 0.0
    %1710 = vmatpush1.xpose.msra.mxu0 0.0
    %1711 = vmatprep.subr.mxu0 0.0
    %1712 = vmatpush1.xpose.msra.mxu0 0.0
    %1713 = vmatprep.subr.mxu0 0.0
    %1714 = vmatpush1.xpose.msra.mxu0 0.0
    %1715 = vmatprep.subr.mxu0 0.0
    %1716 = vmatpush1.xpose.msra.mxu0 0.0
    %1717 = vmatprep.subr.mxu0 0.0
    %1718 = vmatpush1.xpose.msra.mxu0 0.0
    %1719 = vmatprep.subr.mxu0 0.0
    %1720 = vmatpush1.xpose.msra.mxu0 0.0
    %1721 = vmatprep.subr.mxu0 0.0
    %1722 = vmatpush1.xpose.msra.mxu0 0.0
    %1723 = vmatprep.subr.mxu0 0.0
    %1724 = vmatpush1.xpose.msra.mxu0 0.0
    %1725 = vmatprep.subr.mxu0 0.0
    %1726 = vmatpush1.xpose.msra.mxu0 0.0
    %1727 = vmatprep.subr.mxu0 0.0
    %1728 = vmatpush1.xpose.msra.mxu0 0.0
    %1729 = vmatprep.subr.mxu0 0.0
    %1730 = vmatpush1.xpose.msra.mxu0 0.0
    %1731 = vmatprep.subr.mxu0 0.0
    %1732 = vmatpush1.xpose.msra.mxu0 0.0
    %1733 = vmatprep.subr.mxu0 0.0
    %1734 = vmatpush1.xpose.msra.mxu0 0.0
    %1735 = vmatprep.subr.mxu0 0.0
    %1736 = vmatpush1.xpose.msra.mxu0 0.0
    %1737 = vmatprep.subr.mxu0 0.0
    %1738 = vmatpush1.xpose.msra.mxu0 0.0
    %1739 = vmatprep.subr.mxu0 0.0
    %1740 = vmatpush1.xpose.msra.mxu0 0.0
    %1741 = vmatprep.subr.mxu0 0.0
    %1742 = vmatpush1.xpose.msra.mxu0 0.0
    %1743 = vmatprep.subr.mxu0 0.0
    %1744 = vmatpush1.xpose.msra.mxu0 0.0
    %1745 = vmatprep.subr.mxu0 0.0
    %1746 = vmatpush1.xpose.msra.mxu0 0.0
    %1747 = vmatprep.subr.mxu0 0.0
    %1748 = vmatpush1.xpose.msra.mxu0 0.0
    %1749 = vmatprep.subr.mxu0 0.0
    %1750 = vmatpush1.xpose.msra.mxu0 0.0
    %1751 = vmatprep.subr.mxu0 0.0
    %1752 = vmatpush1.xpose.msra.mxu0 0.0
    %1753 = vmatprep.subr.mxu0 0.0
    %1754 = vmatpush1.xpose.msra.mxu0 0.0
    %1755 = vmatprep.subr.mxu0 0.0
    %1756 = vmatpush1.xpose.msra.mxu0 0.0
    %1757 = vmatprep.subr.mxu0 0.0
    %1758 = vmatpush1.xpose.msra.mxu0 0.0
    %1759 = vmatprep.subr.mxu0 0.0
    %1760 = vmatpush1.xpose.msra.mxu0 0.0
    %1761 = vmatprep.subr.mxu0 0.0
    %1762 = vmatpush1.xpose.msra.mxu0 0.0
    %1763 = vmatprep.subr.mxu0 0.0
    %1764 = vmatpush1.xpose.msra.mxu0 0.0
    %1765 = vmatprep.mubr.f32.mxu0 0.0
    %1766 = vmatmul.mubr.f32.gmra.mrb[0].mxu0 %v1693
    %v1767 = vpop.f32.mrb[0].mxu0
    %v1768 = vadd.f32 0.0, %v1767
    %v1769 = vpop.f32.mrb[0].mxu0
    %1770 = vmatprep.mubr.f32.mxu0 0.0
    %1771 = vmatmul.mubr.f32.gmra.mrb[0].mxu0 %v1695
    %v1772 = vpop.f32.mrb[0].mxu0
    %v1773 = vadd.f32 0.0, %v1772
    %v1774 = vpop.f32.mrb[0].mxu0
    %1775 = vdwg.mxu0
    %v1776 = vmul.f32 %v1768, 0.5
    %v1777 = vmul.f32 %v1773, 0.5
    %v1778 = vsel %vm183, 1e-09, %v1776
    %v1779 = vsel %vm184, 1e-09, %v1777
    %v1780 = vsel %vm185, -1e+30, %v1778
    %v1781 = vsel %vm186, -1e+30, %v1779
    %v1782 = vsel %vm377, %v1780, -inf
    %1783 = vmax.xlane.f32.xlu0 %v1782
    %v1784 = vpop.xlane.xlu0 %1783
    %v1785 = vsel %vm377, %v1781, -inf
    %1786 = vmax.xlane.f32.xlu0 %v1785
    %v1787 = vpop.xlane.xlu0 %1786
    %v1788 = vsub.f32 %v1780, %v1784
    %v1789 = vsub.f32 %v1781, %v1787
    %v1790 = vmul.f32 %v1788, 1.442695
    %v1791 = vpow.pop %v1790
    %v1792 = vmul.f32 %v1789, 1.442695
    %v1793 = vpow.pop %v1792
    %v1794 = vsel %vm377, %v1791, 0.0
    %1795 = vadd.xlane.f32.xlu0 %v1794
    %v1796 = vpop.xlane.xlu0 %1795
    %v1797 = vsel %vm377, %v1793, 0.0
    %1798 = vadd.xlane.f32.xlu0 %v1797
    %v1799 = vpop.xlane.xlu0 %1798
    %v1800 = vrcp.pop %v1796
    %v1801 = vmul.f32 %v1791, %v1800
    %v1802 = vrcp.pop %v1799
    %v1803 = vmul.f32 %v1793, %v1802
    %1804 = vrot.lane.b32.xlu0 %v1267, 48
    %v1805 = vpop.permute.xlu0 %1804
    %1806 = vrot.lane.b32.xlu0 %v1272, 48
    %v1807 = vpop.permute.xlu0 %1806
    %v1811 = vsel %vm377, %v1801, 0
    %v1814 = vsel %vm377, %v1803, 0
    %1816 = vmatprep.subr.mxu0 0.0
    %1817 = vmatpush1.msra.mxu0 %v1805
    %1818 = vmatprep.subr.mxu0 0.0
    %1819 = vmatpush1.msra.mxu0 %v1807
    %1820 = vmatprep.subr.mxu0 0.0
    %1821 = vmatpush1.msra.mxu0 0.0
    %1822 = vmatprep.subr.mxu0 0.0
    %1823 = vmatpush1.msra.mxu0 0.0
    %1824 = vmatprep.subr.mxu0 0.0
    %1825 = vmatpush1.msra.mxu0 0.0
    %1826 = vmatprep.subr.mxu0 0.0
    %1827 = vmatpush1.msra.mxu0 0.0
    %1828 = vmatprep.subr.mxu0 0.0
    %1829 = vmatpush1.msra.mxu0 0.0
    %1830 = vmatprep.subr.mxu0 0.0
    %1831 = vmatpush1.msra.mxu0 0.0
    %1832 = vmatprep.subr.mxu0 0.0
    %1833 = vmatpush1.msra.mxu0 0.0
    %1834 = vmatprep.subr.mxu0 0.0
    %1835 = vmatpush1.msra.mxu0 0.0
    %1836 = vmatprep.subr.mxu0 0.0
    %1837 = vmatpush1.msra.mxu0 0.0
    %1838 = vmatprep.subr.mxu0 0.0
    %1839 = vmatpush1.msra.mxu0 0.0
    %1840 = vmatprep.subr.mxu0 0.0
    %1841 = vmatpush1.msra.mxu0 0.0
    %1842 = vmatprep.subr.mxu0 0.0
    %1843 = vmatpush1.msra.mxu0 0.0
    %1844 = vmatprep.subr.mxu0 0.0
    %1845 = vmatpush1.msra.mxu0 0.0
    %1846 = vmatprep.subr.mxu0 0.0
    %1847 = vmatpush1.msra.mxu0 0.0
    %1848 = vmatprep.subr.mxu0 0.0
    %1849 = vmatpush1.msra.mxu0 0.0
    %1850 = vmatprep.subr.mxu0 0.0
    %1851 = vmatpush1.msra.mxu0 0.0
    %1852 = vmatprep.subr.mxu0 0.0
    %1853 = vmatpush1.msra.mxu0 0.0
    %1854 = vmatprep.subr.mxu0 0.0
    %1855 = vmatpush1.msra.mxu0 0.0
    %1856 = vmatprep.subr.mxu0 0.0
    %1857 = vmatpush1.msra.mxu0 0.0
    %1858 = vmatprep.subr.mxu0 0.0
    %1859 = vmatpush1.msra.mxu0 0.0
    %1860 = vmatprep.subr.mxu0 0.0
    %1861 = vmatpush1.msra.mxu0 0.0
    %1862 = vmatprep.subr.mxu0 0.0
    %1863 = vmatpush1.msra.mxu0 0.0
    %1864 = vmatprep.subr.mxu0 0.0
    %1865 = vmatpush1.msra.mxu0 0.0
    %1866 = vmatprep.subr.mxu0 0.0
    %1867 = vmatpush1.msra.mxu0 0.0
    %1868 = vmatprep.subr.mxu0 0.0
    %1869 = vmatpush1.msra.mxu0 0.0
    %1870 = vmatprep.subr.mxu0 0.0
    %1871 = vmatpush1.msra.mxu0 0.0
    %1872 = vmatprep.subr.mxu0 0.0
    %1873 = vmatpush1.msra.mxu0 0.0
    %1874 = vmatprep.subr.mxu0 0.0
    %1875 = vmatpush1.msra.mxu0 0.0
    %1876 = vmatprep.subr.mxu0 0.0
    %1877 = vmatpush1.msra.mxu0 0.0
    %1878 = vmatprep.subr.mxu0 0.0
    %1879 = vmatpush1.msra.mxu0 0.0
    %1880 = vmatprep.mubr.f32.mxu0 0.0
    %1881 = vmatmul.mubr.f32.gmra.mrb[0].mxu0 %v1811
    %v1882 = vpop.f32.mrb[0].mxu0
    %v1883 = vadd.f32 0.0, %v1882
    %v1884 = vpop.f32.mrb[0].mxu0
    %1885 = vmatprep.mubr.f32.mxu0 0.0
    %1886 = vmatmul.mubr.f32.gmra.mrb[0].mxu0 %v1814
    %v1887 = vpop.f32.mrb[0].mxu0
    %v1888 = vadd.f32 0.0, %v1887
    %v1889 = vpop.f32.mrb[0].mxu0
    %1890 = vdwg.mxu0
    %1891 = vrot.lane.b32.xlu0 %v1267, 104
    %v1892 = vpop.permute.xlu0 %1891
    %1893 = vrot.lane.b32.xlu0 %v1272, 104
    %v1894 = vpop.permute.xlu0 %1893
    %1895 = vrot.lane.b32.xlu0 %v1267, 72
    %v1896 = vpop.permute.xlu0 %1895
    %1897 = vrot.lane.b32.xlu0 %v1272, 72
    %v1898 = vpop.permute.xlu0 %1897
    %v1899 = vsel %vm287, %v1892, 0
    %v1901 = vsel %vm287, %v1894, 0
    %v1903 = vsel %vm287, %v1896, 0
    %v1905 = vsel %vm287, %v1898, 0
    %1907 = vmatprep.subr.mxu0 0.0
    %1908 = vmatpush1.xpose.msra.mxu0 %v1903
    %1909 = vmatprep.subr.mxu0 0.0
    %1910 = vmatpush1.xpose.msra.mxu0 %v1905
    %1911 = vmatprep.subr.mxu0 0.0
    %1912 = vmatpush1.xpose.msra.mxu0 0.0
    %1913 = vmatprep.subr.mxu0 0.0
    %1914 = vmatpush1.xpose.msra.mxu0 0.0
    %1915 = vmatprep.subr.mxu0 0.0
    %1916 = vmatpush1.xpose.msra.mxu0 0.0
    %1917 = vmatprep.subr.mxu0 0.0
    %1918 = vmatpush1.xpose.msra.mxu0 0.0
    %1919 = vmatprep.subr.mxu0 0.0
    %1920 = vmatpush1.xpose.msra.mxu0 0.0
    %1921 = vmatprep.subr.mxu0 0.0
    %1922 = vmatpush1.xpose.msra.mxu0 0.0
    %1923 = vmatprep.subr.mxu0 0.0
    %1924 = vmatpush1.xpose.msra.mxu0 0.0
    %1925 = vmatprep.subr.mxu0 0.0
    %1926 = vmatpush1.xpose.msra.mxu0 0.0
    %1927 = vmatprep.subr.mxu0 0.0
    %1928 = vmatpush1.xpose.msra.mxu0 0.0
    %1929 = vmatprep.subr.mxu0 0.0
    %1930 = vmatpush1.xpose.msra.mxu0 0.0
    %1931 = vmatprep.subr.mxu0 0.0
    %1932 = vmatpush1.xpose.msra.mxu0 0.0
    %1933 = vmatprep.subr.mxu0 0.0
    %1934 = vmatpush1.xpose.msra.mxu0 0.0
    %1935 = vmatprep.subr.mxu0 0.0
    %1936 = vmatpush1.xpose.msra.mxu0 0.0
    %1937 = vmatprep.subr.mxu0 0.0
    %1938 = vmatpush1.xpose.msra.mxu0 0.0
    %1939 = vmatprep.subr.mxu0 0.0
    %1940 = vmatpush1.xpose.msra.mxu0 0.0
    %1941 = vmatprep.subr.mxu0 0.0
    %1942 = vmatpush1.xpose.msra.mxu0 0.0
    %1943 = vmatprep.subr.mxu0 0.0
    %1944 = vmatpush1.xpose.msra.mxu0 0.0
    %1945 = vmatprep.subr.mxu0 0.0
    %1946 = vmatpush1.xpose.msra.mxu0 0.0
    %1947 = vmatprep.subr.mxu0 0.0
    %1948 = vmatpush1.xpose.msra.mxu0 0.0
    %1949 = vmatprep.subr.mxu0 0.0
    %1950 = vmatpush1.xpose.msra.mxu0 0.0
    %1951 = vmatprep.subr.mxu0 0.0
    %1952 = vmatpush1.xpose.msra.mxu0 0.0
    %1953 = vmatprep.subr.mxu0 0.0
    %1954 = vmatpush1.xpose.msra.mxu0 0.0
    %1955 = vmatprep.subr.mxu0 0.0
    %1956 = vmatpush1.xpose.msra.mxu0 0.0
    %1957 = vmatprep.subr.mxu0 0.0
    %1958 = vmatpush1.xpose.msra.mxu0 0.0
    %1959 = vmatprep.subr.mxu0 0.0
    %1960 = vmatpush1.xpose.msra.mxu0 0.0
    %1961 = vmatprep.subr.mxu0 0.0
    %1962 = vmatpush1.xpose.msra.mxu0 0.0
    %1963 = vmatprep.subr.mxu0 0.0
    %1964 = vmatpush1.xpose.msra.mxu0 0.0
    %1965 = vmatprep.subr.mxu0 0.0
    %1966 = vmatpush1.xpose.msra.mxu0 0.0
    %1967 = vmatprep.subr.mxu0 0.0
    %1968 = vmatpush1.xpose.msra.mxu0 0.0
    %1969 = vmatprep.subr.mxu0 0.0
    %1970 = vmatpush1.xpose.msra.mxu0 0.0
    %1971 = vmatprep.mubr.f32.mxu0 0.0
    %1972 = vmatmul.mubr.f32.gmra.mrb[0].mxu0 %v1899
    %v1973 = vpop.f32.mrb[0].mxu0
    %v1974 = vadd.f32 0.0, %v1973
    %v1975 = vpop.f32.mrb[0].mxu0
    %1976 = vmatprep.mubr.f32.mxu0 0.0
    %1977 = vmatmul.mubr.f32.gmra.mrb[0].mxu0 %v1901
    %v1978 = vpop.f32.mrb[0].mxu0
    %v1979 = vadd.f32 0.0, %v1978
    %v1980 = vpop.f32.mrb[0].mxu0
    %1981 = vdwg.mxu0
    %v1982 = vmul.f32 %v1974, 0.5
    %v1983 = vmul.f32 %v1979, 0.5
    %v1984 = vsel %vm183, 1e-09, %v1982
    %v1985 = vsel %vm184, 1e-09, %v1983
    %v1986 = vsel %vm185, -1e+30, %v1984
    %v1987 = vsel %vm186, -1e+30, %v1985
    %v1988 = vsel %vm377, %v1986, -inf
    %1989 = vmax.xlane.f32.xlu0 %v1988
    %v1990 = vpop.xlane.xlu0 %1989
    %v1991 = vsel %vm377, %v1987, -inf
    %1992 = vmax.xlane.f32.xlu0 %v1991
    %v1993 = vpop.xlane.xlu0 %1992
    %v1994 = vsub.f32 %v1986, %v1990
    %v1995 = vsub.f32 %v1987, %v1993
    %v1996 = vmul.f32 %v1994, 1.442695
    %v1997 = vpow.pop %v1996
    %v1998 = vmul.f32 %v1995, 1.442695
    %v1999 = vpow.pop %v1998
    %v2000 = vsel %vm377, %v1997, 0.0
    %2001 = vadd.xlane.f32.xlu0 %v2000
    %v2002 = vpop.xlane.xlu0 %2001
    %v2003 = vsel %vm377, %v1999, 0.0
    %2004 = vadd.xlane.f32.xlu0 %v2003
    %v2005 = vpop.xlane.xlu0 %2004
    %v2006 = vrcp.pop %v2002
    %v2007 = vmul.f32 %v1997, %v2006
    %v2008 = vrcp.pop %v2005
    %v2009 = vmul.f32 %v1999, %v2008
    %2010 = vrot.lane.b32.xlu0 %v1267, 40
    %v2011 = vpop.permute.xlu0 %2010
    %2012 = vrot.lane.b32.xlu0 %v1272, 40
    %v2013 = vpop.permute.xlu0 %2012
    %v2017 = vsel %vm377, %v2007, 0
    %v2020 = vsel %vm377, %v2009, 0
    %2022 = vmatprep.subr.mxu0 0.0
    %2023 = vmatpush1.msra.mxu0 %v2011
    %2024 = vmatprep.subr.mxu0 0.0
    %2025 = vmatpush1.msra.mxu0 %v2013
    %2026 = vmatprep.subr.mxu0 0.0
    %2027 = vmatpush1.msra.mxu0 0.0
    %2028 = vmatprep.subr.mxu0 0.0
    %2029 = vmatpush1.msra.mxu0 0.0
    %2030 = vmatprep.subr.mxu0 0.0
    %2031 = vmatpush1.msra.mxu0 0.0
    %2032 = vmatprep.subr.mxu0 0.0
    %2033 = vmatpush1.msra.mxu0 0.0
    %2034 = vmatprep.subr.mxu0 0.0
    %2035 = vmatpush1.msra.mxu0 0.0
    %2036 = vmatprep.subr.mxu0 0.0
    %2037 = vmatpush1.msra.mxu0 0.0
    %2038 = vmatprep.subr.mxu0 0.0
    %2039 = vmatpush1.msra.mxu0 0.0
    %2040 = vmatprep.subr.mxu0 0.0
    %2041 = vmatpush1.msra.mxu0 0.0
    %2042 = vmatprep.subr.mxu0 0.0
    %2043 = vmatpush1.msra.mxu0 0.0
    %2044 = vmatprep.subr.mxu0 0.0
    %2045 = vmatpush1.msra.mxu0 0.0
    %2046 = vmatprep.subr.mxu0 0.0
    %2047 = vmatpush1.msra.mxu0 0.0
    %2048 = vmatprep.subr.mxu0 0.0
    %2049 = vmatpush1.msra.mxu0 0.0
    %2050 = vmatprep.subr.mxu0 0.0
    %2051 = vmatpush1.msra.mxu0 0.0
    %2052 = vmatprep.subr.mxu0 0.0
    %2053 = vmatpush1.msra.mxu0 0.0
    %2054 = vmatprep.subr.mxu0 0.0
    %2055 = vmatpush1.msra.mxu0 0.0
    %2056 = vmatprep.subr.mxu0 0.0
    %2057 = vmatpush1.msra.mxu0 0.0
    %2058 = vmatprep.subr.mxu0 0.0
    %2059 = vmatpush1.msra.mxu0 0.0
    %2060 = vmatprep.subr.mxu0 0.0
    %2061 = vmatpush1.msra.mxu0 0.0
    %2062 = vmatprep.subr.mxu0 0.0
    %2063 = vmatpush1.msra.mxu0 0.0
    %2064 = vmatprep.subr.mxu0 0.0
    %2065 = vmatpush1.msra.mxu0 0.0
    %2066 = vmatprep.subr.mxu0 0.0
    %2067 = vmatpush1.msra.mxu0 0.0
    %2068 = vmatprep.subr.mxu0 0.0
    %2069 = vmatpush1.msra.mxu0 0.0
    %2070 = vmatprep.subr.mxu0 0.0
    %2071 = vmatpush1.msra.mxu0 0.0
    %2072 = vmatprep.subr.mxu0 0.0
    %2073 = vmatpush1.msra.mxu0 0.0
    %2074 = vmatprep.subr.mxu0 0.0
    %2075 = vmatpush1.msra.mxu0 0.0
    %2076 = vmatprep.subr.mxu0 0.0
    %2077 = vmatpush1.msra.mxu0 0.0
    %2078 = vmatprep.subr.mxu0 0.0
    %2079 = vmatpush1.msra.mxu0 0.0
    %2080 = vmatprep.subr.mxu0 0.0
    %2081 = vmatpush1.msra.mxu0 0.0
    %2082 = vmatprep.subr.mxu0 0.0
    %2083 = vmatpush1.msra.mxu0 0.0
    %2084 = vmatprep.subr.mxu0 0.0
    %2085 = vmatpush1.msra.mxu0 0.0
    %2086 = vmatprep.mubr.f32.mxu0 0.0
    %2087 = vmatmul.mubr.f32.gmra.mrb[0].mxu0 %v2017
    %v2088 = vpop.f32.mrb[0].mxu0
    %v2089 = vadd.f32 0.0, %v2088
    %v2090 = vpop.f32.mrb[0].mxu0
    %2091 = vmatprep.mubr.f32.mxu0 0.0
    %2092 = vmatmul.mubr.f32.gmra.mrb[0].mxu0 %v2020
    %v2093 = vpop.f32.mrb[0].mxu0
    %v2094 = vadd.f32 0.0, %v2093
    %v2095 = vpop.f32.mrb[0].mxu0
    %2096 = vdwg.mxu0
    %2099 = vrot.lane.b32.xlu0 %v1677, 8
    %v2100 = vpop.permute.xlu0 %2099
    %2101 = vrot.lane.b32.xlu0 %v1682, 8
    %v2102 = vpop.permute.xlu0 %2101
    %2107 = vrot.lane.b32.xlu0 %v1883, 16
    %v2108 = vpop.permute.xlu0 %2107
    %2109 = vrot.lane.b32.xlu0 %v1888, 16
    %v2110 = vpop.permute.xlu0 %2109
    %2115 = vrot.lane.b32.xlu0 %v2089, 24
    %v2116 = vpop.permute.xlu0 %2115
    %2117 = vrot.lane.b32.xlu0 %v2094, 24
    %v2118 = vpop.permute.xlu0 %2117
    %v2121 = vsel %vm287, %v1471, %v2100
    %v2122 = vsel %vm287, %v1476, %v2102
    %v2123 = vsel %vm377, %v2121, %v2108
    %v2124 = vsel %vm377, %v2122, %v2110
    %v2125 = vsel %vm1133, %v2123, %v2116
    %v2126 = vsel %vm1133, %v2124, %v2118
    %v2127 = vadd.f32 %v2125, %v1179
    %v2128 = vadd.f32 %v2126, %v1180
    %v2129 = vsel %vm99, %v2127, 0.0
    %2130 = vadd.xlane.f32.xlu0 %v2129
    %v2131 = vpop.xlane.xlu0 %2130
    %v2132 = vsel %vm99, %v2128, 0.0
    %2133 = vadd.xlane.f32.xlu0 %v2132
    %v2134 = vpop.xlane.xlu0 %2133
    %v2135 = vmul.f32 %v2131, %v1144
    %v2136 = vmul.f32 %v2134, %v1144
    %v2137 = vsub.f32 %v2127, %v2135
    %v2138 = vsub.f32 %v2128, %v2136
    %v2139 = vmul.f32 %v2137, %v2137
    %v2140 = vmul.f32 %v2138, %v2138
    %v2141 = vsel %vm99, %v2139, 0.0
    %2142 = vadd.xlane.f32.xlu0 %v2141
    %v2143 = vpop.xlane.xlu0 %2142
    %v2144 = vsel %vm99, %v2140, 0.0
    %2145 = vadd.xlane.f32.xlu0 %v2144
    %v2146 = vpop.xlane.xlu0 %2145
    %v2147 = vmul.f32 %v2143, %v1144
    %v2148 = vmul.f32 %v2146, %v1144
    %v2149 = vadd.f32 %v2147, 1e-05
    %v2150 = vadd.f32 %v2148, 1e-05
    %v2151 = vrsqrt.pop %v2149
    %v2152 = vrsqrt.pop %v2150
    %v2153 = vmul.f32 %v2137, %v2151
    %v2154 = vmul.f32 %v2138, %v2152
    %v2156 = vlaneseq
    %v2157 = vshrl.u32 %v2156, 7
    %v2158 = vsub.s32 0, %v2157
    %v2159 = vrot.slane %v1186, %v2158
    %v2161 = vmul.f32 %v2153, %v2159
    %v2162 = vmul.f32 %v2154, %v2159
    %v2164 = vlaneseq
    %v2165 = vshrl.u32 %v2164, 7
    %v2166 = vsub.s32 0, %v2165
    %v2167 = vrot.slane %v1187, %v2166
    %v2169 = vadd.f32 %v2161, %v2167
    %v2170 = vadd.f32 %v2162, %v2167
    %v2171 = vld [vmem:[%s12] sm:$0xff]
    %v2172 = vld [vmem:[%s12 + $0x8] sm:$0xff]
    %v2173 = vld [vmem:[%s12 + $0x10] sm:$0xff]
    %v2174 = vld [vmem:[%s12 + $0x18] sm:$0xff]
    %v2175 = vld [vmem:[%s13] sm:$0x1]
    %v2176 = vld [vmem:[%s14] sm:$0xff]
    %v2177 = vld [vmem:[%s14 + $0x8] sm:$0xff]
    %v2178 = vld [vmem:[%s14 + $0x10] sm:$0xff]
    %v2179 = vld [vmem:[%s14 + $0x18] sm:$0xff]
    %v2180 = vld [vmem:[%s14 + $0x20] sm:$0xff]
    %v2181 = vld [vmem:[%s14 + $0x28] sm:$0xff]
    %v2182 = vld [vmem:[%s14 + $0x30] sm:$0xff]
    %v2183 = vld [vmem:[%s14 + $0x38] sm:$0xff]
    %v2184 = vld [vmem:[%s15] sm:$0x1]
    %v2185 = vld [vmem:[%s16] sm:$0x1]
    %v2186 = vld [vmem:[%s17] sm:$0x1]
    %v2188 = vlaneseq
    %v2189 = vshrl.u32 %v2188, 7
    %v2190 = vsub.s32 0, %v2189
    %v2191 = vrot.slane %v2175, %v2190
    %v2194 = vsel %vm99, %v2169, 0
    %v2197 = vsel %vm99, %v2170, 0
    %2199 = vmatprep.subr.mxu0 0.0
    %2200 = vmatpush1.msra.mxu0 %v2171
    %2201 = vmatprep.subr.mxu0 0.0
    %2202 = vmatpush1.msra.mxu0 %v2172
    %2203 = vmatprep.subr.mxu0 0.0
    %2204 = vmatpush1.msra.mxu0 %v2173
    %2205 = vmatprep.subr.mxu0 0.0
    %2206 = vmatpush1.msra.mxu0 %v2174
    %2207 = vmatprep.subr.mxu0 0.0
    %2208 = vmatpush1.msra.mxu0 0.0
    %2209 = vmatprep.subr.mxu0 0.0
    %2210 = vmatpush1.msra.mxu0 0.0
    %2211 = vmatprep.subr.mxu0 0.0
    %2212 = vmatpush1.msra.mxu0 0.0
    %2213 = vmatprep.subr.mxu0 0.0
    %2214 = vmatpush1.msra.mxu0 0.0
    %2215 = vmatprep.subr.mxu0 0.0
    %2216 = vmatpush1.msra.mxu0 0.0
    %2217 = vmatprep.subr.mxu0 0.0
    %2218 = vmatpush1.msra.mxu0 0.0
    %2219 = vmatprep.subr.mxu0 0.0
    %2220 = vmatpush1.msra.mxu0 0.0
    %2221 = vmatprep.subr.mxu0 0.0
    %2222 = vmatpush1.msra.mxu0 0.0
    %2223 = vmatprep.subr.mxu0 0.0
    %2224 = vmatpush1.msra.mxu0 0.0
    %2225 = vmatprep.subr.mxu0 0.0
    %2226 = vmatpush1.msra.mxu0 0.0
    %2227 = vmatprep.subr.mxu0 0.0
    %2228 = vmatpush1.msra.mxu0 0.0
    %2229 = vmatprep.subr.mxu0 0.0
    %2230 = vmatpush1.msra.mxu0 0.0
    %2231 = vmatprep.subr.mxu0 0.0
    %2232 = vmatpush1.msra.mxu0 0.0
    %2233 = vmatprep.subr.mxu0 0.0
    %2234 = vmatpush1.msra.mxu0 0.0
    %2235 = vmatprep.subr.mxu0 0.0
    %2236 = vmatpush1.msra.mxu0 0.0
    %2237 = vmatprep.subr.mxu0 0.0
    %2238 = vmatpush1.msra.mxu0 0.0
    %2239 = vmatprep.subr.mxu0 0.0
    %2240 = vmatpush1.msra.mxu0 0.0
    %2241 = vmatprep.subr.mxu0 0.0
    %2242 = vmatpush1.msra.mxu0 0.0
    %2243 = vmatprep.subr.mxu0 0.0
    %2244 = vmatpush1.msra.mxu0 0.0
    %2245 = vmatprep.subr.mxu0 0.0
    %2246 = vmatpush1.msra.mxu0 0.0
    %2247 = vmatprep.subr.mxu0 0.0
    %2248 = vmatpush1.msra.mxu0 0.0
    %2249 = vmatprep.subr.mxu0 0.0
    %2250 = vmatpush1.msra.mxu0 0.0
    %2251 = vmatprep.subr.mxu0 0.0
    %2252 = vmatpush1.msra.mxu0 0.0
    %2253 = vmatprep.subr.mxu0 0.0
    %2254 = vmatpush1.msra.mxu0 0.0
    %2255 = vmatprep.subr.mxu0 0.0
    %2256 = vmatpush1.msra.mxu0 0.0
    %2257 = vmatprep.subr.mxu0 0.0
    %2258 = vmatpush1.msra.mxu0 0.0
    %2259 = vmatprep.subr.mxu0 0.0
    %2260 = vmatpush1.msra.mxu0 0.0
    %2261 = vmatprep.subr.mxu0 0.0
    %2262 = vmatpush1.msra.mxu0 0.0
    %2263 = vmatprep.mubr.f32.mxu0 0.0
    %2264 = vmatmul.mubr.f32.gmra.mrb[0].mxu0 %v2194
    %v2265 = vpop.f32.mrb[0].mxu0
    %v2266 = vadd.f32 %v2191, %v2265
    %v2267 = vpop.f32.mrb[0].mxu0
    %2268 = vmatprep.mubr.f32.mxu0 0.0
    %2269 = vmatmul.mubr.f32.gmra.mrb[0].mxu0 %v2197
    %v2270 = vpop.f32.mrb[0].mxu0
    %v2271 = vadd.f32 %v2191, %v2270
    %v2272 = vpop.f32.mrb[0].mxu0
    %2273 = vdwg.mxu0
    %v2274 = vmax.f32 %v2266, 0.0
    %v2275 = vmax.f32 %v2271, 0.0
    %v2277 = vlaneseq
    %v2278 = vshrl.u32 %v2277, 7
    %v2279 = vsub.s32 0, %v2278
    %v2280 = vrot.slane %v2184, %v2279
    %vm2282 = vcmask 523264
    %v2284 = vsel %vm2282, %v2274, 0
    %v2287 = vsel %vm2282, %v2275, 0
    %2289 = vmatprep.subr.mxu0 0.0
    %2290 = vmatpush1.msra.mxu0 %v2176
    %2291 = vmatprep.subr.mxu0 0.0
    %2292 = vmatpush1.msra.mxu0 %v2177
    %2293 = vmatprep.subr.mxu0 0.0
    %2294 = vmatpush1.msra.mxu0 %v2178
    %2295 = vmatprep.subr.mxu0 0.0
    %2296 = vmatpush1.msra.mxu0 %v2179
    %2297 = vmatprep.subr.mxu0 0.0
    %2298 = vmatpush1.msra.mxu0 %v2180
    %2299 = vmatprep.subr.mxu0 0.0
    %2300 = vmatpush1.msra.mxu0 %v2181
    %2301 = vmatprep.subr.mxu0 0.0
    %2302 = vmatpush1.msra.mxu0 %v2182
    %2303 = vmatprep.subr.mxu0 0.0
    %2304 = vmatpush1.msra.mxu0 %v2183
    %2305 = vmatprep.subr.mxu0 0.0
    %2306 = vmatpush1.msra.mxu0 0.0
    %2307 = vmatprep.subr.mxu0 0.0
    %2308 = vmatpush1.msra.mxu0 0.0
    %2309 = vmatprep.subr.mxu0 0.0
    %2310 = vmatpush1.msra.mxu0 0.0
    %2311 = vmatprep.subr.mxu0 0.0
    %2312 = vmatpush1.msra.mxu0 0.0
    %2313 = vmatprep.subr.mxu0 0.0
    %2314 = vmatpush1.msra.mxu0 0.0
    %2315 = vmatprep.subr.mxu0 0.0
    %2316 = vmatpush1.msra.mxu0 0.0
    %2317 = vmatprep.subr.mxu0 0.0
    %2318 = vmatpush1.msra.mxu0 0.0
    %2319 = vmatprep.subr.mxu0 0.0
    %2320 = vmatpush1.msra.mxu0 0.0
    %2321 = vmatprep.subr.mxu0 0.0
    %2322 = vmatpush1.msra.mxu0 0.0
    %2323 = vmatprep.subr.mxu0 0.0
    %2324 = vmatpush1.msra.mxu0 0.0
    %2325 = vmatprep.subr.mxu0 0.0
    %2326 = vmatpush1.msra.mxu0 0.0
    %2327 = vmatprep.subr.mxu0 0.0
    %2328 = vmatpush1.msra.mxu0 0.0
    %2329 = vmatprep.subr.mxu0 0.0
    %2330 = vmatpush1.msra.mxu0 0.0
    %2331 = vmatprep.subr.mxu0 0.0
    %2332 = vmatpush1.msra.mxu0 0.0
    %2333 = vmatprep.subr.mxu0 0.0
    %2334 = vmatpush1.msra.mxu0 0.0
    %2335 = vmatprep.subr.mxu0 0.0
    %2336 = vmatpush1.msra.mxu0 0.0
    %2337 = vmatprep.subr.mxu0 0.0
    %2338 = vmatpush1.msra.mxu0 0.0
    %2339 = vmatprep.subr.mxu0 0.0
    %2340 = vmatpush1.msra.mxu0 0.0
    %2341 = vmatprep.subr.mxu0 0.0
    %2342 = vmatpush1.msra.mxu0 0.0
    %2343 = vmatprep.subr.mxu0 0.0
    %2344 = vmatpush1.msra.mxu0 0.0
    %2345 = vmatprep.subr.mxu0 0.0
    %2346 = vmatpush1.msra.mxu0 0.0
    %2347 = vmatprep.subr.mxu0 0.0
    %2348 = vmatpush1.msra.mxu0 0.0
    %2349 = vmatprep.subr.mxu0 0.0
    %2350 = vmatpush1.msra.mxu0 0.0
    %2351 = vmatprep.subr.mxu0 0.0
    %2352 = vmatpush1.msra.mxu0 0.0
    %2353 = vmatprep.mubr.f32.mxu0 0.0
    %2354 = vmatmul.mubr.f32.gmra.mrb[0].mxu0 %v2284
    %v2355 = vpop.f32.mrb[0].mxu0
    %v2356 = vadd.f32 %v2280, %v2355
    %v2357 = vpop.f32.mrb[0].mxu0
    %2358 = vmatprep.mubr.f32.mxu0 0.0
    %2359 = vmatmul.mubr.f32.gmra.mrb[0].mxu0 %v2287
    %v2360 = vpop.f32.mrb[0].mxu0
    %v2361 = vadd.f32 %v2280, %v2360
    %v2362 = vpop.f32.mrb[0].mxu0
    %2363 = vdwg.mxu0
    %v2364 = vadd.f32 %v2356, %v2169
    %v2365 = vadd.f32 %v2361, %v2170
    %v2366 = vsel %vm99, %v2364, 0.0
    %2367 = vadd.xlane.f32.xlu0 %v2366
    %v2368 = vpop.xlane.xlu0 %2367
    %v2369 = vsel %vm99, %v2365, 0.0
    %2370 = vadd.xlane.f32.xlu0 %v2369
    %v2371 = vpop.xlane.xlu0 %2370
    %v2372 = vmul.f32 %v2368, %v1144
    %v2373 = vmul.f32 %v2371, %v1144
    %v2374 = vsub.f32 %v2364, %v2372
    %v2375 = vsub.f32 %v2365, %v2373
    %v2376 = vmul.f32 %v2374, %v2374
    %v2377 = vmul.f32 %v2375, %v2375
    %v2378 = vsel %vm99, %v2376, 0.0
    %2379 = vadd.xlane.f32.xlu0 %v2378
    %v2380 = vpop.xlane.xlu0 %2379
    %v2381 = vsel %vm99, %v2377, 0.0
    %2382 = vadd.xlane.f32.xlu0 %v2381
    %v2383 = vpop.xlane.xlu0 %2382
    %v2384 = vmul.f32 %v2380, %v1144
    %v2385 = vmul.f32 %v2383, %v1144
    %v2386 = vadd.f32 %v2384, 1e-05
    %v2387 = vadd.f32 %v2385, 1e-05
    %v2388 = vrsqrt.pop %v2386
    %v2389 = vrsqrt.pop %v2387
    %v2390 = vmul.f32 %v2374, %v2388
    %v2391 = vmul.f32 %v2375, %v2389
    %v2393 = vlaneseq
    %v2394 = vshrl.u32 %v2393, 7
    %v2395 = vsub.s32 0, %v2394
    %v2396 = vrot.slane %v2185, %v2395
    %v2398 = vmul.f32 %v2390, %v2396
    %v2399 = vmul.f32 %v2391, %v2396
    %v2401 = vlaneseq
    %v2402 = vshrl.u32 %v2401, 7
    %v2403 = vsub.s32 0, %v2402
    %v2404 = vrot.slane %v2186, %v2403
    %v2406 = vadd.f32 %v2398, %v2404
    %v2407 = vadd.f32 %v2399, %v2404
    %v2408 = vld [vmem:[%s18] sm:$0xff]
    %v2409 = vld [vmem:[%s18 + $0x8] sm:$0xff]
    %v2410 = vld [vmem:[%s18 + $0x10] sm:$0xff]
    %v2411 = vld [vmem:[%s18 + $0x18] sm:$0xff]
    %v2412 = vld [vmem:[#allocation2] sm:$0x1]
    %v2414 = vlaneseq
    %v2415 = vshrl.u32 %v2414, 7
    %v2416 = vsub.s32 0, %v2415
    %v2417 = vrot.slane %v2412, %v2416
    %v2420 = vsel %vm99, %v2406, 0
    %v2423 = vsel %vm99, %v2407, 0
    %2425 = vmatprep.subr.mxu0 0.0
    %2426 = vmatpush1.msra.mxu0 %v2408
    %2427 = vmatprep.subr.mxu0 0.0
    %2428 = vmatpush1.msra.mxu0 %v2409
    %2429 = vmatprep.subr.mxu0 0.0
    %2430 = vmatpush1.msra.mxu0 %v2410
    %2431 = vmatprep.subr.mxu0 0.0
    %2432 = vmatpush1.msra.mxu0 %v2411
    %2433 = vmatprep.subr.mxu0 0.0
    %2434 = vmatpush1.msra.mxu0 0.0
    %2435 = vmatprep.subr.mxu0 0.0
    %2436 = vmatpush1.msra.mxu0 0.0
    %2437 = vmatprep.subr.mxu0 0.0
    %2438 = vmatpush1.msra.mxu0 0.0
    %2439 = vmatprep.subr.mxu0 0.0
    %2440 = vmatpush1.msra.mxu0 0.0
    %2441 = vmatprep.subr.mxu0 0.0
    %2442 = vmatpush1.msra.mxu0 0.0
    %2443 = vmatprep.subr.mxu0 0.0
    %2444 = vmatpush1.msra.mxu0 0.0
    %2445 = vmatprep.subr.mxu0 0.0
    %2446 = vmatpush1.msra.mxu0 0.0
    %2447 = vmatprep.subr.mxu0 0.0
    %2448 = vmatpush1.msra.mxu0 0.0
    %2449 = vmatprep.subr.mxu0 0.0
    %2450 = vmatpush1.msra.mxu0 0.0
    %2451 = vmatprep.subr.mxu0 0.0
    %2452 = vmatpush1.msra.mxu0 0.0
    %2453 = vmatprep.subr.mxu0 0.0
    %2454 = vmatpush1.msra.mxu0 0.0
    %2455 = vmatprep.subr.mxu0 0.0
    %2456 = vmatpush1.msra.mxu0 0.0
    %2457 = vmatprep.subr.mxu0 0.0
    %2458 = vmatpush1.msra.mxu0 0.0
    %2459 = vmatprep.subr.mxu0 0.0
    %2460 = vmatpush1.msra.mxu0 0.0
    %2461 = vmatprep.subr.mxu0 0.0
    %2462 = vmatpush1.msra.mxu0 0.0
    %2463 = vmatprep.subr.mxu0 0.0
    %2464 = vmatpush1.msra.mxu0 0.0
    %2465 = vmatprep.subr.mxu0 0.0
    %2466 = vmatpush1.msra.mxu0 0.0
    %2467 = vmatprep.subr.mxu0 0.0
    %2468 = vmatpush1.msra.mxu0 0.0
    %2469 = vmatprep.subr.mxu0 0.0
    %2470 = vmatpush1.msra.mxu0 0.0
    %2471 = vmatprep.subr.mxu0 0.0
    %2472 = vmatpush1.msra.mxu0 0.0
    %2473 = vmatprep.subr.mxu0 0.0
    %2474 = vmatpush1.msra.mxu0 0.0
    %2475 = vmatprep.subr.mxu0 0.0
    %2476 = vmatpush1.msra.mxu0 0.0
    %2477 = vmatprep.subr.mxu0 0.0
    %2478 = vmatpush1.msra.mxu0 0.0
    %2479 = vmatprep.subr.mxu0 0.0
    %2480 = vmatpush1.msra.mxu0 0.0
    %2481 = vmatprep.subr.mxu0 0.0
    %2482 = vmatpush1.msra.mxu0 0.0
    %2483 = vmatprep.subr.mxu0 0.0
    %2484 = vmatpush1.msra.mxu0 0.0
    %2485 = vmatprep.subr.mxu0 0.0
    %2486 = vmatpush1.msra.mxu0 0.0
    %2487 = vmatprep.subr.mxu0 0.0
    %2488 = vmatpush1.msra.mxu0 0.0
    %2489 = vmatprep.mubr.f32.mxu0 0.0
    %2490 = vmatmul.mubr.f32.gmra.mrb[0].mxu0 %v2420
    %v2491 = vpop.f32.mrb[0].mxu0
    %v2492 = vadd.f32 %v2417, %v2491
    %v2493 = vpop.f32.mrb[0].mxu0
    %2494 = vmatprep.mubr.f32.mxu0 0.0
    %2495 = vmatmul.mubr.f32.gmra.mrb[0].mxu0 %v2423
    %v2496 = vpop.f32.mrb[0].mxu0
    %v2497 = vadd.f32 %v2417, %v2496
    %v2498 = vpop.f32.mrb[0].mxu0
    %2499 = vdwg.mxu0
    %v2500 = vsel %vm99, %v2492, -inf
    %2501 = vmax.xlane.f32.xlu0 %v2500
    %v2502 = vpop.xlane.xlu0 %2501
    %v2503 = vsel %vm99, %v2497, -inf
    %2504 = vmax.xlane.f32.xlu0 %v2503
    %v2505 = vpop.xlane.xlu0 %2504
    %vm2506 = vcmp.ge.f32.partialorder %v2492, %v2502
    %vm2507 = vcmp.ge.f32.partialorder %v2497, %v2505
    %v2508 = vsel %vm2506, %v80, 32
    %v2509 = vsel %vm2507, %v80, 32
    %v2510 = vsel %vm99, %v2508, 2147483647
    %v2511 = vand.u32 %v2510, 65535
    %v2512 = vshra.s32 %v2510, 16
    %v2513 = vcvt.s32.f32 %v2511
    %v2514 = vcvt.s32.f32 %v2512
    %2515 = vmin.xlane.f32.xlu0 %v2514
    %v2516 = vpop.xlane.xlu0 %2515
    %vm2517 = vcmp.eq.f32.partialorder %v2514, %v2516
    %v2518 = vsel %vm2517, %v2513, inf
    %2519 = vmin.xlane.f32.xlu0 %v2518
    %v2520 = vpop.xlane.xlu0 %2519
    %v2521 = vcvt.f32.s32 %v2520
    %v2522 = vcvt.f32.s32 %v2516
    %v2523 = vshll.u32 %v2522, 16
    %v2524 = vadd.s32 %v2523, %v2521
    %v2525 = vsel %vm99, %v2509, 2147483647
    %v2526 = vand.u32 %v2525, 65535
    %v2527 = vshra.s32 %v2525, 16
    %v2528 = vcvt.s32.f32 %v2526
    %v2529 = vcvt.s32.f32 %v2527
    %2530 = vmin.xlane.f32.xlu0 %v2529
    %v2531 = vpop.xlane.xlu0 %2530
    %vm2532 = vcmp.eq.f32.partialorder %v2529, %v2531
    %v2533 = vsel %vm2532, %v2528, inf
    %2534 = vmin.xlane.f32.xlu0 %v2533
    %v2535 = vpop.xlane.xlu0 %2534
    %v2536 = vcvt.f32.s32 %v2535
    %v2537 = vcvt.f32.s32 %v2531
    %v2538 = vshll.u32 %v2537, 16
    %v2539 = vadd.s32 %v2538, %v2536
    %vm2540 = vcmask 7168
    %2541 = vst.msk [vmem:[%s20] sm:$0xff] %vm2540, %v2524
    %2542 = vst.msk [vmem:[%s20 + $0x8] sm:$0xff] %vm2540, %v2539
    // Predicated region
    $region86: #{gpt_forward.1} parent=1 // pred_check
      _
    $region87: #{gpt_forward.1} parent=1 // pred_check_branch
      %2544 = sbr.rel (0) target = $region89
    $region88: #{gpt_forward.1} parent=1 // pred_region
      _
    $region89: #{gpt_forward.1} parent=1 // pred_fallthru
      _
    // Predicated region
    $region90: #{gpt_forward.1} parent=1 // pred_check
      _
    $region91: #{gpt_forward.1} parent=1 // pred_check_branch
      %2546 = sbr.rel (0) target = $region93
    $region92: #{gpt_forward.1} parent=1 // pred_region
      _
    $region93: #{gpt_forward.1} parent=1 // pred_fallthru
      _
    %2547 = vsyncpa [#allocation3], 1

</llo_original>
